<compile_context>
chip_gen: v7x
topology: tpu7x:2x2x1
jax: 0.10.0
libtpu: 0.0.40
codegen_flags: <defaults>
</compile_context>

<pallas_src>
import jax
import jax.numpy as jnp
from jax import lax
from jax.experimental import pallas as pl
from jax.experimental.pallas import tpu as pltpu


# ---------------------------------------------------------------------------
# numerics helpers (identical in kernel and reference)
# ---------------------------------------------------------------------------
def _sigmoid(v):
    return 1.0 / (1.0 + jnp.exp(-v))


def _silu(v):
    return v * _sigmoid(v)


def _softplus(v):
    return jnp.where(v > 30.0, v, jnp.log(1.0 + jnp.exp(jnp.minimum(v, 30.0))))


# ---------------------------------------------------------------------------
# Pallas kernel: one (batch-tile, sequence-chunk) per grid step.
# Token layout inside the kernel is time-major: row = t*Bt + b, so a shift of
# k timesteps is a shift of k*Bt rows and the scan reads Bt contiguous rows.
# ---------------------------------------------------------------------------
def mamba_layer_kernel(
    x_ref,       # (Bt, Lc*D)            lane-dense input block
    w_in_ref,    # (D, 2*d_inner)   bf16 fused in_proj [x | z]
    w_conv_ref,  # (K, d_inner)     f32  depthwise conv taps
    w_sm_ref,    # (d_inner, 2n+d_inner) bf16  fused [B_tile | C_tile | w_dt]
    w_exp_ref,   # (2*d_inner, 2n)  bf16 block-diag expansion [R*A, 0 ; 0, R]
    rt_ref,      # (n, d_inner)     bf16 R^T (sums d_state lane groups)
    w_out_ref,   # (d_inner, D)     bf16 out_proj
    vecs_ref,    # (8, >=128)       f32  rows: 0 b_conv, 1 b_dt, 2 D, 3 gamma, 4 beta
    o_ref,       # (Bt, Lc*D)
    dA_s,        # scratch (T2, n) f32   lane-dense dA
    dBx_s,       # scratch (T2, n) f32   lane-dense dBx, overwritten with state hist
    h_s,         # scratch (Bt, n) f32   SSM state carried across chunks
    tail_s,      # scratch ((K-1)*Bt, d_inner) f32  conv tail carried across chunks
):
    Bt, LcD = x_ref.shape
    K, d_inner = w_conv_ref.shape
    D = w_out_ref.shape[1]
    Lc = LcD // D
    n = h_s.shape[1]
    T2 = Lc * Bt
    bf16 = jnp.bfloat16
    li = pl.program_id(1)

    # Carried state relies on the chunk axis (grid dim 1) being innermost,
    # executed in order per batch tile, and marked "arbitrary" (never parallel).
    @pl.when(li == 0)
    def _():
        h_s[...] = jnp.zeros_like(h_s)
        tail_s[...] = jnp.zeros_like(tail_s)

    # ---- lane-dense load, relayout to time-major token rows ----------------
    xblk = x_ref[...].astype(jnp.float32)                           # (Bt, Lc*D)
    x2 = jnp.concatenate(
        [xblk[:, t * D:(t + 1) * D] for t in range(Lc)], axis=0)    # (T2, D) f32

    # ---- fused in_proj (bf16 MXU, f32 accumulation) -------------------------
    xz = jnp.dot(x2.astype(bf16), w_in_ref[...],
                 preferred_element_type=jnp.float32)                 # (T2, 2*d_inner)
    x_in = xz[:, :d_inner]
    z = xz[:, d_inner:]

    # ---- causal depthwise conv (shift of k timesteps == k*Bt rows) ----------
    x_ext = jnp.concatenate([tail_s[...], x_in], axis=0)
    wc = w_conv_ref[...]
    acc = jnp.zeros((T2, d_inner), jnp.float32)
    for k in range(K):                                               # static (K = 4)
        acc = acc + x_ext[k * Bt:k * Bt + T2, :] * wc[k:k + 1, :]
    tail_s[...] = x_ext[T2:T2 + (K - 1) * Bt, :]                     # carry tail
    x_c = _silu(acc + vecs_ref[0:1, :d_inner])                       # (T2, d_inner)

    # ---- fused SSM projections: [B_tile | C_tile | dt_narrow] ---------------
    sm = jnp.dot(x_c.astype(bf16), w_sm_ref[...],
                 preferred_element_type=jnp.float32)                 # (T2, 2n+d_inner)
    B_tile = sm[:, 0:n]
    C_tile = sm[:, n:2 * n]
    dt = _softplus(sm[:, 2 * n:2 * n + d_inner] + vecs_ref[1:2, :d_inner])  # narrow!

    # ---- lane expansion on the MXU: [dt | dt*x_c] @ [R*A 0; 0 R] ------------
    du = jnp.concatenate([dt, dt * x_c], axis=1).astype(bf16)        # (T2, 2*d_inner)
    ex = jnp.dot(du, w_exp_ref[...],
                 preferred_element_type=jnp.float32)                 # (T2, 2n)
    dA_s[...] = jnp.exp(ex[:, 0:n])                                  # exp(dt_rep * A)
    dBx_s[...] = ex[:, n:2 * n] * B_tile                             # (dt*x_c)_rep * B

    # ---- selective scan (f32 recurrence), partially unrolled ----------------
    U = 1
    while U < 8 and U * 2 <= Lc and Lc % (U * 2) == 0:
        U *= 2                                                       # pow2 divisor <= 8

    def scan_block(base, h):
        for u in range(U):
            r = base + u * Bt
            if (Bt % 8 == 0) and (not isinstance(r, int)):
                r = pl.multiple_of(r, 8)                             # aligned vld/vst
            h = dA_s[pl.ds(r, Bt), :] * h + dBx_s[pl.ds(r, Bt), :]
            dBx_s[pl.ds(r, Bt), :] = h                               # state history
        return h

    n_outer = Lc // U
    if n_outer == 1:
        h_fin = scan_block(0, h_s[...])
    else:
        h_fin = lax.fori_loop(0, n_outer,
                              lambda tu, h: scan_block(tu * (U * Bt), h),
                              h_s[...])
    h_s[...] = h_fin                                                 # carry to next chunk

    # ---- C-weighted d_state reduction (lane-dense MXU), skip, gate, out_proj -
    y = jnp.dot((dBx_s[...] * C_tile).astype(bf16), rt_ref[...],
                preferred_element_type=jnp.float32)                  # (T2, d_inner)
    y = (y + x_c * vecs_ref[2:3, :d_inner]) * _silu(z)
    mo = jnp.dot(y.astype(bf16), w_out_ref[...],
                 preferred_element_type=jnp.float32)                 # (T2, D)

    # ---- residual add + LayerNorm (f32) -------------------------------------
    res = x2 + mo
    mean = jnp.mean(res, axis=-1, keepdims=True)
    var = jnp.mean(jnp.square(res - mean), axis=-1, keepdims=True)
    normed = (res - mean) * lax.rsqrt(var + 1e-5)
    out = normed * vecs_ref[3:4, :D] + vecs_ref[4:5, :D]

    # ---- relayout back to lane-dense (Bt, Lc*D) and store unmasked ----------
    o_ref[...] = jnp.concatenate(
        [out[t * Bt:(t + 1) * Bt, :] for t in range(Lc)], axis=1).astype(o_ref.dtype)


# ---------------------------------------------------------------------------
# wrapper: weight packing / lane-expansion + pallas_call
# ---------------------------------------------------------------------------
def _pick_lc(L, D, lc_max):
    best = None
    for c in range(1, min(L, lc_max) + 1):
        if L % c == 0 and (c * D) % 128 == 0:
            best = c
    return best if best is not None else L


def mamba_layer(x, params, *, lc_max=64, bt_max=8):
    B, L, D = x.shape
    d_inner = params["w_in_x"].shape[1]
    d_state = params["A_log"].shape[1]
    K = params["w_conv"].shape[0]
    n = d_inner * d_state
    f32, bf16 = jnp.float32, jnp.bfloat16

    # pad batch to a multiple of 8 so Bt (and every scan row offset) is aligned
    Bp = ((B + 7) // 8) * 8
    Bt = 8
    while Bt * 2 <= bt_max and Bp % (Bt * 2) == 0:
        Bt *= 2
    Lc = _pick_lc(L, D, lc_max)
    T2 = Lc * Bt

    # --- fused / lane-expanded weights (bf16 MXU operands, done once in XLA) --
    w_in = jnp.concatenate([params["w_in_x"], params["w_in_z"]], axis=1).astype(bf16)
    w_conv = params["w_conv"].astype(f32)
    w_B_tile = jnp.tile(params["w_B"].astype(f32), (1, d_inner))            # (di, n)
    w_C_tile = jnp.tile(params["w_C"].astype(f32), (1, d_inner))            # (di, n)
    w_sm = jnp.concatenate([w_B_tile, w_C_tile, params["w_dt"].astype(f32)],
                           axis=1).astype(bf16)                             # (di, 2n+di)
    A_flat = -jnp.exp(params["A_log"].astype(f32)).reshape(1, n)            # (1, n)
    R = jnp.repeat(jnp.eye(d_inner, dtype=f32), d_state, axis=1)            # (di, n)
    w_exp = jnp.zeros((2 * d_inner, 2 * n), f32)
    w_exp = w_exp.at[:d_inner, :n].set(R * A_flat)        # dt      -> dt_rep * A
    w_exp = w_exp.at[d_inner:, n:].set(R)                 # dt*x_c  -> (dt*x_c)_rep
    w_exp = w_exp.astype(bf16)
    rt = R.T.astype(bf16)                                                   # (n, di)
    w_out = params["w_out"].astype(bf16)

    vw = max(128, d_inner, D)

    def _row(v):
        v = jnp.asarray(v, f32).reshape(1, -1)
        return jnp.pad(v, ((0, 0), (0, vw - v.shape[1])))

    vecs = jnp.concatenate([
        _row(params["b_conv"]),                                             # 0
        _row(params["b_dt"]),                                               # 1
        _row(params["D"]),                                                  # 2
        _row(params["gamma"]),                                              # 3
        _row(params["beta"]),                                               # 4
        jnp.zeros((3, vw), f32),                                            # pad to 8
    ], axis=0)

    # lane-dense I/O: (B, L, D) -> (Bp, L*D); reshape is free, pad only if B%8 != 0
    xp = x if Bp == B else jnp.pad(x, ((0, Bp - B), (0, 0), (0, 0)))
    x2d = xp.reshape(Bp, L * D)

    weights = (w_in, w_conv, w_sm, w_exp, rt, w_out, vecs)
    in_specs = [pl.BlockSpec((Bt, Lc * D), lambda bi, li: (bi, li))]
    for w in weights:
        in_specs.append(pl.BlockSpec(w.shape, lambda bi, li: (0, 0)))

    out2d = pl.pallas_call(
        mamba_layer_kernel,
        out_shape=jax.ShapeDtypeStruct((Bp, L * D), x.dtype),
        grid_spec=pltpu.PrefetchScalarGridSpec(
            num_scalar_prefetch=0,
            grid=(Bp // Bt, L // Lc),            # chunk axis innermost & sequential
            in_specs=in_specs,
            out_specs=pl.BlockSpec((Bt, Lc * D), lambda bi, li: (bi, li)),
            scratch_shapes=[
                pltpu.VMEM((T2, n), f32),                    # dA
                pltpu.VMEM((T2, n), f32),                    # dBx -> state history
                pltpu.VMEM((Bt, n), f32),                    # carried SSM state
                pltpu.VMEM(((K - 1) * Bt, d_inner), f32),    # carried conv tail
            ]),
        compiler_params=pltpu.CompilerParams(
            dimension_semantics=("parallel", "arbitrary"),
            vmem_limit_bytes=48 * 1024 * 1024),
    )(x2d, *weights)

    out = out2d.reshape(Bp, L, D)
    return out if Bp == B else out[:B]


# ---------------------------------------------------------------------------
# deterministic parameter init (synthetic; no checkpoint)
# ---------------------------------------------------------------------------
def init_params(key, d_model, d_state=16, d_conv=4, expand=2):
    d_inner = expand * d_model
    dt_rank = max(1, d_model // 16)
    ks = jax.random.split(key, 10)

    def rnd(k, shape, scale):
        return jax.random.normal(k, shape, jnp.float32) * scale

    w_x_dt = rnd(ks[4], (d_inner, dt_rank), 0.1)
    w_dtp = rnd(ks[5], (dt_rank, d_inner), 0.1)
    return {
        "w_in_x": rnd(ks[0], (d_model, d_inner), 0.1),
        "w_in_z": rnd(ks[1], (d_model, d_inner), 0.1),
        "w_conv": rnd(ks[2], (d_conv, d_inner), 0.2),
        "b_conv": rnd(ks[3], (1, d_inner), 0.05),
        "w_dt": w_x_dt @ w_dtp,                 # fused low-rank dt projection
        "b_dt": rnd(ks[6], (1, d_inner), 0.1),
        "w_B": rnd(ks[7], (d_inner, d_state), 0.1),
        "w_C": rnd(ks[8], (d_inner, d_state), 0.1),
        "A_log": jnp.log(jnp.broadcast_to(
            jnp.arange(1, d_state + 1, dtype=jnp.float32), (d_inner, d_state))),
        "D": jnp.ones((1, d_inner), jnp.float32),
        "w_out": rnd(ks[9], (d_inner, d_model), 0.1),
        "gamma": jnp.ones((1, d_model), jnp.float32),
        "beta": jnp.zeros((1, d_model), jnp.float32),
    }


# ---------------------------------------------------------------------------
# pure-JAX reference (same math) for a correctness check
# ---------------------------------------------------------------------------
def mamba_layer_ref(x, params):
    def one(xb):                                           # (L, D)
        x_in = xb @ params["w_in_x"]
        z = xb @ params["w_in_z"]
        K, d_inner = params["w_conv"].shape
        L = xb.shape[0]
        row = jnp.arange(L)[:, None]
        acc = jnp.zeros((L, d_inner), jnp.float32)
        for k in range(K):
            s = K - 1 - k
            shifted = x_in if s == 0 else jnp.where(
                row >= s, jnp.roll(x_in, s, axis=0), 0.0)
            acc = acc + shifted * params["w_conv"][k:k + 1, :]
        x_c = _silu(acc + params["b_conv"])
        dt = _softplus(x_c @ params["w_dt"] + params["b_dt"])
        Bm = x_c @ params["w_B"]
        Cm = x_c @ params["w_C"]
        A = -jnp.exp(params["A_log"])
        dA = jnp.exp(dt[:, :, None] * A[None])
        dBx = (dt * x_c)[:, :, None] * Bm[:, None, :]

        def step(h, inp):
            dA_t, dBx_t, c_t = inp
            h = dA_t * h + dBx_t
            return h, jnp.sum(h * c_t[None, :], axis=-1)

        d_state = params["A_log"].shape[1]
        _, ys = lax.scan(step, jnp.zeros((d_inner, d_state), jnp.float32),
                         (dA, dBx, Cm))
        y = (ys + x_c * params["D"]) * _silu(z)
        res = xb + y @ params["w_out"]
        mean = res.mean(-1, keepdims=True)
        var = ((res - mean) ** 2).mean(-1, keepdims=True)
        return (res - mean) * lax.rsqrt(var + 1e-5) * params["gamma"] + params["beta"]

    return jax.vmap(one)(x)


if __name__ == "__main__":
    key = jax.random.PRNGKey(0)
    B, L, d_model = 2, 8, 32
    kx, kp = jax.random.split(key)
    x = jax.random.normal(kx, (B, L, d_model), jnp.float32)
    params = init_params(kp, d_model)

    # lc_max=4 -> two sequence chunks, exercising the carried conv-tail / SSM state.
    out = jax.block_until_ready(mamba_layer(x, params, lc_max=4))
    ref = mamba_layer_ref(x, params)

    assert out.shape == (B, L, d_model)
    max_err = float(jnp.max(jnp.abs(out - ref)))
    assert max_err < 5e-2, f"kernel/reference mismatch: {max_err}"
    print("KERNEL_OK")
</pallas_src>

<mosaic_0001>
module attributes {stable_mosaic.version = 11 : i64} {
  func.func @mamba_layer_kernel(%arg0: i32, %arg1: i32, %arg2: memref<8x128xf32, #tpu.memory_space<vmem>>, %arg3: memref<32x128xbf16, #tpu.memory_space<vmem>>, %arg4: memref<4x64xf32, #tpu.memory_space<vmem>>, %arg5: memref<64x2112xbf16, #tpu.memory_space<vmem>>, %arg6: memref<128x2048xbf16, #tpu.memory_space<vmem>>, %arg7: memref<1024x64xbf16, #tpu.memory_space<vmem>>, %arg8: memref<64x32xbf16, #tpu.memory_space<vmem>>, %arg9: memref<8x128xf32, #tpu.memory_space<vmem>>, %arg10: memref<8x128xf32, #tpu.memory_space<vmem>>, %arg11: memref<32x1024xf32, #tpu.memory_space<vmem>>, %arg12: memref<32x1024xf32, #tpu.memory_space<vmem>>, %arg13: memref<8x1024xf32, #tpu.memory_space<vmem>>, %arg14: memref<24x64xf32, #tpu.memory_space<vmem>>) attributes {dimension_semantics = [#tpu.dimension_semantics<parallel>, #tpu.dimension_semantics<arbitrary>], iteration_bounds = array<i64: 1, 2>, scalar_prefetch = 0 : i64, scratch_operands = 4 : i64, tpu.core_type = #tpu.core_type<tc>, window_params = [{transform_indices = @transform_0, window_bounds = array<i64: 8, 128>}, {pipeline_mode = #tpu.pipeline_mode<synchronous>, transform_indices = @transform_1, window_bounds = array<i64: 32, 128>}, {pipeline_mode = #tpu.pipeline_mode<synchronous>, transform_indices = @transform_2, window_bounds = array<i64: 4, 64>}, {pipeline_mode = #tpu.pipeline_mode<synchronous>, transform_indices = @transform_3, window_bounds = array<i64: 64, 2112>}, {pipeline_mode = #tpu.pipeline_mode<synchronous>, transform_indices = @transform_4, window_bounds = array<i64: 128, 2048>}, {pipeline_mode = #tpu.pipeline_mode<synchronous>, transform_indices = @transform_5, window_bounds = array<i64: 1024, 64>}, {pipeline_mode = #tpu.pipeline_mode<synchronous>, transform_indices = @transform_6, window_bounds = array<i64: 64, 32>}, {pipeline_mode = #tpu.pipeline_mode<synchronous>, transform_indices = @transform_7, window_bounds = array<i64: 8, 128>}, {transform_indices = @transform_8, window_bounds = array<i64: 8, 128>}]} {
    %c0_i32 = arith.constant 0 : i32
    %0 = arith.cmpi eq, %arg1, %c0_i32 : i32
    %1 = arith.extui %0 : i1 to i32
    %c0_i32_0 = arith.constant 0 : i32
    %2 = arith.cmpi ne, %1, %c0_i32_0 : i32
    scf.if %2 {
      %cst_76 = arith.constant 0.000000e+00 : f32
      %154 = vector.broadcast %cst_76 : f32 to vector<8x1024xf32>
      %c0_77 = arith.constant 0 : index
      %c0_78 = arith.constant 0 : index
      %155 = vector.load %arg13[%c0_77, %c0_78] : memref<8x1024xf32, #tpu.memory_space<vmem>>, vector<8x1024xf32>
      tpu.vector_store %arg13[%c0_77, %c0_78], %154 {strides = array<i32>} : memref<8x1024xf32, #tpu.memory_space<vmem>>, vector<8x1024xf32>,
      %cst_79 = arith.constant 0.000000e+00 : f32
      %156 = vector.broadcast %cst_79 : f32 to vector<24x64xf32>
      %c0_80 = arith.constant 0 : index
      %c0_81 = arith.constant 0 : index
      %157 = vector.load %arg14[%c0_80, %c0_81] : memref<24x64xf32, #tpu.memory_space<vmem>>, vector<24x64xf32>
      tpu.vector_store %arg14[%c0_80, %c0_81], %156 {strides = array<i32>} : memref<24x64xf32, #tpu.memory_space<vmem>>, vector<24x64xf32>,
    } else {
    }
    %c0 = arith.constant 0 : index
    %c0_1 = arith.constant 0 : index
    %3 = vector.load %arg2[%c0, %c0_1] : memref<8x128xf32, #tpu.memory_space<vmem>>, vector<8x128xf32>
    %4 = vector.extract_strided_slice %3 {offsets = [0, 0], sizes = [8, 32], strides = [1, 1]} : vector<8x128xf32> to vector<8x32xf32>
    %5 = vector.extract_strided_slice %3 {offsets = [0, 32], sizes = [8, 32], strides = [1, 1]} : vector<8x128xf32> to vector<8x32xf32>
    %6 = vector.extract_strided_slice %3 {offsets = [0, 64], sizes = [8, 32], strides = [1, 1]} : vector<8x128xf32> to vector<8x32xf32>
    %7 = vector.extract_strided_slice %3 {offsets = [0, 96], sizes = [8, 32], strides = [1, 1]} : vector<8x128xf32> to vector<8x32xf32>
    %8 = tpu.concatenate %4, %5, %6, %7 in 0 : vector<8x32xf32>, vector<8x32xf32>, vector<8x32xf32>, vector<8x32xf32> -> vector<32x32xf32>
    %9 = arith.truncf %8 : vector<32x32xf32> to vector<32x32xbf16>
    %c0_2 = arith.constant 0 : index
    %c0_3 = arith.constant 0 : index
    %10 = vector.load %arg3[%c0_2, %c0_3] : memref<32x128xbf16, #tpu.memory_space<vmem>>, vector<32x128xbf16>
    %cst = arith.constant dense<0.000000e+00> : vector<32x128xf32>
    %11 = tpu.matmul %9, %10, %cst {dimension_numbers = #tpu.dot_dimension_numbers<[1], [0], [0], [1], [0, 0, 1, 1], [], []>} : vector<32x32xbf16>, vector<32x128xbf16>, vector<32x128xf32> -> vector<32x128xf32>
    %12 = vector.extract_strided_slice %11 {offsets = [0, 0], sizes = [32, 64], strides = [1, 1]} : vector<32x128xf32> to vector<32x64xf32>
    %13 = vector.extract_strided_slice %11 {offsets = [0, 64], sizes = [32, 64], strides = [1, 1]} : vector<32x128xf32> to vector<32x64xf32>
    %c0_4 = arith.constant 0 : index
    %c0_5 = arith.constant 0 : index
    %14 = vector.load %arg14[%c0_4, %c0_5] : memref<24x64xf32, #tpu.memory_space<vmem>>, vector<24x64xf32>
    %15 = tpu.concatenate %14, %12 in 0 : vector<24x64xf32>, vector<32x64xf32> -> vector<56x64xf32>
    %c0_6 = arith.constant 0 : index
    %c0_7 = arith.constant 0 : index
    %16 = vector.load %arg4[%c0_6, %c0_7] : memref<4x64xf32, #tpu.memory_space<vmem>>, vector<4x64xf32>
    %cst_8 = arith.constant 0.000000e+00 : f32
    %17 = vector.broadcast %cst_8 : f32 to vector<32x64xf32>
    %18 = vector.extract_strided_slice %15 {offsets = [0, 0], sizes = [32, 64], strides = [1, 1]} : vector<56x64xf32> to vector<32x64xf32>
    %19 = vector.extract_strided_slice %16 {offsets = [0, 0], sizes = [1, 64], strides = [1, 1]} : vector<4x64xf32> to vector<1x64xf32>
    %20 = vector.broadcast %19 : vector<1x64xf32> to vector<32x64xf32>
    %21 = arith.mulf %18, %20 : vector<32x64xf32>
    %22 = arith.addf %17, %21 : vector<32x64xf32>
    %23 = vector.extract_strided_slice %15 {offsets = [8, 0], sizes = [32, 64], strides = [1, 1]} : vector<56x64xf32> to vector<32x64xf32>
    %24 = vector.extract_strided_slice %16 {offsets = [1, 0], sizes = [1, 64], strides = [1, 1]} : vector<4x64xf32> to vector<1x64xf32>
    %25 = vector.broadcast %24 : vector<1x64xf32> to vector<32x64xf32>
    %26 = arith.mulf %23, %25 : vector<32x64xf32>
    %27 = arith.addf %22, %26 : vector<32x64xf32>
    %28 = vector.extract_strided_slice %15 {offsets = [16, 0], sizes = [32, 64], strides = [1, 1]} : vector<56x64xf32> to vector<32x64xf32>
    %29 = vector.extract_strided_slice %16 {offsets = [2, 0], sizes = [1, 64], strides = [1, 1]} : vector<4x64xf32> to vector<1x64xf32>
    %30 = vector.broadcast %29 : vector<1x64xf32> to vector<32x64xf32>
    %31 = arith.mulf %28, %30 : vector<32x64xf32>
    %32 = arith.addf %27, %31 : vector<32x64xf32>
    %33 = vector.extract_strided_slice %15 {offsets = [24, 0], sizes = [32, 64], strides = [1, 1]} : vector<56x64xf32> to vector<32x64xf32>
    %34 = vector.extract_strided_slice %16 {offsets = [3, 0], sizes = [1, 64], strides = [1, 1]} : vector<4x64xf32> to vector<1x64xf32>
    %35 = vector.broadcast %34 : vector<1x64xf32> to vector<32x64xf32>
    %36 = arith.mulf %33, %35 : vector<32x64xf32>
    %37 = arith.addf %32, %36 : vector<32x64xf32>
    %38 = vector.extract_strided_slice %15 {offsets = [32, 0], sizes = [24, 64], strides = [1, 1]} : vector<56x64xf32> to vector<24x64xf32>
    %c0_9 = arith.constant 0 : index
    %c0_10 = arith.constant 0 : index
    %39 = vector.load %arg14[%c0_9, %c0_10] : memref<24x64xf32, #tpu.memory_space<vmem>>, vector<24x64xf32>
    tpu.vector_store %arg14[%c0_9, %c0_10], %38 {strides = array<i32>} : memref<24x64xf32, #tpu.memory_space<vmem>>, vector<24x64xf32>,
    %c0_11 = arith.constant 0 : index
    %c0_12 = arith.constant 0 : index
    %40 = vector.load %arg9[%c0_11, %c0_12] : memref<8x128xf32, #tpu.memory_space<vmem>>, vector<1x64xf32>
    %41 = vector.broadcast %40 : vector<1x64xf32> to vector<32x64xf32>
    %42 = arith.addf %37, %41 : vector<32x64xf32>
    %cst_13 = arith.constant 0.000000e+00 : f32
    %43 = vector.broadcast %cst_13 : f32 to vector<32x64xf32>
    %44 = arith.subf %43, %42 : vector<32x64xf32>
    %45 = math.exp %44 : vector<32x64xf32>
    %cst_14 = arith.constant 1.000000e+00 : f32
    %46 = vector.broadcast %cst_14 : f32 to vector<32x64xf32>
    %47 = arith.addf %46, %45 : vector<32x64xf32>
    %cst_15 = arith.constant 1.000000e+00 : f32
    %48 = vector.broadcast %cst_15 : f32 to vector<32x64xf32>
    %49 = arith.divf %48, %47 : vector<32x64xf32>
    %50 = arith.mulf %42, %49 : vector<32x64xf32>
    %51 = arith.truncf %50 : vector<32x64xf32> to vector<32x64xbf16>
    %c0_16 = arith.constant 0 : index
    %c0_17 = arith.constant 0 : index
    %52 = vector.load %arg5[%c0_16, %c0_17] : memref<64x2112xbf16, #tpu.memory_space<vmem>>, vector<64x2112xbf16>
    %cst_18 = arith.constant dense<0.000000e+00> : vector<32x2112xf32>
    %53 = tpu.matmul %51, %52, %cst_18 {dimension_numbers = #tpu.dot_dimension_numbers<[1], [0], [0], [1], [0, 0, 1, 1], [], []>} : vector<32x64xbf16>, vector<64x2112xbf16>, vector<32x2112xf32> -> vector<32x2112xf32>
    %54 = vector.extract_strided_slice %53 {offsets = [0, 0], sizes = [32, 1024], strides = [1, 1]} : vector<32x2112xf32> to vector<32x1024xf32>
    %55 = vector.extract_strided_slice %53 {offsets = [0, 1024], sizes = [32, 1024], strides = [1, 1]} : vector<32x2112xf32> to vector<32x1024xf32>
    %56 = vector.extract_strided_slice %53 {offsets = [0, 2048], sizes = [32, 64], strides = [1, 1]} : vector<32x2112xf32> to vector<32x64xf32>
    %c1 = arith.constant 1 : index
    %c0_19 = arith.constant 0 : index
    %57 = vector.load %arg9[%c1, %c0_19] : memref<8x128xf32, #tpu.memory_space<vmem>>, vector<1x64xf32>
    %58 = vector.broadcast %57 : vector<1x64xf32> to vector<32x64xf32>
    %59 = arith.addf %56, %58 : vector<32x64xf32>
    %cst_20 = arith.constant 3.000000e+01 : f32
    %60 = vector.broadcast %cst_20 : f32 to vector<32x64xf32>
    %61 = arith.cmpf ogt, %59, %60 : vector<32x64xf32>
    %cst_21 = arith.constant 3.000000e+01 : f32
    %62 = vector.broadcast %cst_21 : f32 to vector<32x64xf32>
    %63 = arith.minimumf %59, %62 : vector<32x64xf32>
    %64 = math.exp %63 : vector<32x64xf32>
    %cst_22 = arith.constant 1.000000e+00 : f32
    %65 = vector.broadcast %cst_22 : f32 to vector<32x64xf32>
    %66 = arith.addf %65, %64 : vector<32x64xf32>
    %67 = math.log %66 : vector<32x64xf32>
    %68 = arith.select %61, %59, %67 : vector<32x64xi1>, vector<32x64xf32>
    %69 = arith.mulf %68, %50 : vector<32x64xf32>
    %70 = tpu.concatenate %68, %69 in 1 : vector<32x64xf32>, vector<32x64xf32> -> vector<32x128xf32>
    %71 = arith.truncf %70 : vector<32x128xf32> to vector<32x128xbf16>
    %c0_23 = arith.constant 0 : index
    %c0_24 = arith.constant 0 : index
    %72 = vector.load %arg6[%c0_23, %c0_24] : memref<128x2048xbf16, #tpu.memory_space<vmem>>, vector<128x2048xbf16>
    %cst_25 = arith.constant dense<0.000000e+00> : vector<32x2048xf32>
    %73 = tpu.matmul %71, %72, %cst_25 {dimension_numbers = #tpu.dot_dimension_numbers<[1], [0], [0], [1], [0, 0, 1, 1], [], []>} : vector<32x128xbf16>, vector<128x2048xbf16>, vector<32x2048xf32> -> vector<32x2048xf32>
    %74 = vector.extract_strided_slice %73 {offsets = [0, 0], sizes = [32, 1024], strides = [1, 1]} : vector<32x2048xf32> to vector<32x1024xf32>
    %75 = math.exp %74 : vector<32x1024xf32>
    %c0_26 = arith.constant 0 : index
    %c0_27 = arith.constant 0 : index
    %76 = vector.load %arg11[%c0_26, %c0_27] : memref<32x1024xf32, #tpu.memory_space<vmem>>, vector<32x1024xf32>
    tpu.vector_store %arg11[%c0_26, %c0_27], %75 {strides = array<i32>} : memref<32x1024xf32, #tpu.memory_space<vmem>>, vector<32x1024xf32>,
    %77 = vector.extract_strided_slice %73 {offsets = [0, 1024], sizes = [32, 1024], strides = [1, 1]} : vector<32x2048xf32> to vector<32x1024xf32>
    %78 = arith.mulf %77, %54 : vector<32x1024xf32>
    %c0_28 = arith.constant 0 : index
    %c0_29 = arith.constant 0 : index
    %79 = vector.load %arg12[%c0_28, %c0_29] : memref<32x1024xf32, #tpu.memory_space<vmem>>, vector<32x1024xf32>
    tpu.vector_store %arg12[%c0_28, %c0_29], %78 {strides = array<i32>} : memref<32x1024xf32, #tpu.memory_space<vmem>>, vector<32x1024xf32>,
    %c0_30 = arith.constant 0 : index
    %c0_31 = arith.constant 0 : index
    %80 = vector.load %arg13[%c0_30, %c0_31] : memref<8x1024xf32, #tpu.memory_space<vmem>>, vector<8x1024xf32>
    %c0_32 = arith.constant 0 : index
    %c0_33 = arith.constant 0 : index
    %81 = vector.load %arg11[%c0_32, %c0_33] : memref<32x1024xf32, #tpu.memory_space<vmem>>, vector<8x1024xf32>
    %82 = arith.mulf %81, %80 : vector<8x1024xf32>
    %c0_34 = arith.constant 0 : index
    %c0_35 = arith.constant 0 : index
    %83 = vector.load %arg12[%c0_34, %c0_35] : memref<32x1024xf32, #tpu.memory_space<vmem>>, vector<8x1024xf32>
    %84 = arith.addf %82, %83 : vector<8x1024xf32>
    %c0_36 = arith.constant 0 : index
    %c0_37 = arith.constant 0 : index
    %85 = vector.load %arg12[%c0_36, %c0_37] : memref<32x1024xf32, #tpu.memory_space<vmem>>, vector<8x1024xf32>
    tpu.vector_store %arg12[%c0_36, %c0_37], %84 {strides = array<i32>} : memref<32x1024xf32, #tpu.memory_space<vmem>>, vector<8x1024xf32>,
    %c8 = arith.constant 8 : index
    %c0_38 = arith.constant 0 : index
    %86 = vector.load %arg11[%c8, %c0_38] : memref<32x1024xf32, #tpu.memory_space<vmem>>, vector<8x1024xf32>
    %87 = arith.mulf %86, %84 : vector<8x1024xf32>
    %c8_39 = arith.constant 8 : index
    %c0_40 = arith.constant 0 : index
    %88 = vector.load %arg12[%c8_39, %c0_40] : memref<32x1024xf32, #tpu.memory_space<vmem>>, vector<8x1024xf32>
    %89 = arith.addf %87, %88 : vector<8x1024xf32>
    %c8_41 = arith.constant 8 : index
    %c0_42 = arith.constant 0 : index
    %90 = vector.load %arg12[%c8_41, %c0_42] : memref<32x1024xf32, #tpu.memory_space<vmem>>, vector<8x1024xf32>
    tpu.vector_store %arg12[%c8_41, %c0_42], %89 {strides = array<i32>} : memref<32x1024xf32, #tpu.memory_space<vmem>>, vector<8x1024xf32>,
    %c16 = arith.constant 16 : index
    %c0_43 = arith.constant 0 : index
    %91 = vector.load %arg11[%c16, %c0_43] : memref<32x1024xf32, #tpu.memory_space<vmem>>, vector<8x1024xf32>
    %92 = arith.mulf %91, %89 : vector<8x1024xf32>
    %c16_44 = arith.constant 16 : index
    %c0_45 = arith.constant 0 : index
    %93 = vector.load %arg12[%c16_44, %c0_45] : memref<32x1024xf32, #tpu.memory_space<vmem>>, vector<8x1024xf32>
    %94 = arith.addf %92, %93 : vector<8x1024xf32>
    %c16_46 = arith.constant 16 : index
    %c0_47 = arith.constant 0 : index
    %95 = vector.load %arg12[%c16_46, %c0_47] : memref<32x1024xf32, #tpu.memory_space<vmem>>, vector<8x1024xf32>
    tpu.vector_store %arg12[%c16_46, %c0_47], %94 {strides = array<i32>} : memref<32x1024xf32, #tpu.memory_space<vmem>>, vector<8x1024xf32>,
    %c24 = arith.constant 24 : index
    %c0_48 = arith.constant 0 : index
    %96 = vector.load %arg11[%c24, %c0_48] : memref<32x1024xf32, #tpu.memory_space<vmem>>, vector<8x1024xf32>
    %97 = arith.mulf %96, %94 : vector<8x1024xf32>
    %c24_49 = arith.constant 24 : index
    %c0_50 = arith.constant 0 : index
    %98 = vector.load %arg12[%c24_49, %c0_50] : memref<32x1024xf32, #tpu.memory_space<vmem>>, vector<8x1024xf32>
    %99 = arith.addf %97, %98 : vector<8x1024xf32>
    %c24_51 = arith.constant 24 : index
    %c0_52 = arith.constant 0 : index
    %100 = vector.load %arg12[%c24_51, %c0_52] : memref<32x1024xf32, #tpu.memory_space<vmem>>, vector<8x1024xf32>
    tpu.vector_store %arg12[%c24_51, %c0_52], %99 {strides = array<i32>} : memref<32x1024xf32, #tpu.memory_space<vmem>>, vector<8x1024xf32>,
    %c0_53 = arith.constant 0 : index
    %c0_54 = arith.constant 0 : index
    %101 = vector.load %arg13[%c0_53, %c0_54] : memref<8x1024xf32, #tpu.memory_space<vmem>>, vector<8x1024xf32>
    tpu.vector_store %arg13[%c0_53, %c0_54], %99 {strides = array<i32>} : memref<8x1024xf32, #tpu.memory_space<vmem>>, vector<8x1024xf32>,
    %c0_55 = arith.constant 0 : index
    %c0_56 = arith.constant 0 : index
    %102 = vector.load %arg12[%c0_55, %c0_56] : memref<32x1024xf32, #tpu.memory_space<vmem>>, vector<32x1024xf32>
    %103 = arith.mulf %102, %55 : vector<32x1024xf32>
    %104 = arith.truncf %103 : vector<32x1024xf32> to vector<32x1024xbf16>
    %c0_57 = arith.constant 0 : index
    %c0_58 = arith.constant 0 : index
    %105 = vector.load %arg7[%c0_57, %c0_58] : memref<1024x64xbf16, #tpu.memory_space<vmem>>, vector<1024x64xbf16>
    %cst_59 = arith.constant dense<0.000000e+00> : vector<32x64xf32>
    %106 = tpu.matmul %104, %105, %cst_59 {dimension_numbers = #tpu.dot_dimension_numbers<[1], [0], [0], [1], [0, 0, 1, 1], [], []>} : vector<32x1024xbf16>, vector<1024x64xbf16>, vector<32x64xf32> -> vector<32x64xf32>
    %c2 = arith.constant 2 : index
    %c0_60 = arith.constant 0 : index
    %107 = vector.load %arg9[%c2, %c0_60] : memref<8x128xf32, #tpu.memory_space<vmem>>, vector<1x64xf32>
    %108 = vector.broadcast %107 : vector<1x64xf32> to vector<32x64xf32>
    %109 = arith.mulf %50, %108 : vector<32x64xf32>
    %110 = arith.addf %106, %109 : vector<32x64xf32>
    %cst_61 = arith.constant 0.000000e+00 : f32
    %111 = vector.broadcast %cst_61 : f32 to vector<32x64xf32>
    %112 = arith.subf %111, %13 : vector<32x64xf32>
    %113 = math.exp %112 : vector<32x64xf32>
    %cst_62 = arith.constant 1.000000e+00 : f32
    %114 = vector.broadcast %cst_62 : f32 to vector<32x64xf32>
    %115 = arith.addf %114, %113 : vector<32x64xf32>
    %cst_63 = arith.constant 1.000000e+00 : f32
    %116 = vector.broadcast %cst_63 : f32 to vector<32x64xf32>
    %117 = arith.divf %116, %115 : vector<32x64xf32>
    %118 = arith.mulf %13, %117 : vector<32x64xf32>
    %119 = arith.mulf %110, %118 : vector<32x64xf32>
    %120 = arith.truncf %119 : vector<32x64xf32> to vector<32x64xbf16>
    %c0_64 = arith.constant 0 : index
    %c0_65 = arith.constant 0 : index
    %121 = vector.load %arg8[%c0_64, %c0_65] : memref<64x32xbf16, #tpu.memory_space<vmem>>, vector<64x32xbf16>
    %cst_66 = arith.constant dense<0.000000e+00> : vector<32x32xf32>
    %122 = tpu.matmul %120, %121, %cst_66 {dimension_numbers = #tpu.dot_dimension_numbers<[1], [0], [0], [1], [0, 0, 1, 1], [], []>} : vector<32x64xbf16>, vector<64x32xbf16>, vector<32x32xf32> -> vector<32x32xf32>
    %123 = arith.addf %8, %122 : vector<32x32xf32>
    %cst_67 = arith.constant dense<0.000000e+00> : vector<32xf32>
    %124 = vector.multi_reduction <add>, %123, %cst_67 [1] : vector<32x32xf32> to vector<32xf32>
    %125 = vector.shape_cast %124 : vector<32xf32> to vector<32x1xf32>
    %cst_68 = arith.constant 3.200000e+01 : f32
    %126 = vector.broadcast %cst_68 : f32 to vector<32x1xf32>
    %127 = arith.divf %125, %126 : vector<32x1xf32>
    %128 = vector.broadcast %127 : vector<32x1xf32> to vector<32x32xf32>
    %129 = arith.subf %123, %128 : vector<32x32xf32>
    %130 = arith.mulf %129, %129 : vector<32x32xf32>
    %cst_69 = arith.constant dense<0.000000e+00> : vector<32xf32>
    %131 = vector.multi_reduction <add>, %130, %cst_69 [1] : vector<32x32xf32> to vector<32xf32>
    %132 = vector.shape_cast %131 : vector<32xf32> to vector<32x1xf32>
    %cst_70 = arith.constant 3.200000e+01 : f32
    %133 = vector.broadcast %cst_70 : f32 to vector<32x1xf32>
    %134 = arith.divf %132, %133 : vector<32x1xf32>
    %135 = vector.broadcast %127 : vector<32x1xf32> to vector<32x32xf32>
    %136 = arith.subf %123, %135 : vector<32x32xf32>
    %cst_71 = arith.constant 9.99999974E-6 : f32
    %137 = vector.broadcast %cst_71 : f32 to vector<32x1xf32>
    %138 = arith.addf %134, %137 : vector<32x1xf32>
    %139 = math.rsqrt %138 : vector<32x1xf32>
    %140 = vector.broadcast %139 : vector<32x1xf32> to vector<32x32xf32>
    %141 = arith.mulf %136, %140 : vector<32x32xf32>
    %c3 = arith.constant 3 : index
    %c0_72 = arith.constant 0 : index
    %142 = vector.load %arg9[%c3, %c0_72] : memref<8x128xf32, #tpu.memory_space<vmem>>, vector<1x32xf32>
    %143 = vector.broadcast %142 : vector<1x32xf32> to vector<32x32xf32>
    %144 = arith.mulf %141, %143 : vector<32x32xf32>
    %c4 = arith.constant 4 : index
    %c0_73 = arith.constant 0 : index
    %145 = vector.load %arg9[%c4, %c0_73] : memref<8x128xf32, #tpu.memory_space<vmem>>, vector<1x32xf32>
    %146 = vector.broadcast %145 : vector<1x32xf32> to vector<32x32xf32>
    %147 = arith.addf %144, %146 : vector<32x32xf32>
    %148 = vector.extract_strided_slice %147 {offsets = [0, 0], sizes = [8, 32], strides = [1, 1]} : vector<32x32xf32> to vector<8x32xf32>
    %149 = vector.extract_strided_slice %147 {offsets = [8, 0], sizes = [8, 32], strides = [1, 1]} : vector<32x32xf32> to vector<8x32xf32>
    %150 = vector.extract_strided_slice %147 {offsets = [16, 0], sizes = [8, 32], strides = [1, 1]} : vector<32x32xf32> to vector<8x32xf32>
    %151 = vector.extract_strided_slice %147 {offsets = [24, 0], sizes = [8, 32], strides = [1, 1]} : vector<32x32xf32> to vector<8x32xf32>
    %152 = tpu.concatenate %148, %149, %150, %151 in 1 : vector<8x32xf32>, vector<8x32xf32>, vector<8x32xf32>, vector<8x32xf32> -> vector<8x128xf32>
    %c0_74 = arith.constant 0 : index
    %c0_75 = arith.constant 0 : index
    %153 = vector.load %arg10[%c0_74, %c0_75] : memref<8x128xf32, #tpu.memory_space<vmem>>, vector<8x128xf32>
    tpu.vector_store %arg10[%c0_74, %c0_75], %152 {strides = array<i32>} : memref<8x128xf32, #tpu.memory_space<vmem>>, vector<8x128xf32>,
    return
  }
  func.func @transform_0(%arg0: i32, %arg1: i32) -> (i32, i32) {
    %c0_i32 = arith.constant 0 : i32
    return %arg0, %arg1 : i32, i32
  }
  func.func @transform_1(%arg0: i32, %arg1: i32) -> (i32, i32) {
    %c0_i32 = arith.constant 0 : i32
    %c0_i32_0 = arith.constant 0 : i32
    %c0_i32_1 = arith.constant 0 : i32
    return %c0_i32, %c0_i32_0 : i32, i32
  }
  func.func @transform_2(%arg0: i32, %arg1: i32) -> (i32, i32) {
    %c0_i32 = arith.constant 0 : i32
    %c0_i32_0 = arith.constant 0 : i32
    %c0_i32_1 = arith.constant 0 : i32
    return %c0_i32, %c0_i32_0 : i32, i32
  }
  func.func @transform_3(%arg0: i32, %arg1: i32) -> (i32, i32) {
    %c0_i32 = arith.constant 0 : i32
    %c0_i32_0 = arith.constant 0 : i32
    %c0_i32_1 = arith.constant 0 : i32
    return %c0_i32, %c0_i32_0 : i32, i32
  }
  func.func @transform_4(%arg0: i32, %arg1: i32) -> (i32, i32) {
    %c0_i32 = arith.constant 0 : i32
    %c0_i32_0 = arith.constant 0 : i32
    %c0_i32_1 = arith.constant 0 : i32
    return %c0_i32, %c0_i32_0 : i32, i32
  }
  func.func @transform_5(%arg0: i32, %arg1: i32) -> (i32, i32) {
    %c0_i32 = arith.constant 0 : i32
    %c0_i32_0 = arith.constant 0 : i32
    %c0_i32_1 = arith.constant 0 : i32
    return %c0_i32, %c0_i32_0 : i32, i32
  }
  func.func @transform_6(%arg0: i32, %arg1: i32) -> (i32, i32) {
    %c0_i32 = arith.constant 0 : i32
    %c0_i32_0 = arith.constant 0 : i32
    %c0_i32_1 = arith.constant 0 : i32
    return %c0_i32, %c0_i32_0 : i32, i32
  }
  func.func @transform_7(%arg0: i32, %arg1: i32) -> (i32, i32) {
    %c0_i32 = arith.constant 0 : i32
    %c0_i32_0 = arith.constant 0 : i32
    %c0_i32_1 = arith.constant 0 : i32
    return %c0_i32, %c0_i32_0 : i32, i32
  }
  func.func @transform_8(%arg0: i32, %arg1: i32) -> (i32, i32) {
    %c0_i32 = arith.constant 0 : i32
    return %arg0, %arg1 : i32, i32
  }
}

</mosaic_0001>

<llo_original>
// kernel: tpu_custom_call.1
$region0: #{tpu_custom_call.1}
  #allocation0 [shape = 'u32[]', space=smem, size = 0x4, offset = 0x4, fixed_abs, tag = 'smem constant byte address 0x4 - core index']
  #allocation1 [shape = 'u32[144,128]{1,0:T(1,128)}', space=vmem, size = 0x12000, scoped, tag = 'internal scratch']
  #allocation2 [shape = 'f32[32,1024]{1,0:T(8,128)}', space=vmem, size = 0x20000, scoped, tag = 'scratch operand']
  #allocation3 [shape = 'f32[32,1024]{1,0:T(8,128)}', space=vmem, size = 0x20000, scoped, tag = 'scratch operand']
  #allocation4 [shape = 'f32[8,1024]{1,0:T(8,128)}', space=vmem, size = 0x8000, scoped, tag = 'scratch operand']
  #allocation5 [shape = 'f32[24,64]{1,0:T(8,128)}', space=vmem, size = 0x3000, scoped, tag = 'scratch operand']
  %s0 = inlined_call_operand.vmem [shape: f32[8,256], index: 0, kind: input, shape index: {}]
  %s1 = inlined_call_operand.vmem [shape: bf16[32,128], index: 1, kind: input, shape index: {}]
  %s2 = inlined_call_operand.vmem [shape: f32[4,64], index: 2, kind: input, shape index: {}]
  %s3 = inlined_call_operand.vmem [shape: bf16[64,2112], index: 3, kind: input, shape index: {}]
  %s4 = inlined_call_operand.hbm [shape: bf16[128,2048], index: 4, kind: input, shape index: {}]
  %s5 = inlined_call_operand.vmem [shape: bf16[1024,64], index: 5, kind: input, shape index: {}]
  %s6 = inlined_call_operand.vmem [shape: bf16[64,32], index: 6, kind: input, shape index: {}]
  %s7 = inlined_call_operand.vmem [shape: f32[8,128], index: 7, kind: input, shape index: {}]
  %s8 = inlined_call_operand.hbm [shape: f32[8,256], index: 8, kind: output, shape index: {}]
  %s9 = sld [smem:[#allocation0]]
  $region73: #{tpu_custom_call.1} parent=0
    _
  %s11 = ssub.s32 1, %s9
  %s12 = scalar_select 0, %s11, %s9
  $region1: #{tpu_custom_call.1} parent=0
    #allocation6 [shape = 'u8[524288]{0}', space=vmem, size = 0x80000, scoped, tag = 'input window, operand 4, single buffered']
    #allocation7 [shape = 's32[2]{0}', space=sflag, size = 0x8, scoped, tag = 'scoped memory for tpu_custom_call.1']
    #allocation8 [shape = 's32[2]{0}', space=sflag, size = 0x8, scoped, tag = 'scoped memory for tpu_custom_call.1']
    #allocation9 [shape = 'u8[8192]{0}', space=vmem, size = 0x2000, scoped, tag = 'output window, operand 0']
    %13 = vsyncpa [#allocation7], 0
    %14 = vsyncpa [#allocation8], 0
    %s15 = scalar_lea.sflag [#allocation8], 1
    %16 = vsyncpa %s15, 0
    loop: start=0, step=1, limit=4
    $region2: #{tpu_custom_call.1} parent=1 // loop_pre_header
      _
    $region3: #{tpu_custom_call.1} parent=1 // loop_header
      %s18 = sphi 0, %s22
      %p19 = scmp.ge.s32.totalorder %s18, 4
      %s25 = sphi 0, %s37
      %s26 = sphi 0, %s33
      %s27 = sphi 0, %s25
      %s28 = sphi 0, %s26
      %s29 = sphi 0, %s27
      %s30 = sphi 0, %s28
      %s42 = sphi 0, %s44
      %s45 = sphi 0, %s42
      %s46 = sphi 0, %s45
      %s62 = sphi 0, %s46
      %s66 = sphi 0, %s66
      %s68 = sphi 0, %s66
      %s69 = sphi 0, %s68
      %s83 = sphi 0, %s69
      %s87 = sphi 0, %s87
      %s89 = sphi 0, %s87
      %s90 = sphi 0, %s89
      %s104 = sphi 0, %s90
      %s108 = sphi 0, %s108
      %s110 = sphi 0, %s108
      %s111 = sphi 0, %s110
      %s125 = sphi 0, %s111
      %s129 = sphi 0, %s129
      %s131 = sphi 0, %s129
      %s132 = sphi 0, %s131
      %s146 = sphi 0, %s132
      %s150 = sphi 0, %s150
      %s152 = sphi 0, %s150
      %s153 = sphi 0, %s152
      %s167 = sphi 0, %s153
      %s171 = sphi 0, %s171
      %s173 = sphi 0, %s171
      %s174 = sphi 0, %s173
      %s188 = sphi 0, %s174
      %s192 = sphi 0, %s192
      %s194 = sphi 0, %s192
      %s195 = sphi 0, %s194
      %s209 = sphi 0, %s195
      %s217 = sphi 0, %s219
      %s220 = sphi 0, %s217
      %s221 = sphi 0, %s220
      %s237 = sphi 0, %s221
    $region4: #{tpu_custom_call.1} parent=1 // loop_header_branch
      %21 = sbr.rel (%p19) target = $region8
    $region5: #{tpu_custom_call.1} parent=1 // loop_body
      %s23 = ssub.s32 %s18, 1
      %s24 = ssub.s32 %s18, 2
      %s31 = sadd.s32 1, %s26
      %p32 = scmp.ge.s32.totalorder %s31, 2
      %s33 = scalar_select %p32, 0, %s31
      %s34 = sadd.s32 1, %s25
      %s35 = scalar_select %p32, %s34, %s25
      %p36 = scmp.ge.s32.totalorder %s35, 1
      %s37 = scalar_select %p36, 0, %s35
      %s38 = ssub.s32 %s25, %s37
      %s39 = ssub.s32 %s26, %s33
      %s40 = sor.u32 %s38, %s39
      %p41 = scmp.eq.s32.totalorder %s40, 0
      %s43 = sadd.s32 %s42, 1
      %s44 = scalar_select %p41, %s42, %s43
      %p47 = pneg %p41
      %p48 = scmp.eq.s32.totalorder %s18, 1
      %p49 = por %p47, %p48
      %p50 = scmp.ne.s32.totalorder %s42, %s45
      %p51 = scmp.eq.s32.totalorder %s18, 0
      %p52 = por %p50, %p51
      %p53 = scmp.ne.s32.totalorder %s42, %s45
      %p54 = scmp.eq.s32.totalorder %s23, 1
      %p55 = por %p53, %p54
      %p56 = scmp.ne.s32.totalorder %s45, %s46
      %p57 = scmp.eq.s32.totalorder %s23, 0
      %p58 = por %p56, %p57
      %p59 = scmp.ne.s32.totalorder %s45, %s46
      %p60 = scmp.eq.s32.totalorder %s24, 1
      %p61 = por %p59, %p60
      %p63 = scmp.ne.s32.totalorder %s46, %s62
      %p64 = scmp.eq.s32.totalorder %s24, 0
      %p65 = por %p63, %p64
      %s67 = sadd.s32 %s66, 1
      %p70 = scmp.eq.s32.totalorder %s18, 1
      %p71 = scmp.ne.s32.totalorder %s66, %s68
      %p72 = scmp.eq.s32.totalorder %s18, 0
      %p73 = por %p71, %p72
      %p74 = scmp.ne.s32.totalorder %s66, %s68
      %p75 = scmp.eq.s32.totalorder %s23, 1
      %p76 = por %p74, %p75
      %p77 = scmp.ne.s32.totalorder %s68, %s69
      %p78 = scmp.eq.s32.totalorder %s23, 0
      %p79 = por %p77, %p78
      %p80 = scmp.ne.s32.totalorder %s68, %s69
      %p81 = scmp.eq.s32.totalorder %s24, 1
      %p82 = por %p80, %p81
      %p84 = scmp.ne.s32.totalorder %s69, %s83
      %p85 = scmp.eq.s32.totalorder %s24, 0
      %p86 = por %p84, %p85
      %s88 = sadd.s32 %s87, 1
      %p91 = scmp.eq.s32.totalorder %s18, 1
      %p92 = scmp.ne.s32.totalorder %s87, %s89
      %p93 = scmp.eq.s32.totalorder %s18, 0
      %p94 = por %p92, %p93
      %p95 = scmp.ne.s32.totalorder %s87, %s89
      %p96 = scmp.eq.s32.totalorder %s23, 1
      %p97 = por %p95, %p96
      %p98 = scmp.ne.s32.totalorder %s89, %s90
      %p99 = scmp.eq.s32.totalorder %s23, 0
      %p100 = por %p98, %p99
      %p101 = scmp.ne.s32.totalorder %s89, %s90
      %p102 = scmp.eq.s32.totalorder %s24, 1
      %p103 = por %p101, %p102
      %p105 = scmp.ne.s32.totalorder %s90, %s104
      %p106 = scmp.eq.s32.totalorder %s24, 0
      %p107 = por %p105, %p106
      %s109 = sadd.s32 %s108, 1
      %p112 = scmp.eq.s32.totalorder %s18, 1
      %p113 = scmp.ne.s32.totalorder %s108, %s110
      %p114 = scmp.eq.s32.totalorder %s18, 0
      %p115 = por %p113, %p114
      %p116 = scmp.ne.s32.totalorder %s108, %s110
      %p117 = scmp.eq.s32.totalorder %s23, 1
      %p118 = por %p116, %p117
      %p119 = scmp.ne.s32.totalorder %s110, %s111
      %p120 = scmp.eq.s32.totalorder %s23, 0
      %p121 = por %p119, %p120
      %p122 = scmp.ne.s32.totalorder %s110, %s111
      %p123 = scmp.eq.s32.totalorder %s24, 1
      %p124 = por %p122, %p123
      %p126 = scmp.ne.s32.totalorder %s111, %s125
      %p127 = scmp.eq.s32.totalorder %s24, 0
      %p128 = por %p126, %p127
      %s130 = sadd.s32 %s129, 1
      %p133 = scmp.eq.s32.totalorder %s18, 1
      %p134 = scmp.ne.s32.totalorder %s129, %s131
      %p135 = scmp.eq.s32.totalorder %s18, 0
      %p136 = por %p134, %p135
      %p137 = scmp.ne.s32.totalorder %s129, %s131
      %p138 = scmp.eq.s32.totalorder %s23, 1
      %p139 = por %p137, %p138
      %p140 = scmp.ne.s32.totalorder %s131, %s132
      %p141 = scmp.eq.s32.totalorder %s23, 0
      %p142 = por %p140, %p141
      %p143 = scmp.ne.s32.totalorder %s131, %s132
      %p144 = scmp.eq.s32.totalorder %s24, 1
      %p145 = por %p143, %p144
      %p147 = scmp.ne.s32.totalorder %s132, %s146
      %p148 = scmp.eq.s32.totalorder %s24, 0
      %p149 = por %p147, %p148
      %s151 = sadd.s32 %s150, 1
      %p154 = scmp.eq.s32.totalorder %s18, 1
      %p155 = scmp.ne.s32.totalorder %s150, %s152
      %p156 = scmp.eq.s32.totalorder %s18, 0
      %p157 = por %p155, %p156
      %p158 = scmp.ne.s32.totalorder %s150, %s152
      %p159 = scmp.eq.s32.totalorder %s23, 1
      %p160 = por %p158, %p159
      %p161 = scmp.ne.s32.totalorder %s152, %s153
      %p162 = scmp.eq.s32.totalorder %s23, 0
      %p163 = por %p161, %p162
      %p164 = scmp.ne.s32.totalorder %s152, %s153
      %p165 = scmp.eq.s32.totalorder %s24, 1
      %p166 = por %p164, %p165
      %p168 = scmp.ne.s32.totalorder %s153, %s167
      %p169 = scmp.eq.s32.totalorder %s24, 0
      %p170 = por %p168, %p169
      %s172 = sadd.s32 %s171, 1
      %p175 = scmp.eq.s32.totalorder %s18, 1
      %p176 = scmp.ne.s32.totalorder %s171, %s173
      %p177 = scmp.eq.s32.totalorder %s18, 0
      %p178 = por %p176, %p177
      %p179 = scmp.ne.s32.totalorder %s171, %s173
      %p180 = scmp.eq.s32.totalorder %s23, 1
      %p181 = por %p179, %p180
      %p182 = scmp.ne.s32.totalorder %s173, %s174
      %p183 = scmp.eq.s32.totalorder %s23, 0
      %p184 = por %p182, %p183
      %p185 = scmp.ne.s32.totalorder %s173, %s174
      %p186 = scmp.eq.s32.totalorder %s24, 1
      %p187 = por %p185, %p186
      %p189 = scmp.ne.s32.totalorder %s174, %s188
      %p190 = scmp.eq.s32.totalorder %s24, 0
      %p191 = por %p189, %p190
      %s193 = sadd.s32 %s192, 1
      %p196 = scmp.eq.s32.totalorder %s18, 1
      %p197 = scmp.ne.s32.totalorder %s192, %s194
      %p198 = scmp.eq.s32.totalorder %s18, 0
      %p199 = por %p197, %p198
      %p200 = scmp.ne.s32.totalorder %s192, %s194
      %p201 = scmp.eq.s32.totalorder %s23, 1
      %p202 = por %p200, %p201
      %p203 = scmp.ne.s32.totalorder %s194, %s195
      %p204 = scmp.eq.s32.totalorder %s23, 0
      %p205 = por %p203, %p204
      %p206 = scmp.ne.s32.totalorder %s194, %s195
      %p207 = scmp.eq.s32.totalorder %s24, 1
      %p208 = por %p206, %p207
      %p210 = scmp.ne.s32.totalorder %s195, %s209
      %p211 = scmp.eq.s32.totalorder %s24, 0
      %p212 = por %p210, %p211
      %s213 = ssub.s32 %s25, %s37
      %s214 = ssub.s32 %s26, %s33
      %s215 = sor.u32 %s213, %s214
      %p216 = scmp.eq.s32.totalorder %s215, 0
      %s218 = sadd.s32 %s217, 1
      %s219 = scalar_select %p216, %s217, %s218
      %p222 = pneg %p216
      %p223 = scmp.eq.s32.totalorder %s18, 1
      %p224 = por %p222, %p223
      %p225 = scmp.ne.s32.totalorder %s217, %s220
      %p226 = scmp.eq.s32.totalorder %s18, 0
      %p227 = por %p225, %p226
      %p228 = scmp.ne.s32.totalorder %s217, %s220
      %p229 = scmp.eq.s32.totalorder %s23, 1
      %p230 = por %p228, %p229
      %p231 = scmp.ne.s32.totalorder %s220, %s221
      %p232 = scmp.eq.s32.totalorder %s23, 0
      %p233 = por %p231, %p232
      %p234 = scmp.ne.s32.totalorder %s220, %s221
      %p235 = scmp.eq.s32.totalorder %s24, 1
      %p236 = por %p234, %p235
      %p238 = scmp.ne.s32.totalorder %s221, %s237
      %p239 = scmp.eq.s32.totalorder %s24, 0
      %p240 = por %p238, %p239
      %p241 = scmp.le.s32.totalorder 1, %s18
      %p242 = scmp.lt.s32.totalorder %s18, 3
      %p243 = pnand %p241, %p242
      %p244 = pneg %p243
      // Predicated region
      $region9: #{tpu_custom_call.1} parent=5 // pred_check
        _
      $region10: #{tpu_custom_call.1} parent=5 // pred_check_branch
        %246 = sbr.rel (%p243) target = $region12
      $region11: #{tpu_custom_call.1} parent=5 // pred_region
        %s247 = ssub.s32 %s18, 1
        // Predicated region
        $region13: #{tpu_custom_call.1} parent=11 // pred_check
          %p248 = pneg %p79
        $region14: #{tpu_custom_call.1} parent=11 // pred_check_branch
          %250 = sbr.rel (%p248) target = $region16
        $region15: #{tpu_custom_call.1} parent=11 // pred_region
          _
        $region16: #{tpu_custom_call.1} parent=11 // pred_fallthru
          _
        // Predicated region
        $region17: #{tpu_custom_call.1} parent=11 // pred_check
          %p251 = pneg %p100
        $region18: #{tpu_custom_call.1} parent=11 // pred_check_branch
          %253 = sbr.rel (%p251) target = $region20
        $region19: #{tpu_custom_call.1} parent=11 // pred_region
          _
        $region20: #{tpu_custom_call.1} parent=11 // pred_fallthru
          _
        // Predicated region
        $region21: #{tpu_custom_call.1} parent=11 // pred_check
          %p254 = pneg %p121
        $region22: #{tpu_custom_call.1} parent=11 // pred_check_branch
          %256 = sbr.rel (%p254) target = $region24
        $region23: #{tpu_custom_call.1} parent=11 // pred_region
          _
        $region24: #{tpu_custom_call.1} parent=11 // pred_fallthru
          _
        // Predicated region
        $region25: #{tpu_custom_call.1} parent=11 // pred_check
          %p257 = pneg %p142
        $region26: #{tpu_custom_call.1} parent=11 // pred_check_branch
          %259 = sbr.rel (%p257) target = $region28
        $region27: #{tpu_custom_call.1} parent=11 // pred_region
          %s261 = ssub.s32 16384, 16384
          %262 = vsyncadd [#allocation7], %s261
          %s263 = sshll.u32 [#allocation6], 4
          %s264 = int_to_ptr.vmem [resolvable:$true] %s263
          %269 = dma.hbm_to_vmem [thread:$0]  %s4, 16384, %s264, [#allocation7], 1024, 1024, 64
        $region28: #{tpu_custom_call.1} parent=11 // pred_fallthru
          _
        // Predicated region
        $region29: #{tpu_custom_call.1} parent=11 // pred_check
          %p270 = pneg %p163
        $region30: #{tpu_custom_call.1} parent=11 // pred_check_branch
          %272 = sbr.rel (%p270) target = $region32
        $region31: #{tpu_custom_call.1} parent=11 // pred_region
          _
        $region32: #{tpu_custom_call.1} parent=11 // pred_fallthru
          _
        // Predicated region
        $region33: #{tpu_custom_call.1} parent=11 // pred_check
          %p273 = pneg %p184
        $region34: #{tpu_custom_call.1} parent=11 // pred_check_branch
          %275 = sbr.rel (%p273) target = $region36
        $region35: #{tpu_custom_call.1} parent=11 // pred_region
          _
        $region36: #{tpu_custom_call.1} parent=11 // pred_fallthru
          _
        // Predicated region
        $region37: #{tpu_custom_call.1} parent=11 // pred_check
          %p276 = pneg %p205
        $region38: #{tpu_custom_call.1} parent=11 // pred_check_branch
          %278 = sbr.rel (%p276) target = $region40
        $region39: #{tpu_custom_call.1} parent=11 // pred_region
          _
        $region40: #{tpu_custom_call.1} parent=11 // pred_fallthru
          _
      $region12: #{tpu_custom_call.1} parent=5 // pred_fallthru
        _
      %p279 = scmp.lt.s32.totalorder %s18, 2
      // Predicated region
      $region41: #{tpu_custom_call.1} parent=5 // pred_check
        %p280 = pneg %p279
      $region42: #{tpu_custom_call.1} parent=5 // pred_check_branch
        %282 = sbr.rel (%p280) target = $region44
      $region43: #{tpu_custom_call.1} parent=5 // pred_region
        // Predicated region
        $region45: #{tpu_custom_call.1} parent=43 // pred_check
          %p283 = pneg %p52
        $region46: #{tpu_custom_call.1} parent=43 // pred_check_branch
          %285 = sbr.rel (%p283) target = $region48
        $region47: #{tpu_custom_call.1} parent=43 // pred_region
          %p286 = scmp.lt.s32.totalorder %s25, 0
          %s287 = scalar_select %p286, %s25, 0
          %p288 = scmp.lt.s32.totalorder %s26, 1
          %s289 = scalar_select %p288, %s26, 1
          %s290 = smul.addr %s287, 2
          %s291 = sadd.s32 %s289, %s290
          %s292 = smul.addr %s291, 8
          %s293 = scalar_lea.vmem %s0, %s292
        $region48: #{tpu_custom_call.1} parent=43 // pred_fallthru
          _
      $region44: #{tpu_custom_call.1} parent=5 // pred_fallthru
        _
      %p294 = scmp.le.s32.totalorder 1, %s18
      %p295 = scmp.lt.s32.totalorder %s18, 3
      %p296 = pnand %p294, %p295
      %p297 = pneg %p296
      // Predicated region
      $region49: #{tpu_custom_call.1} parent=5 // pred_check
        _
      $region50: #{tpu_custom_call.1} parent=5 // pred_check_branch
        %299 = sbr.rel (%p296) target = $region52
      $region51: #{tpu_custom_call.1} parent=5 // pred_region
        %s300 = ssub.s32 %s18, 1
        // Predicated region
        $region53: #{tpu_custom_call.1} parent=51 // pred_check
          %p301 = pneg %p142
        $region54: #{tpu_custom_call.1} parent=51 // pred_check_branch
          %303 = sbr.rel (%p301) target = $region56
        $region55: #{tpu_custom_call.1} parent=51 // pred_region
          %304 = dma.done [#allocation7], 16384
        $region56: #{tpu_custom_call.1} parent=51 // pred_fallthru
          _
        %p305 = scmp.lt.s32.totalorder %s27, 0
        %s306 = scalar_select %p305, %s27, 0
        %p307 = scmp.lt.s32.totalorder %s28, 1
        %s308 = scalar_select %p307, %s28, 1
        %s309 = smul.addr %s306, 2
        %s310 = sadd.s32 %s308, %s309
        %s311 = smul.addr %s310, 8
        %s312 = scalar_lea.vmem %s0, %s311
        %p313 = pneg %p58
        %p314 = pneg %p55
        %p315 = pneg %p79
        %p316 = pneg %p76
        %p317 = pneg %p100
        %p318 = pneg %p97
        %p319 = pneg %p121
        %p320 = pneg %p118
        %p321 = pneg %p142
        %p322 = pneg %p139
        %p323 = pneg %p163
        %p324 = pneg %p160
        %p325 = pneg %p184
        %p326 = pneg %p181
        %p327 = pneg %p205
        %p328 = pneg %p202
        %p329 = pneg %p233
        %p330 = pneg %p230
        %s331 = sand.u32 %s220, 1
        %s332 = scalar_lea.sflag [#allocation8], %s331
        %s333 = sand.u32 %s220, 1
        %s334 = smul.addr %s333, 8
        %s335 = scalar_lea.vmem [#allocation9], %s334
        %p336 = scmp.lt.s32.totalorder %s27, 0
        %s337 = scalar_select %p336, %s27, 0
        %p338 = scmp.lt.s32.totalorder %s28, 1
        %s339 = scalar_select %p338, %s28, 1
        %s340 = smul.addr %s337, 2
        %s341 = sadd.s32 %s339, %s340
        %s342 = smul.addr %s341, 8
        %s343 = scalar_lea.vmem %s0, %s342
        %p345 = scmp.eq.s32.totalorder %s28, 0
        // Predicated region
        $region57: #{tpu_custom_call.1} parent=51 // pred_check
          %p346 = pneg %p345
        $region58: #{tpu_custom_call.1} parent=51 // pred_check_branch
          %348 = sbr.rel (%p346) target = $region60
        $region59: #{tpu_custom_call.1} parent=51 // pred_region
          %349 = vst [vmem:[#allocation4] sm:$0xff] 0.0
          %350 = vst [vmem:[#allocation4 + $0x8] sm:$0xff] 0.0
          %351 = vst [vmem:[#allocation4 + $0x10] sm:$0xff] 0.0
          %352 = vst [vmem:[#allocation4 + $0x18] sm:$0xff] 0.0
          %353 = vst [vmem:[#allocation4 + $0x20] sm:$0xff] 0.0
          %354 = vst [vmem:[#allocation4 + $0x28] sm:$0xff] 0.0
          %355 = vst [vmem:[#allocation4 + $0x30] sm:$0xff] 0.0
          %356 = vst [vmem:[#allocation4 + $0x38] sm:$0xff] 0.0
          %vm357 = vcmask 523264
          %358 = vst.msk [vmem:[#allocation5] sm:$0xff] %vm357, 0.0
          %359 = vst.msk [vmem:[#allocation5 + $0x8] sm:$0xff] %vm357, 0.0
          %360 = vst.msk [vmem:[#allocation5 + $0x10] sm:$0xff] %vm357, 0.0
        $region60: #{tpu_custom_call.1} parent=51 // pred_fallthru
          _
        %v361 = vld [vmem:[%s343] sm:$0xff]
        %363 = vrot.lane.b32.xlu0 %v361, 96
        %v364 = vpop.permute.xlu0 %363
        %366 = vrot.lane.b32.xlu0 %v361, 64
        %v367 = vpop.permute.xlu0 %366
        %369 = vrot.lane.b32.xlu0 %v361, 32
        %v370 = vpop.permute.xlu0 %369
        %v372 = vpack.c.bf16 %v364, %v361
        %v373 = vpack.c.bf16 %v370, %v367
        %v374 = vld [vmem:[%s1] sm:$0xf]
        %v375 = vld [vmem:[%s1 + $0x4] sm:$0xf]
        %v376 = vld [vmem:[%s1 + $0x8] sm:$0xf]
        %v377 = vld [vmem:[%s1 + $0xc] sm:$0xf]
        %v382 = vunpack.c.l.b16 %v374
        %v383 = vunpack.c.l.b16 %v375
        %v384 = vunpack.c.l.b16 %v376
        %v385 = vunpack.c.l.b16 %v377
        %v386 = vpack.c.b16 %v383, %v382
        %v387 = vpack.c.b16 %v385, %v384
        %vm390 = vcmask 261120
        %v392 = vsel %vm390, %v372, 0
        %v395 = vsel %vm390, %v373, 0
        %397 = vmatprep.subr.bf16.mxu0 0
        %398 = vmatpush1.bf16.msra.mxu0 %v386
        %399 = vmatprep.subr.bf16.mxu0 0
        %400 = vmatpush1.bf16.msra.mxu0 %v387
        %401 = vmatprep.subr.bf16.mxu0 0
        %402 = vmatpush1.bf16.msra.mxu0 0
        %403 = vmatprep.subr.bf16.mxu0 0
        %404 = vmatpush1.bf16.msra.mxu0 0
        %405 = vmatprep.subr.bf16.mxu0 0
        %406 = vmatpush1.bf16.msra.mxu0 0
        %407 = vmatprep.subr.bf16.mxu0 0
        %408 = vmatpush1.bf16.msra.mxu0 0
        %409 = vmatprep.subr.bf16.mxu0 0
        %410 = vmatpush1.bf16.msra.mxu0 0
        %411 = vmatprep.subr.bf16.mxu0 0
        %412 = vmatpush1.bf16.msra.mxu0 0
        %413 = vmatprep.subr.bf16.mxu0 0
        %414 = vmatpush1.bf16.msra.mxu0 0
        %415 = vmatprep.subr.bf16.mxu0 0
        %416 = vmatpush1.bf16.msra.mxu0 0
        %417 = vmatprep.subr.bf16.mxu0 0
        %418 = vmatpush1.bf16.msra.mxu0 0
        %419 = vmatprep.subr.bf16.mxu0 0
        %420 = vmatpush1.bf16.msra.mxu0 0
        %421 = vmatprep.subr.bf16.mxu0 0
        %422 = vmatpush1.bf16.msra.mxu0 0
        %423 = vmatprep.subr.bf16.mxu0 0
        %424 = vmatpush1.bf16.msra.mxu0 0
        %425 = vmatprep.subr.bf16.mxu0 0
        %426 = vmatpush1.bf16.msra.mxu0 0
        %427 = vmatprep.subr.bf16.mxu0 0
        %428 = vmatpush1.bf16.msra.mxu0 0
        %429 = vmatprep.mubr.bf16.mxu0 0
        %430 = vmatmul.mubr.bf16.gmra.mrb[0].mxu0 %v392
        %v431 = vpop.f32.mrb[0].mxu0
        %v432 = vadd.f32 0.0, %v431
        %v433 = vpop.f32.mrb[0].mxu0
        %v434 = vpop.f32.mrb[0].mxu0
        %v435 = vadd.f32 0.0, %v434
        %v436 = vpop.f32.mrb[0].mxu0
        %437 = vmatprep.mubr.bf16.mxu0 0
        %438 = vmatmul.mubr.bf16.gmra.mrb[0].mxu0 %v395
        %v439 = vpop.f32.mrb[0].mxu0
        %v440 = vadd.f32 0.0, %v439
        %v441 = vpop.f32.mrb[0].mxu0
        %v442 = vpop.f32.mrb[0].mxu0
        %v443 = vadd.f32 0.0, %v442
        %v444 = vpop.f32.mrb[0].mxu0
        %445 = vdwg.mxu0
        %v446 = vld [vmem:[#allocation5] sm:$0xff]
        %v447 = vld [vmem:[#allocation5 + $0x8] sm:$0xff]
        %v448 = vld [vmem:[#allocation5 + $0x10] sm:$0xff]
        %v449 = vld [vmem:[%s2] sm:$0xf]
        %v450 = vlaneseq
        %v451 = vshrl.u32 %v450, 7
        %v452 = vsub.s32 0, %v451
        %v453 = vrot.slane %v449, %v452
        %v454 = vmul.f32 %v446, %v453
        %v455 = vmul.f32 %v447, %v453
        %v456 = vmul.f32 %v448, %v453
        %v457 = vmul.f32 %v432, %v453
        %v458 = vadd.f32 %v454, 0.0
        %v459 = vadd.f32 %v455, 0.0
        %v460 = vadd.f32 %v456, 0.0
        %v461 = vadd.f32 %v457, 0.0
        %v462 = vlaneseq
        %v463 = vshrl.u32 %v462, 7
        %v464 = vsub.s32 1, %v463
        %v465 = vrot.slane %v449, %v464
        %v466 = vmul.f32 %v447, %v465
        %v467 = vmul.f32 %v448, %v465
        %v468 = vmul.f32 %v432, %v465
        %v469 = vmul.f32 %v435, %v465
        %v470 = vadd.f32 %v458, %v466
        %v471 = vadd.f32 %v459, %v467
        %v472 = vadd.f32 %v460, %v468
        %v473 = vadd.f32 %v461, %v469
        %v474 = vlaneseq
        %v475 = vshrl.u32 %v474, 7
        %v476 = vsub.s32 2, %v475
        %v477 = vrot.slane %v449, %v476
        %v478 = vmul.f32 %v448, %v477
        %v479 = vmul.f32 %v432, %v477
        %v480 = vmul.f32 %v435, %v477
        %v481 = vmul.f32 %v440, %v477
        %v482 = vadd.f32 %v470, %v478
        %v483 = vadd.f32 %v471, %v479
        %v484 = vadd.f32 %v472, %v480
        %v485 = vadd.f32 %v473, %v481
        %v486 = vlaneseq
        %v487 = vshrl.u32 %v486, 7
        %v488 = vsub.s32 3, %v487
        %v489 = vrot.slane %v449, %v488
        %v490 = vmul.f32 %v432, %v489
        %v491 = vmul.f32 %v435, %v489
        %v492 = vmul.f32 %v440, %v489
        %v493 = vmul.f32 %v443, %v489
        %v494 = vadd.f32 %v482, %v490
        %v495 = vadd.f32 %v483, %v491
        %v496 = vadd.f32 %v484, %v492
        %v497 = vadd.f32 %v485, %v493
        %vm498 = vcmask 523264
        %499 = vst.msk [vmem:[#allocation5] sm:$0xff] %vm498, %v435
        %500 = vst.msk [vmem:[#allocation5 + $0x8] sm:$0xff] %vm498, %v440
        %501 = vst.msk [vmem:[#allocation5 + $0x10] sm:$0xff] %vm498, %v443
        %v502 = vld [vmem:[%s7] sm:$0x1]
        %v503 = vlaneseq
        %v504 = vshrl.u32 %v503, 7
        %v505 = vsub.s32 0, %v504
        %v506 = vrot.slane %v502, %v505
        %v507 = vadd.f32 %v494, %v506
        %v508 = vadd.f32 %v495, %v506
        %v509 = vadd.f32 %v496, %v506
        %v510 = vadd.f32 %v497, %v506
        %v511 = vsub.f32 0.0, %v507
        %v512 = vsub.f32 0.0, %v508
        %v513 = vsub.f32 0.0, %v509
        %v514 = vsub.f32 0.0, %v510
        %v515 = vmul.f32 %v511, 1.442695
        %v516 = vpow.pop %v515
        %v517 = vmul.f32 %v512, 1.442695
        %v518 = vpow.pop %v517
        %v519 = vmul.f32 %v513, 1.442695
        %v520 = vpow.pop %v519
        %v521 = vmul.f32 %v514, 1.442695
        %v522 = vpow.pop %v521
        %v523 = vadd.f32 %v516, 1.0
        %v524 = vadd.f32 %v518, 1.0
        %v525 = vadd.f32 %v520, 1.0
        %v526 = vadd.f32 %v522, 1.0
        %v527 = vrcp.pop %v523
        %v528 = vmul.f32 1.0, %v527
        %v529 = vrcp.pop %v524
        %v530 = vmul.f32 1.0, %v529
        %v531 = vrcp.pop %v525
        %v532 = vmul.f32 1.0, %v531
        %v533 = vrcp.pop %v526
        %v534 = vmul.f32 1.0, %v533
        %v535 = vmul.f32 %v507, %v528
        %v536 = vmul.f32 %v508, %v530
        %v537 = vmul.f32 %v509, %v532
        %v538 = vmul.f32 %v510, %v534
        %v539 = vpack.c.bf16 %v536, %v535
        %v540 = vpack.c.bf16 %v538, %v537
        %v541 = vld [vmem:[%s3] sm:$0xff]
        %v542 = vld [vmem:[%s3 + $0x8] sm:$0xff]
        %v543 = vld [vmem:[%s3 + $0x10] sm:$0xff]
        %v544 = vld [vmem:[%s3 + $0x18] sm:$0xff]
        %v545 = vld [vmem:[%s3 + $0x20] sm:$0xff]
        %v546 = vld [vmem:[%s3 + $0x28] sm:$0xff]
        %v547 = vld [vmem:[%s3 + $0x30] sm:$0xff]
        %v548 = vld [vmem:[%s3 + $0x38] sm:$0xff]
        %v549 = vld [vmem:[%s3 + $0x40] sm:$0xf]
        %v550 = vld [vmem:[%s3 + $0x44] sm:$0xff]
        %v551 = vld [vmem:[%s3 + $0x4c] sm:$0xff]
        %v552 = vld [vmem:[%s3 + $0x54] sm:$0xff]
        %v553 = vld [vmem:[%s3 + $0x5c] sm:$0xff]
        %v554 = vld [vmem:[%s3 + $0x64] sm:$0xff]
        %v555 = vld [vmem:[%s3 + $0x6c] sm:$0xff]
        %v556 = vld [vmem:[%s3 + $0x74] sm:$0xff]
        %v557 = vld [vmem:[%s3 + $0x7c] sm:$0xff]
        %v558 = vld [vmem:[%s3 + $0x84] sm:$0xf]
        %v559 = vld [vmem:[%s3 + $0x88] sm:$0xff]
        %v560 = vld [vmem:[%s3 + $0x90] sm:$0xff]
        %v561 = vld [vmem:[%s3 + $0x98] sm:$0xff]
        %v562 = vld [vmem:[%s3 + $0xa0] sm:$0xff]
        %v563 = vld [vmem:[%s3 + $0xa8] sm:$0xff]
        %v564 = vld [vmem:[%s3 + $0xb0] sm:$0xff]
        %v565 = vld [vmem:[%s3 + $0xb8] sm:$0xff]
        %v566 = vld [vmem:[%s3 + $0xc0] sm:$0xff]
        %v567 = vld [vmem:[%s3 + $0xc8] sm:$0xf]
        %v568 = vld [vmem:[%s3 + $0xcc] sm:$0xff]
        %v569 = vld [vmem:[%s3 + $0xd4] sm:$0xff]
        %v570 = vld [vmem:[%s3 + $0xdc] sm:$0xff]
        %v571 = vld [vmem:[%s3 + $0xe4] sm:$0xff]
        %v572 = vld [vmem:[%s3 + $0xec] sm:$0xff]
        %v573 = vld [vmem:[%s3 + $0xf4] sm:$0xff]
        %v574 = vld [vmem:[%s3 + $0xfc] sm:$0xff]
        %v575 = vld [vmem:[%s3 + $0x104] sm:$0xff]
        %v576 = vld [vmem:[%s3 + $0x10c] sm:$0xf]
        %v577 = vld [vmem:[%s3 + $0x110] sm:$0xff]
        %v578 = vld [vmem:[%s3 + $0x118] sm:$0xff]
        %v579 = vld [vmem:[%s3 + $0x120] sm:$0xff]
        %v580 = vld [vmem:[%s3 + $0x128] sm:$0xff]
        %v581 = vld [vmem:[%s3 + $0x130] sm:$0xff]
        %v582 = vld [vmem:[%s3 + $0x138] sm:$0xff]
        %v583 = vld [vmem:[%s3 + $0x140] sm:$0xff]
        %v584 = vld [vmem:[%s3 + $0x148] sm:$0xff]
        %v585 = vld [vmem:[%s3 + $0x150] sm:$0xf]
        %v586 = vld [vmem:[%s3 + $0x154] sm:$0xff]
        %v587 = vld [vmem:[%s3 + $0x15c] sm:$0xff]
        %v588 = vld [vmem:[%s3 + $0x164] sm:$0xff]
        %v589 = vld [vmem:[%s3 + $0x16c] sm:$0xff]
        %v590 = vld [vmem:[%s3 + $0x174] sm:$0xff]
        %v591 = vld [vmem:[%s3 + $0x17c] sm:$0xff]
        %v592 = vld [vmem:[%s3 + $0x184] sm:$0xff]
        %v593 = vld [vmem:[%s3 + $0x18c] sm:$0xff]
        %v594 = vld [vmem:[%s3 + $0x194] sm:$0xf]
        %v595 = vld [vmem:[%s3 + $0x198] sm:$0xff]
        %v596 = vld [vmem:[%s3 + $0x1a0] sm:$0xff]
        %v597 = vld [vmem:[%s3 + $0x1a8] sm:$0xff]
        %v598 = vld [vmem:[%s3 + $0x1b0] sm:$0xff]
        %v599 = vld [vmem:[%s3 + $0x1b8] sm:$0xff]
        %v600 = vld [vmem:[%s3 + $0x1c0] sm:$0xff]
        %v601 = vld [vmem:[%s3 + $0x1c8] sm:$0xff]
        %v602 = vld [vmem:[%s3 + $0x1d0] sm:$0xff]
        %v603 = vld [vmem:[%s3 + $0x1d8] sm:$0xf]
        %v604 = vld [vmem:[%s3 + $0x1dc] sm:$0xff]
        %v605 = vld [vmem:[%s3 + $0x1e4] sm:$0xff]
        %v606 = vld [vmem:[%s3 + $0x1ec] sm:$0xff]
        %v607 = vld [vmem:[%s3 + $0x1f4] sm:$0xff]
        %v608 = vld [vmem:[%s3 + $0x1fc] sm:$0xff]
        %v609 = vld [vmem:[%s3 + $0x204] sm:$0xff]
        %v610 = vld [vmem:[%s3 + $0x20c] sm:$0xff]
        %v611 = vld [vmem:[%s3 + $0x214] sm:$0xff]
        %v612 = vld [vmem:[%s3 + $0x21c] sm:$0xf]
        %v685 = vunpack.c.l.b16 %v541
        %v686 = vunpack.c.h.b16 %v541
        %v687 = vunpack.c.l.b16 %v542
        %v688 = vunpack.c.h.b16 %v542
        %v689 = vunpack.c.l.b16 %v543
        %v690 = vunpack.c.h.b16 %v543
        %v691 = vunpack.c.l.b16 %v544
        %v692 = vunpack.c.h.b16 %v544
        %v693 = vunpack.c.l.b16 %v545
        %v694 = vunpack.c.h.b16 %v545
        %v695 = vunpack.c.l.b16 %v546
        %v696 = vunpack.c.h.b16 %v546
        %v697 = vunpack.c.l.b16 %v547
        %v698 = vunpack.c.h.b16 %v547
        %v699 = vunpack.c.l.b16 %v548
        %v700 = vunpack.c.h.b16 %v548
        %v701 = vunpack.c.l.b16 %v549
        %v702 = vunpack.c.l.b16 %v550
        %v703 = vunpack.c.h.b16 %v550
        %v704 = vunpack.c.l.b16 %v551
        %v705 = vunpack.c.h.b16 %v551
        %v706 = vunpack.c.l.b16 %v552
        %v707 = vunpack.c.h.b16 %v552
        %v708 = vunpack.c.l.b16 %v553
        %v709 = vunpack.c.h.b16 %v553
        %v710 = vunpack.c.l.b16 %v554
        %v711 = vunpack.c.h.b16 %v554
        %v712 = vunpack.c.l.b16 %v555
        %v713 = vunpack.c.h.b16 %v555
        %v714 = vunpack.c.l.b16 %v556
        %v715 = vunpack.c.h.b16 %v556
        %v716 = vunpack.c.l.b16 %v557
        %v717 = vunpack.c.h.b16 %v557
        %v718 = vunpack.c.l.b16 %v558
        %v719 = vunpack.c.l.b16 %v559
        %v720 = vunpack.c.h.b16 %v559
        %v721 = vunpack.c.l.b16 %v560
        %v722 = vunpack.c.h.b16 %v560
        %v723 = vunpack.c.l.b16 %v561
        %v724 = vunpack.c.h.b16 %v561
        %v725 = vunpack.c.l.b16 %v562
        %v726 = vunpack.c.h.b16 %v562
        %v727 = vunpack.c.l.b16 %v563
        %v728 = vunpack.c.h.b16 %v563
        %v729 = vunpack.c.l.b16 %v564
        %v730 = vunpack.c.h.b16 %v564
        %v731 = vunpack.c.l.b16 %v565
        %v732 = vunpack.c.h.b16 %v565
        %v733 = vunpack.c.l.b16 %v566
        %v734 = vunpack.c.h.b16 %v566
        %v735 = vunpack.c.l.b16 %v567
        %v736 = vunpack.c.l.b16 %v568
        %v737 = vunpack.c.h.b16 %v568
        %v738 = vunpack.c.l.b16 %v569
        %v739 = vunpack.c.h.b16 %v569
        %v740 = vunpack.c.l.b16 %v570
        %v741 = vunpack.c.h.b16 %v570
        %v742 = vunpack.c.l.b16 %v571
        %v743 = vunpack.c.h.b16 %v571
        %v744 = vunpack.c.l.b16 %v572
        %v745 = vunpack.c.h.b16 %v572
        %v746 = vunpack.c.l.b16 %v573
        %v747 = vunpack.c.h.b16 %v573
        %v748 = vunpack.c.l.b16 %v574
        %v749 = vunpack.c.h.b16 %v574
        %v750 = vunpack.c.l.b16 %v575
        %v751 = vunpack.c.h.b16 %v575
        %v752 = vunpack.c.l.b16 %v576
        %v753 = vunpack.c.l.b16 %v577
        %v754 = vunpack.c.h.b16 %v577
        %v755 = vunpack.c.l.b16 %v578
        %v756 = vunpack.c.h.b16 %v578
        %v757 = vunpack.c.l.b16 %v579
        %v758 = vunpack.c.h.b16 %v579
        %v759 = vunpack.c.l.b16 %v580
        %v760 = vunpack.c.h.b16 %v580
        %v761 = vunpack.c.l.b16 %v581
        %v762 = vunpack.c.h.b16 %v581
        %v763 = vunpack.c.l.b16 %v582
        %v764 = vunpack.c.h.b16 %v582
        %v765 = vunpack.c.l.b16 %v583
        %v766 = vunpack.c.h.b16 %v583
        %v767 = vunpack.c.l.b16 %v584
        %v768 = vunpack.c.h.b16 %v584
        %v769 = vunpack.c.l.b16 %v585
        %v770 = vunpack.c.l.b16 %v586
        %v771 = vunpack.c.h.b16 %v586
        %v772 = vunpack.c.l.b16 %v587
        %v773 = vunpack.c.h.b16 %v587
        %v774 = vunpack.c.l.b16 %v588
        %v775 = vunpack.c.h.b16 %v588
        %v776 = vunpack.c.l.b16 %v589
        %v777 = vunpack.c.h.b16 %v589
        %v778 = vunpack.c.l.b16 %v590
        %v779 = vunpack.c.h.b16 %v590
        %v780 = vunpack.c.l.b16 %v591
        %v781 = vunpack.c.h.b16 %v591
        %v782 = vunpack.c.l.b16 %v592
        %v783 = vunpack.c.h.b16 %v592
        %v784 = vunpack.c.l.b16 %v593
        %v785 = vunpack.c.h.b16 %v593
        %v786 = vunpack.c.l.b16 %v594
        %v787 = vunpack.c.l.b16 %v595
        %v788 = vunpack.c.h.b16 %v595
        %v789 = vunpack.c.l.b16 %v596
        %v790 = vunpack.c.h.b16 %v596
        %v791 = vunpack.c.l.b16 %v597
        %v792 = vunpack.c.h.b16 %v597
        %v793 = vunpack.c.l.b16 %v598
        %v794 = vunpack.c.h.b16 %v598
        %v795 = vunpack.c.l.b16 %v599
        %v796 = vunpack.c.h.b16 %v599
        %v797 = vunpack.c.l.b16 %v600
        %v798 = vunpack.c.h.b16 %v600
        %v799 = vunpack.c.l.b16 %v601
        %v800 = vunpack.c.h.b16 %v601
        %v801 = vunpack.c.l.b16 %v602
        %v802 = vunpack.c.h.b16 %v602
        %v803 = vunpack.c.l.b16 %v603
        %v804 = vunpack.c.l.b16 %v604
        %v805 = vunpack.c.h.b16 %v604
        %v806 = vunpack.c.l.b16 %v605
        %v807 = vunpack.c.h.b16 %v605
        %v808 = vunpack.c.l.b16 %v606
        %v809 = vunpack.c.h.b16 %v606
        %v810 = vunpack.c.l.b16 %v607
        %v811 = vunpack.c.h.b16 %v607
        %v812 = vunpack.c.l.b16 %v608
        %v813 = vunpack.c.h.b16 %v608
        %v814 = vunpack.c.l.b16 %v609
        %v815 = vunpack.c.h.b16 %v609
        %v816 = vunpack.c.l.b16 %v610
        %v817 = vunpack.c.h.b16 %v610
        %v818 = vunpack.c.l.b16 %v611
        %v819 = vunpack.c.h.b16 %v611
        %v820 = vunpack.c.l.b16 %v612
        %v821 = vpack.c.b16 %v702, %v685
        %v822 = vpack.c.b16 %v703, %v686
        %v823 = vpack.c.b16 %v704, %v687
        %v824 = vpack.c.b16 %v705, %v688
        %v825 = vpack.c.b16 %v706, %v689
        %v826 = vpack.c.b16 %v707, %v690
        %v827 = vpack.c.b16 %v708, %v691
        %v828 = vpack.c.b16 %v709, %v692
        %v829 = vpack.c.b16 %v710, %v693
        %v830 = vpack.c.b16 %v711, %v694
        %v831 = vpack.c.b16 %v712, %v695
        %v832 = vpack.c.b16 %v713, %v696
        %v833 = vpack.c.b16 %v714, %v697
        %v834 = vpack.c.b16 %v715, %v698
        %v835 = vpack.c.b16 %v716, %v699
        %v836 = vpack.c.b16 %v717, %v700
        %v837 = vpack.c.b16 %v718, %v701
        %v838 = vpack.c.b16 %v736, %v719
        %v839 = vpack.c.b16 %v737, %v720
        %v840 = vpack.c.b16 %v738, %v721
        %v841 = vpack.c.b16 %v739, %v722
        %v842 = vpack.c.b16 %v740, %v723
        %v843 = vpack.c.b16 %v741, %v724
        %v844 = vpack.c.b16 %v742, %v725
        %v845 = vpack.c.b16 %v743, %v726
        %v846 = vpack.c.b16 %v744, %v727
        %v847 = vpack.c.b16 %v745, %v728
        %v848 = vpack.c.b16 %v746, %v729
        %v849 = vpack.c.b16 %v747, %v730
        %v850 = vpack.c.b16 %v748, %v731
        %v851 = vpack.c.b16 %v749, %v732
        %v852 = vpack.c.b16 %v750, %v733
        %v853 = vpack.c.b16 %v751, %v734
        %v854 = vpack.c.b16 %v752, %v735
        %v855 = vpack.c.b16 %v770, %v753
        %v856 = vpack.c.b16 %v771, %v754
        %v857 = vpack.c.b16 %v772, %v755
        %v858 = vpack.c.b16 %v773, %v756
        %v859 = vpack.c.b16 %v774, %v757
        %v860 = vpack.c.b16 %v775, %v758
        %v861 = vpack.c.b16 %v776, %v759
        %v862 = vpack.c.b16 %v777, %v760
        %v863 = vpack.c.b16 %v778, %v761
        %v864 = vpack.c.b16 %v779, %v762
        %v865 = vpack.c.b16 %v780, %v763
        %v866 = vpack.c.b16 %v781, %v764
        %v867 = vpack.c.b16 %v782, %v765
        %v868 = vpack.c.b16 %v783, %v766
        %v869 = vpack.c.b16 %v784, %v767
        %v870 = vpack.c.b16 %v785, %v768
        %v871 = vpack.c.b16 %v786, %v769
        %v872 = vpack.c.b16 %v804, %v787
        %v873 = vpack.c.b16 %v805, %v788
        %v874 = vpack.c.b16 %v806, %v789
        %v875 = vpack.c.b16 %v807, %v790
        %v876 = vpack.c.b16 %v808, %v791
        %v877 = vpack.c.b16 %v809, %v792
        %v878 = vpack.c.b16 %v810, %v793
        %v879 = vpack.c.b16 %v811, %v794
        %v880 = vpack.c.b16 %v812, %v795
        %v881 = vpack.c.b16 %v813, %v796
        %v882 = vpack.c.b16 %v814, %v797
        %v883 = vpack.c.b16 %v815, %v798
        %v884 = vpack.c.b16 %v816, %v799
        %v885 = vpack.c.b16 %v817, %v800
        %v886 = vpack.c.b16 %v818, %v801
        %v887 = vpack.c.b16 %v819, %v802
        %v888 = vpack.c.b16 %v820, %v803
        %v958 = vsel %vm498, %v539, 0
        %v961 = vsel %vm498, %v540, 0
        %963 = vmatprep.subr.bf16.mxu0 %v822
        %964 = vmatpush1.bf16.msra.mxu0 %v821
        %965 = vmatprep.subr.bf16.mxu0 %v839
        %966 = vmatpush1.bf16.msra.mxu0 %v838
        %967 = vmatprep.subr.bf16.mxu0 %v856
        %968 = vmatpush1.bf16.msra.mxu0 %v855
        %969 = vmatprep.subr.bf16.mxu0 %v873
        %970 = vmatpush1.bf16.msra.mxu0 %v872
        %971 = vmatprep.subr.bf16.mxu0 0
        %972 = vmatpush1.bf16.msra.mxu0 0
        %973 = vmatprep.subr.bf16.mxu0 0
        %974 = vmatpush1.bf16.msra.mxu0 0
        %975 = vmatprep.subr.bf16.mxu0 0
        %976 = vmatpush1.bf16.msra.mxu0 0
        %977 = vmatprep.subr.bf16.mxu0 0
        %978 = vmatpush1.bf16.msra.mxu0 0
        %979 = vmatprep.subr.bf16.mxu0 0
        %980 = vmatpush1.bf16.msra.mxu0 0
        %981 = vmatprep.subr.bf16.mxu0 0
        %982 = vmatpush1.bf16.msra.mxu0 0
        %983 = vmatprep.subr.bf16.mxu0 0
        %984 = vmatpush1.bf16.msra.mxu0 0
        %985 = vmatprep.subr.bf16.mxu0 0
        %986 = vmatpush1.bf16.msra.mxu0 0
        %987 = vmatprep.subr.bf16.mxu0 0
        %988 = vmatpush1.bf16.msra.mxu0 0
        %989 = vmatprep.subr.bf16.mxu0 0
        %990 = vmatpush1.bf16.msra.mxu0 0
        %991 = vmatprep.subr.bf16.mxu0 0
        %992 = vmatpush1.bf16.msra.mxu0 0
        %993 = vmatprep.subr.bf16.mxu0 0
        %994 = vmatpush1.bf16.msra.mxu0 0
        %995 = vmatprep.mubr.bf16.mxu0 0
        %996 = vmatmul.mubr.bf16.gmra.mrb[0].mxu0 %v958
        %v997 = vpop.f32.mrb[0].mxu0
        %v998 = vadd.f32 0.0, %v997
        %v999 = vpop.f32.mrb[0].mxu0
        %v1000 = vadd.f32 0.0, %v999
        %v1001 = vpop.f32.mrb[0].mxu0
        %v1002 = vadd.f32 0.0, %v1001
        %v1003 = vpop.f32.mrb[0].mxu0
        %v1004 = vadd.f32 0.0, %v1003
        %1005 = vmatprep.mubr.bf16.mxu0 0
        %1006 = vmatmul.mubr.bf16.gmra.mrb[0].mxu0 %v961
        %v1007 = vpop.f32.mrb[0].mxu0
        %v1008 = vadd.f32 0.0, %v1007
        %v1009 = vpop.f32.mrb[0].mxu0
        %v1010 = vadd.f32 0.0, %v1009
        %v1011 = vpop.f32.mrb[0].mxu0
        %v1012 = vadd.f32 0.0, %v1011
        %v1013 = vpop.f32.mrb[0].mxu0
        %v1014 = vadd.f32 0.0, %v1013
        %1015 = vdwg.mxu0
        %1016 = vmatprep.subr.bf16.mxu0 %v824
        %1017 = vmatpush1.bf16.msra.mxu0 %v823
        %1018 = vmatprep.subr.bf16.mxu0 %v841
        %1019 = vmatpush1.bf16.msra.mxu0 %v840
        %1020 = vmatprep.subr.bf16.mxu0 %v858
        %1021 = vmatpush1.bf16.msra.mxu0 %v857
        %1022 = vmatprep.subr.bf16.mxu0 %v875
        %1023 = vmatpush1.bf16.msra.mxu0 %v874
        %1024 = vmatprep.subr.bf16.mxu0 0
        %1025 = vmatpush1.bf16.msra.mxu0 0
        %1026 = vmatprep.subr.bf16.mxu0 0
        %1027 = vmatpush1.bf16.msra.mxu0 0
        %1028 = vmatprep.subr.bf16.mxu0 0
        %1029 = vmatpush1.bf16.msra.mxu0 0
        %1030 = vmatprep.subr.bf16.mxu0 0
        %1031 = vmatpush1.bf16.msra.mxu0 0
        %1032 = vmatprep.subr.bf16.mxu0 0
        %1033 = vmatpush1.bf16.msra.mxu0 0
        %1034 = vmatprep.subr.bf16.mxu0 0
        %1035 = vmatpush1.bf16.msra.mxu0 0
        %1036 = vmatprep.subr.bf16.mxu0 0
        %1037 = vmatpush1.bf16.msra.mxu0 0
        %1038 = vmatprep.subr.bf16.mxu0 0
        %1039 = vmatpush1.bf16.msra.mxu0 0
        %1040 = vmatprep.subr.bf16.mxu0 0
        %1041 = vmatpush1.bf16.msra.mxu0 0
        %1042 = vmatprep.subr.bf16.mxu0 0
        %1043 = vmatpush1.bf16.msra.mxu0 0
        %1044 = vmatprep.subr.bf16.mxu0 0
        %1045 = vmatpush1.bf16.msra.mxu0 0
        %1046 = vmatprep.subr.bf16.mxu0 0
        %1047 = vmatpush1.bf16.msra.mxu0 0
        %1048 = vmatprep.mubr.bf16.mxu0 0
        %1049 = vmatmul.mubr.bf16.gmra.mrb[0].mxu0 %v958
        %v1050 = vpop.f32.mrb[0].mxu0
        %v1051 = vadd.f32 0.0, %v1050
        %v1052 = vpop.f32.mrb[0].mxu0
        %v1053 = vadd.f32 0.0, %v1052
        %v1054 = vpop.f32.mrb[0].mxu0
        %v1055 = vadd.f32 0.0, %v1054
        %v1056 = vpop.f32.mrb[0].mxu0
        %v1057 = vadd.f32 0.0, %v1056
        %1058 = vmatprep.mubr.bf16.mxu0 0
        %1059 = vmatmul.mubr.bf16.gmra.mrb[0].mxu0 %v961
        %v1060 = vpop.f32.mrb[0].mxu0
        %v1061 = vadd.f32 0.0, %v1060
        %v1062 = vpop.f32.mrb[0].mxu0
        %v1063 = vadd.f32 0.0, %v1062
        %v1064 = vpop.f32.mrb[0].mxu0
        %v1065 = vadd.f32 0.0, %v1064
        %v1066 = vpop.f32.mrb[0].mxu0
        %v1067 = vadd.f32 0.0, %v1066
        %1068 = vdwg.mxu0
        %1069 = vmatprep.subr.bf16.mxu0 %v826
        %1070 = vmatpush1.bf16.msra.mxu0 %v825
        %1071 = vmatprep.subr.bf16.mxu0 %v843
        %1072 = vmatpush1.bf16.msra.mxu0 %v842
        %1073 = vmatprep.subr.bf16.mxu0 %v860
        %1074 = vmatpush1.bf16.msra.mxu0 %v859
        %1075 = vmatprep.subr.bf16.mxu0 %v877
        %1076 = vmatpush1.bf16.msra.mxu0 %v876
        %1077 = vmatprep.subr.bf16.mxu0 0
        %1078 = vmatpush1.bf16.msra.mxu0 0
        %1079 = vmatprep.subr.bf16.mxu0 0
        %1080 = vmatpush1.bf16.msra.mxu0 0
        %1081 = vmatprep.subr.bf16.mxu0 0
        %1082 = vmatpush1.bf16.msra.mxu0 0
        %1083 = vmatprep.subr.bf16.mxu0 0
        %1084 = vmatpush1.bf16.msra.mxu0 0
        %1085 = vmatprep.subr.bf16.mxu0 0
        %1086 = vmatpush1.bf16.msra.mxu0 0
        %1087 = vmatprep.subr.bf16.mxu0 0
        %1088 = vmatpush1.bf16.msra.mxu0 0
        %1089 = vmatprep.subr.bf16.mxu0 0
        %1090 = vmatpush1.bf16.msra.mxu0 0
        %1091 = vmatprep.subr.bf16.mxu0 0
        %1092 = vmatpush1.bf16.msra.mxu0 0
        %1093 = vmatprep.subr.bf16.mxu0 0
        %1094 = vmatpush1.bf16.msra.mxu0 0
        %1095 = vmatprep.subr.bf16.mxu0 0
        %1096 = vmatpush1.bf16.msra.mxu0 0
        %1097 = vmatprep.subr.bf16.mxu0 0
        %1098 = vmatpush1.bf16.msra.mxu0 0
        %1099 = vmatprep.subr.bf16.mxu0 0
        %1100 = vmatpush1.bf16.msra.mxu0 0
        %1101 = vmatprep.mubr.bf16.mxu0 0
        %1102 = vmatmul.mubr.bf16.gmra.mrb[0].mxu0 %v958
        %v1103 = vpop.f32.mrb[0].mxu0
        %v1104 = vadd.f32 0.0, %v1103
        %v1105 = vpop.f32.mrb[0].mxu0
        %v1106 = vadd.f32 0.0, %v1105
        %v1107 = vpop.f32.mrb[0].mxu0
        %v1108 = vadd.f32 0.0, %v1107
        %v1109 = vpop.f32.mrb[0].mxu0
        %v1110 = vadd.f32 0.0, %v1109
        %1111 = vmatprep.mubr.bf16.mxu0 0
        %1112 = vmatmul.mubr.bf16.gmra.mrb[0].mxu0 %v961
        %v1113 = vpop.f32.mrb[0].mxu0
        %v1114 = vadd.f32 0.0, %v1113
        %v1115 = vpop.f32.mrb[0].mxu0
        %v1116 = vadd.f32 0.0, %v1115
        %v1117 = vpop.f32.mrb[0].mxu0
        %v1118 = vadd.f32 0.0, %v1117
        %v1119 = vpop.f32.mrb[0].mxu0
        %v1120 = vadd.f32 0.0, %v1119
        %1121 = vdwg.mxu0
        %1122 = vmatprep.subr.bf16.mxu0 %v828
        %1123 = vmatpush1.bf16.msra.mxu0 %v827
        %1124 = vmatprep.subr.bf16.mxu0 %v845
        %1125 = vmatpush1.bf16.msra.mxu0 %v844
        %1126 = vmatprep.subr.bf16.mxu0 %v862
        %1127 = vmatpush1.bf16.msra.mxu0 %v861
        %1128 = vmatprep.subr.bf16.mxu0 %v879
        %1129 = vmatpush1.bf16.msra.mxu0 %v878
        %1130 = vmatprep.subr.bf16.mxu0 0
        %1131 = vmatpush1.bf16.msra.mxu0 0
        %1132 = vmatprep.subr.bf16.mxu0 0
        %1133 = vmatpush1.bf16.msra.mxu0 0
        %1134 = vmatprep.subr.bf16.mxu0 0
        %1135 = vmatpush1.bf16.msra.mxu0 0
        %1136 = vmatprep.subr.bf16.mxu0 0
        %1137 = vmatpush1.bf16.msra.mxu0 0
        %1138 = vmatprep.subr.bf16.mxu0 0
        %1139 = vmatpush1.bf16.msra.mxu0 0
        %1140 = vmatprep.subr.bf16.mxu0 0
        %1141 = vmatpush1.bf16.msra.mxu0 0
        %1142 = vmatprep.subr.bf16.mxu0 0
        %1143 = vmatpush1.bf16.msra.mxu0 0
        %1144 = vmatprep.subr.bf16.mxu0 0
        %1145 = vmatpush1.bf16.msra.mxu0 0
        %1146 = vmatprep.subr.bf16.mxu0 0
        %1147 = vmatpush1.bf16.msra.mxu0 0
        %1148 = vmatprep.subr.bf16.mxu0 0
        %1149 = vmatpush1.bf16.msra.mxu0 0
        %1150 = vmatprep.subr.bf16.mxu0 0
        %1151 = vmatpush1.bf16.msra.mxu0 0
        %1152 = vmatprep.subr.bf16.mxu0 0
        %1153 = vmatpush1.bf16.msra.mxu0 0
        %1154 = vmatprep.mubr.bf16.mxu0 0
        %1155 = vmatmul.mubr.bf16.gmra.mrb[0].mxu0 %v958
        %v1156 = vpop.f32.mrb[0].mxu0
        %v1157 = vadd.f32 0.0, %v1156
        %v1158 = vpop.f32.mrb[0].mxu0
        %v1159 = vadd.f32 0.0, %v1158
        %v1160 = vpop.f32.mrb[0].mxu0
        %v1161 = vadd.f32 0.0, %v1160
        %v1162 = vpop.f32.mrb[0].mxu0
        %v1163 = vadd.f32 0.0, %v1162
        %1164 = vmatprep.mubr.bf16.mxu0 0
        %1165 = vmatmul.mubr.bf16.gmra.mrb[0].mxu0 %v961
        %v1166 = vpop.f32.mrb[0].mxu0
        %v1167 = vadd.f32 0.0, %v1166
        %v1168 = vpop.f32.mrb[0].mxu0
        %v1169 = vadd.f32 0.0, %v1168
        %v1170 = vpop.f32.mrb[0].mxu0
        %v1171 = vadd.f32 0.0, %v1170
        %v1172 = vpop.f32.mrb[0].mxu0
        %v1173 = vadd.f32 0.0, %v1172
        %1174 = vdwg.mxu0
        %1175 = vmatprep.subr.bf16.mxu0 %v830
        %1176 = vmatpush1.bf16.msra.mxu0 %v829
        %1177 = vmatprep.subr.bf16.mxu0 %v847
        %1178 = vmatpush1.bf16.msra.mxu0 %v846
        %1179 = vmatprep.subr.bf16.mxu0 %v864
        %1180 = vmatpush1.bf16.msra.mxu0 %v863
        %1181 = vmatprep.subr.bf16.mxu0 %v881
        %1182 = vmatpush1.bf16.msra.mxu0 %v880
        %1183 = vmatprep.subr.bf16.mxu0 0
        %1184 = vmatpush1.bf16.msra.mxu0 0
        %1185 = vmatprep.subr.bf16.mxu0 0
        %1186 = vmatpush1.bf16.msra.mxu0 0
        %1187 = vmatprep.subr.bf16.mxu0 0
        %1188 = vmatpush1.bf16.msra.mxu0 0
        %1189 = vmatprep.subr.bf16.mxu0 0
        %1190 = vmatpush1.bf16.msra.mxu0 0
        %1191 = vmatprep.subr.bf16.mxu0 0
        %1192 = vmatpush1.bf16.msra.mxu0 0
        %1193 = vmatprep.subr.bf16.mxu0 0
        %1194 = vmatpush1.bf16.msra.mxu0 0
        %1195 = vmatprep.subr.bf16.mxu0 0
        %1196 = vmatpush1.bf16.msra.mxu0 0
        %1197 = vmatprep.subr.bf16.mxu0 0
        %1198 = vmatpush1.bf16.msra.mxu0 0
        %1199 = vmatprep.subr.bf16.mxu0 0
        %1200 = vmatpush1.bf16.msra.mxu0 0
        %1201 = vmatprep.subr.bf16.mxu0 0
        %1202 = vmatpush1.bf16.msra.mxu0 0
        %1203 = vmatprep.subr.bf16.mxu0 0
        %1204 = vmatpush1.bf16.msra.mxu0 0
        %1205 = vmatprep.subr.bf16.mxu0 0
        %1206 = vmatpush1.bf16.msra.mxu0 0
        %1207 = vmatprep.mubr.bf16.mxu0 0
        %1208 = vmatmul.mubr.bf16.gmra.mrb[0].mxu0 %v958
        %v1209 = vpop.f32.mrb[0].mxu0
        %v1210 = vadd.f32 0.0, %v1209
        %v1211 = vpop.f32.mrb[0].mxu0
        %v1212 = vadd.f32 0.0, %v1211
        %v1213 = vpop.f32.mrb[0].mxu0
        %v1214 = vadd.f32 0.0, %v1213
        %v1215 = vpop.f32.mrb[0].mxu0
        %v1216 = vadd.f32 0.0, %v1215
        %1217 = vmatprep.mubr.bf16.mxu0 0
        %1218 = vmatmul.mubr.bf16.gmra.mrb[0].mxu0 %v961
        %v1219 = vpop.f32.mrb[0].mxu0
        %v1220 = vadd.f32 0.0, %v1219
        %v1221 = vpop.f32.mrb[0].mxu0
        %v1222 = vadd.f32 0.0, %v1221
        %v1223 = vpop.f32.mrb[0].mxu0
        %v1224 = vadd.f32 0.0, %v1223
        %v1225 = vpop.f32.mrb[0].mxu0
        %v1226 = vadd.f32 0.0, %v1225
        %1227 = vdwg.mxu0
        %1228 = vmatprep.subr.bf16.mxu0 %v832
        %1229 = vmatpush1.bf16.msra.mxu0 %v831
        %1230 = vmatprep.subr.bf16.mxu0 %v849
        %1231 = vmatpush1.bf16.msra.mxu0 %v848
        %1232 = vmatprep.subr.bf16.mxu0 %v866
        %1233 = vmatpush1.bf16.msra.mxu0 %v865
        %1234 = vmatprep.subr.bf16.mxu0 %v883
        %1235 = vmatpush1.bf16.msra.mxu0 %v882
        %1236 = vmatprep.subr.bf16.mxu0 0
        %1237 = vmatpush1.bf16.msra.mxu0 0
        %1238 = vmatprep.subr.bf16.mxu0 0
        %1239 = vmatpush1.bf16.msra.mxu0 0
        %1240 = vmatprep.subr.bf16.mxu0 0
        %1241 = vmatpush1.bf16.msra.mxu0 0
        %1242 = vmatprep.subr.bf16.mxu0 0
        %1243 = vmatpush1.bf16.msra.mxu0 0
        %1244 = vmatprep.subr.bf16.mxu0 0
        %1245 = vmatpush1.bf16.msra.mxu0 0
        %1246 = vmatprep.subr.bf16.mxu0 0
        %1247 = vmatpush1.bf16.msra.mxu0 0
        %1248 = vmatprep.subr.bf16.mxu0 0
        %1249 = vmatpush1.bf16.msra.mxu0 0
        %1250 = vmatprep.subr.bf16.mxu0 0
        %1251 = vmatpush1.bf16.msra.mxu0 0
        %1252 = vmatprep.subr.bf16.mxu0 0
        %1253 = vmatpush1.bf16.msra.mxu0 0
        %1254 = vmatprep.subr.bf16.mxu0 0
        %1255 = vmatpush1.bf16.msra.mxu0 0
        %1256 = vmatprep.subr.bf16.mxu0 0
        %1257 = vmatpush1.bf16.msra.mxu0 0
        %1258 = vmatprep.subr.bf16.mxu0 0
        %1259 = vmatpush1.bf16.msra.mxu0 0
        %1260 = vmatprep.mubr.bf16.mxu0 0
        %1261 = vmatmul.mubr.bf16.gmra.mrb[0].mxu0 %v958
        %v1262 = vpop.f32.mrb[0].mxu0
        %v1263 = vadd.f32 0.0, %v1262
        %v1264 = vpop.f32.mrb[0].mxu0
        %v1265 = vadd.f32 0.0, %v1264
        %v1266 = vpop.f32.mrb[0].mxu0
        %v1267 = vadd.f32 0.0, %v1266
        %v1268 = vpop.f32.mrb[0].mxu0
        %v1269 = vadd.f32 0.0, %v1268
        %1270 = vmatprep.mubr.bf16.mxu0 0
        %1271 = vmatmul.mubr.bf16.gmra.mrb[0].mxu0 %v961
        %v1272 = vpop.f32.mrb[0].mxu0
        %v1273 = vadd.f32 0.0, %v1272
        %v1274 = vpop.f32.mrb[0].mxu0
        %v1275 = vadd.f32 0.0, %v1274
        %v1276 = vpop.f32.mrb[0].mxu0
        %v1277 = vadd.f32 0.0, %v1276
        %v1278 = vpop.f32.mrb[0].mxu0
        %v1279 = vadd.f32 0.0, %v1278
        %1280 = vdwg.mxu0
        %1281 = vmatprep.subr.bf16.mxu0 %v834
        %1282 = vmatpush1.bf16.msra.mxu0 %v833
        %1283 = vmatprep.subr.bf16.mxu0 %v851
        %1284 = vmatpush1.bf16.msra.mxu0 %v850
        %1285 = vmatprep.subr.bf16.mxu0 %v868
        %1286 = vmatpush1.bf16.msra.mxu0 %v867
        %1287 = vmatprep.subr.bf16.mxu0 %v885
        %1288 = vmatpush1.bf16.msra.mxu0 %v884
        %1289 = vmatprep.subr.bf16.mxu0 0
        %1290 = vmatpush1.bf16.msra.mxu0 0
        %1291 = vmatprep.subr.bf16.mxu0 0
        %1292 = vmatpush1.bf16.msra.mxu0 0
        %1293 = vmatprep.subr.bf16.mxu0 0
        %1294 = vmatpush1.bf16.msra.mxu0 0
        %1295 = vmatprep.subr.bf16.mxu0 0
        %1296 = vmatpush1.bf16.msra.mxu0 0
        %1297 = vmatprep.subr.bf16.mxu0 0
        %1298 = vmatpush1.bf16.msra.mxu0 0
        %1299 = vmatprep.subr.bf16.mxu0 0
        %1300 = vmatpush1.bf16.msra.mxu0 0
        %1301 = vmatprep.subr.bf16.mxu0 0
        %1302 = vmatpush1.bf16.msra.mxu0 0
        %1303 = vmatprep.subr.bf16.mxu0 0
        %1304 = vmatpush1.bf16.msra.mxu0 0
        %1305 = vmatprep.subr.bf16.mxu0 0
        %1306 = vmatpush1.bf16.msra.mxu0 0
        %1307 = vmatprep.subr.bf16.mxu0 0
        %1308 = vmatpush1.bf16.msra.mxu0 0
        %1309 = vmatprep.subr.bf16.mxu0 0
        %1310 = vmatpush1.bf16.msra.mxu0 0
        %1311 = vmatprep.subr.bf16.mxu0 0
        %1312 = vmatpush1.bf16.msra.mxu0 0
        %1313 = vmatprep.mubr.bf16.mxu0 0
        %1314 = vmatmul.mubr.bf16.gmra.mrb[0].mxu0 %v958
        %v1315 = vpop.f32.mrb[0].mxu0
        %v1316 = vadd.f32 0.0, %v1315
        %v1317 = vpop.f32.mrb[0].mxu0
        %v1318 = vadd.f32 0.0, %v1317
        %v1319 = vpop.f32.mrb[0].mxu0
        %v1320 = vadd.f32 0.0, %v1319
        %v1321 = vpop.f32.mrb[0].mxu0
        %v1322 = vadd.f32 0.0, %v1321
        %1323 = vmatprep.mubr.bf16.mxu0 0
        %1324 = vmatmul.mubr.bf16.gmra.mrb[0].mxu0 %v961
        %v1325 = vpop.f32.mrb[0].mxu0
        %v1326 = vadd.f32 0.0, %v1325
        %v1327 = vpop.f32.mrb[0].mxu0
        %v1328 = vadd.f32 0.0, %v1327
        %v1329 = vpop.f32.mrb[0].mxu0
        %v1330 = vadd.f32 0.0, %v1329
        %v1331 = vpop.f32.mrb[0].mxu0
        %v1332 = vadd.f32 0.0, %v1331
        %1333 = vdwg.mxu0
        %1334 = vmatprep.subr.bf16.mxu0 %v836
        %1335 = vmatpush1.bf16.msra.mxu0 %v835
        %1336 = vmatprep.subr.bf16.mxu0 %v853
        %1337 = vmatpush1.bf16.msra.mxu0 %v852
        %1338 = vmatprep.subr.bf16.mxu0 %v870
        %1339 = vmatpush1.bf16.msra.mxu0 %v869
        %1340 = vmatprep.subr.bf16.mxu0 %v887
        %1341 = vmatpush1.bf16.msra.mxu0 %v886
        %1342 = vmatprep.subr.bf16.mxu0 0
        %1343 = vmatpush1.bf16.msra.mxu0 0
        %1344 = vmatprep.subr.bf16.mxu0 0
        %1345 = vmatpush1.bf16.msra.mxu0 0
        %1346 = vmatprep.subr.bf16.mxu0 0
        %1347 = vmatpush1.bf16.msra.mxu0 0
        %1348 = vmatprep.subr.bf16.mxu0 0
        %1349 = vmatpush1.bf16.msra.mxu0 0
        %1350 = vmatprep.subr.bf16.mxu0 0
        %1351 = vmatpush1.bf16.msra.mxu0 0
        %1352 = vmatprep.subr.bf16.mxu0 0
        %1353 = vmatpush1.bf16.msra.mxu0 0
        %1354 = vmatprep.subr.bf16.mxu0 0
        %1355 = vmatpush1.bf16.msra.mxu0 0
        %1356 = vmatprep.subr.bf16.mxu0 0
        %1357 = vmatpush1.bf16.msra.mxu0 0
        %1358 = vmatprep.subr.bf16.mxu0 0
        %1359 = vmatpush1.bf16.msra.mxu0 0
        %1360 = vmatprep.subr.bf16.mxu0 0
        %1361 = vmatpush1.bf16.msra.mxu0 0
        %1362 = vmatprep.subr.bf16.mxu0 0
        %1363 = vmatpush1.bf16.msra.mxu0 0
        %1364 = vmatprep.subr.bf16.mxu0 0
        %1365 = vmatpush1.bf16.msra.mxu0 0
        %1366 = vmatprep.mubr.bf16.mxu0 0
        %1367 = vmatmul.mubr.bf16.gmra.mrb[0].mxu0 %v958
        %v1368 = vpop.f32.mrb[0].mxu0
        %v1369 = vadd.f32 0.0, %v1368
        %v1370 = vpop.f32.mrb[0].mxu0
        %v1371 = vadd.f32 0.0, %v1370
        %v1372 = vpop.f32.mrb[0].mxu0
        %v1373 = vadd.f32 0.0, %v1372
        %v1374 = vpop.f32.mrb[0].mxu0
        %v1375 = vadd.f32 0.0, %v1374
        %1376 = vmatprep.mubr.bf16.mxu0 0
        %1377 = vmatmul.mubr.bf16.gmra.mrb[0].mxu0 %v961
        %v1378 = vpop.f32.mrb[0].mxu0
        %v1379 = vadd.f32 0.0, %v1378
        %v1380 = vpop.f32.mrb[0].mxu0
        %v1381 = vadd.f32 0.0, %v1380
        %v1382 = vpop.f32.mrb[0].mxu0
        %v1383 = vadd.f32 0.0, %v1382
        %v1384 = vpop.f32.mrb[0].mxu0
        %v1385 = vadd.f32 0.0, %v1384
        %1386 = vdwg.mxu0
        %1387 = vmatprep.subr.bf16.mxu0 0
        %1388 = vmatpush1.bf16.msra.mxu0 %v837
        %1389 = vmatprep.subr.bf16.mxu0 0
        %1390 = vmatpush1.bf16.msra.mxu0 %v854
        %1391 = vmatprep.subr.bf16.mxu0 0
        %1392 = vmatpush1.bf16.msra.mxu0 %v871
        %1393 = vmatprep.subr.bf16.mxu0 0
        %1394 = vmatpush1.bf16.msra.mxu0 %v888
        %1395 = vmatprep.subr.bf16.mxu0 0
        %1396 = vmatpush1.bf16.msra.mxu0 0
        %1397 = vmatprep.subr.bf16.mxu0 0
        %1398 = vmatpush1.bf16.msra.mxu0 0
        %1399 = vmatprep.subr.bf16.mxu0 0
        %1400 = vmatpush1.bf16.msra.mxu0 0
        %1401 = vmatprep.subr.bf16.mxu0 0
        %1402 = vmatpush1.bf16.msra.mxu0 0
        %1403 = vmatprep.subr.bf16.mxu0 0
        %1404 = vmatpush1.bf16.msra.mxu0 0
        %1405 = vmatprep.subr.bf16.mxu0 0
        %1406 = vmatpush1.bf16.msra.mxu0 0
        %1407 = vmatprep.subr.bf16.mxu0 0
        %1408 = vmatpush1.bf16.msra.mxu0 0
        %1409 = vmatprep.subr.bf16.mxu0 0
        %1410 = vmatpush1.bf16.msra.mxu0 0
        %1411 = vmatprep.subr.bf16.mxu0 0
        %1412 = vmatpush1.bf16.msra.mxu0 0
        %1413 = vmatprep.subr.bf16.mxu0 0
        %1414 = vmatpush1.bf16.msra.mxu0 0
        %1415 = vmatprep.subr.bf16.mxu0 0
        %1416 = vmatpush1.bf16.msra.mxu0 0
        %1417 = vmatprep.subr.bf16.mxu0 0
        %1418 = vmatpush1.bf16.msra.mxu0 0
        %1419 = vmatprep.mubr.bf16.mxu0 0
        %1420 = vmatmul.mubr.bf16.gmra.mrb[0].mxu0 %v958
        %v1421 = vpop.f32.mrb[0].mxu0
        %v1422 = vadd.f32 0.0, %v1421
        %v1423 = vpop.f32.mrb[0].mxu0
        %v1424 = vpop.f32.mrb[0].mxu0
        %v1425 = vadd.f32 0.0, %v1424
        %v1426 = vpop.f32.mrb[0].mxu0
        %1427 = vmatprep.mubr.bf16.mxu0 0
        %1428 = vmatmul.mubr.bf16.gmra.mrb[0].mxu0 %v961
        %v1429 = vpop.f32.mrb[0].mxu0
        %v1430 = vadd.f32 0.0, %v1429
        %v1431 = vpop.f32.mrb[0].mxu0
        %v1432 = vpop.f32.mrb[0].mxu0
        %v1433 = vadd.f32 0.0, %v1432
        %v1434 = vpop.f32.mrb[0].mxu0
        %1435 = vdwg.mxu0
        %v1436 = vld [vmem:[%s7 + $0x1] sm:$0x1]
        %v1437 = vlaneseq
        %v1438 = vshrl.u32 %v1437, 7
        %v1439 = vsub.s32 0, %v1438
        %v1440 = vrot.slane %v1436, %v1439
        %v1441 = vadd.f32 %v1422, %v1440
        %v1442 = vadd.f32 %v1425, %v1440
        %v1443 = vadd.f32 %v1430, %v1440
        %v1444 = vadd.f32 %v1433, %v1440
        %vm1445 = vcmp.gt.f32.partialorder %v1441, 30.0
        %vm1446 = vcmp.gt.f32.partialorder %v1442, 30.0
        %vm1447 = vcmp.gt.f32.partialorder %v1443, 30.0
        %vm1448 = vcmp.gt.f32.partialorder %v1444, 30.0
        %v1449 = vmin.f32 %v1441, 30.0
        %v1450 = vmin.f32 %v1442, 30.0
        %v1451 = vmin.f32 %v1443, 30.0
        %v1452 = vmin.f32 %v1444, 30.0
        %v1453 = vmul.f32 %v1449, 1.442695
        %v1454 = vpow.pop %v1453
        %v1455 = vmul.f32 %v1450, 1.442695
        %v1456 = vpow.pop %v1455
        %v1457 = vmul.f32 %v1451, 1.442695
        %v1458 = vpow.pop %v1457
        %v1459 = vmul.f32 %v1452, 1.442695
        %v1460 = vpow.pop %v1459
        %v1461 = vadd.f32 %v1454, 1.0
        %v1462 = vadd.f32 %v1456, 1.0
        %v1463 = vadd.f32 %v1458, 1.0
        %v1464 = vadd.f32 %v1460, 1.0
        %v1465 = vlog2.pop %v1461
        %v1466 = vmul.f32 %v1465, 0.6931472
        %v1467 = vlog2.pop %v1462
        %v1468 = vmul.f32 %v1467, 0.6931472
        %v1469 = vlog2.pop %v1463
        %v1470 = vmul.f32 %v1469, 0.6931472
        %v1471 = vlog2.pop %v1464
        %v1472 = vmul.f32 %v1471, 0.6931472
        %v1473 = vsel %vm1445, %v1441, %v1466
        %v1474 = vsel %vm1446, %v1442, %v1468
        %v1475 = vsel %vm1447, %v1443, %v1470
        %v1476 = vsel %vm1448, %v1444, %v1472
        %v1477 = vmul.f32 %v1473, %v535
        %v1478 = vmul.f32 %v1474, %v536
        %v1479 = vmul.f32 %v1475, %v537
        %v1480 = vmul.f32 %v1476, %v538
        %1485 = vrot.lane.b32.xlu0 %v1477, 64
        %v1486 = vpop.permute.xlu0 %1485
        %1487 = vrot.lane.b32.xlu0 %v1478, 64
        %v1488 = vpop.permute.xlu0 %1487
        %1489 = vrot.lane.b32.xlu0 %v1479, 64
        %v1490 = vpop.permute.xlu0 %1489
        %1491 = vrot.lane.b32.xlu0 %v1480, 64
        %v1492 = vpop.permute.xlu0 %1491
        %v1497 = vsel %vm498, %v1473, %v1486
        %v1498 = vsel %vm498, %v1474, %v1488
        %v1499 = vsel %vm498, %v1475, %v1490
        %v1500 = vsel %vm498, %v1476, %v1492
        %v1501 = vpack.c.bf16 %v1498, %v1497
        %v1502 = vpack.c.bf16 %v1500, %v1499
        %v1503 = vld [vmem:[#allocation6] sm:$0xff]
        %v1504 = vld [vmem:[#allocation6 + $0x8] sm:$0xff]
        %v1505 = vld [vmem:[#allocation6 + $0x10] sm:$0xff]
        %v1506 = vld [vmem:[#allocation6 + $0x18] sm:$0xff]
        %v1507 = vld [vmem:[#allocation6 + $0x20] sm:$0xff]
        %v1508 = vld [vmem:[#allocation6 + $0x28] sm:$0xff]
        %v1509 = vld [vmem:[#allocation6 + $0x30] sm:$0xff]
        %v1510 = vld [vmem:[#allocation6 + $0x38] sm:$0xff]
        %v1511 = vld [vmem:[#allocation6 + $0x40] sm:$0xff]
        %v1512 = vld [vmem:[#allocation6 + $0x48] sm:$0xff]
        %v1513 = vld [vmem:[#allocation6 + $0x50] sm:$0xff]
        %v1514 = vld [vmem:[#allocation6 + $0x58] sm:$0xff]
        %v1515 = vld [vmem:[#allocation6 + $0x60] sm:$0xff]
        %v1516 = vld [vmem:[#allocation6 + $0x68] sm:$0xff]
        %v1517 = vld [vmem:[#allocation6 + $0x70] sm:$0xff]
        %v1518 = vld [vmem:[#allocation6 + $0x78] sm:$0xff]
        %v1519 = vld [vmem:[#allocation6 + $0x80] sm:$0xff]
        %v1520 = vld [vmem:[#allocation6 + $0x88] sm:$0xff]
        %v1521 = vld [vmem:[#allocation6 + $0x90] sm:$0xff]
        %v1522 = vld [vmem:[#allocation6 + $0x98] sm:$0xff]
        %v1523 = vld [vmem:[#allocation6 + $0xa0] sm:$0xff]
        %v1524 = vld [vmem:[#allocation6 + $0xa8] sm:$0xff]
        %v1525 = vld [vmem:[#allocation6 + $0xb0] sm:$0xff]
        %v1526 = vld [vmem:[#allocation6 + $0xb8] sm:$0xff]
        %v1527 = vld [vmem:[#allocation6 + $0xc0] sm:$0xff]
        %v1528 = vld [vmem:[#allocation6 + $0xc8] sm:$0xff]
        %v1529 = vld [vmem:[#allocation6 + $0xd0] sm:$0xff]
        %v1530 = vld [vmem:[#allocation6 + $0xd8] sm:$0xff]
        %v1531 = vld [vmem:[#allocation6 + $0xe0] sm:$0xff]
        %v1532 = vld [vmem:[#allocation6 + $0xe8] sm:$0xff]
        %v1533 = vld [vmem:[#allocation6 + $0xf0] sm:$0xff]
        %v1534 = vld [vmem:[#allocation6 + $0xf8] sm:$0xff]
        %v1535 = vld [vmem:[#allocation6 + $0x100] sm:$0xff]
        %v1536 = vld [vmem:[#allocation6 + $0x108] sm:$0xff]
        %v1537 = vld [vmem:[#allocation6 + $0x110] sm:$0xff]
        %v1538 = vld [vmem:[#allocation6 + $0x118] sm:$0xff]
        %v1539 = vld [vmem:[#allocation6 + $0x120] sm:$0xff]
        %v1540 = vld [vmem:[#allocation6 + $0x128] sm:$0xff]
        %v1541 = vld [vmem:[#allocation6 + $0x130] sm:$0xff]
        %v1542 = vld [vmem:[#allocation6 + $0x138] sm:$0xff]
        %v1543 = vld [vmem:[#allocation6 + $0x140] sm:$0xff]
        %v1544 = vld [vmem:[#allocation6 + $0x148] sm:$0xff]
        %v1545 = vld [vmem:[#allocation6 + $0x150] sm:$0xff]
        %v1546 = vld [vmem:[#allocation6 + $0x158] sm:$0xff]
        %v1547 = vld [vmem:[#allocation6 + $0x160] sm:$0xff]
        %v1548 = vld [vmem:[#allocation6 + $0x168] sm:$0xff]
        %v1549 = vld [vmem:[#allocation6 + $0x170] sm:$0xff]
        %v1550 = vld [vmem:[#allocation6 + $0x178] sm:$0xff]
        %v1551 = vld [vmem:[#allocation6 + $0x180] sm:$0xff]
        %v1552 = vld [vmem:[#allocation6 + $0x188] sm:$0xff]
        %v1553 = vld [vmem:[#allocation6 + $0x190] sm:$0xff]
        %v1554 = vld [vmem:[#allocation6 + $0x198] sm:$0xff]
        %v1555 = vld [vmem:[#allocation6 + $0x1a0] sm:$0xff]
        %v1556 = vld [vmem:[#allocation6 + $0x1a8] sm:$0xff]
        %v1557 = vld [vmem:[#allocation6 + $0x1b0] sm:$0xff]
        %v1558 = vld [vmem:[#allocation6 + $0x1b8] sm:$0xff]
        %v1559 = vld [vmem:[#allocation6 + $0x1c0] sm:$0xff]
        %v1560 = vld [vmem:[#allocation6 + $0x1c8] sm:$0xff]
        %v1561 = vld [vmem:[#allocation6 + $0x1d0] sm:$0xff]
        %v1562 = vld [vmem:[#allocation6 + $0x1d8] sm:$0xff]
        %v1563 = vld [vmem:[#allocation6 + $0x1e0] sm:$0xff]
        %v1564 = vld [vmem:[#allocation6 + $0x1e8] sm:$0xff]
        %v1565 = vld [vmem:[#allocation6 + $0x1f0] sm:$0xff]
        %v1566 = vld [vmem:[#allocation6 + $0x1f8] sm:$0xff]
        %v1567 = vld [vmem:[#allocation6 + $0x200] sm:$0xff]
        %v1568 = vld [vmem:[#allocation6 + $0x208] sm:$0xff]
        %v1569 = vld [vmem:[#allocation6 + $0x210] sm:$0xff]
        %v1570 = vld [vmem:[#allocation6 + $0x218] sm:$0xff]
        %v1571 = vld [vmem:[#allocation6 + $0x220] sm:$0xff]
        %v1572 = vld [vmem:[#allocation6 + $0x228] sm:$0xff]
        %v1573 = vld [vmem:[#allocation6 + $0x230] sm:$0xff]
        %v1574 = vld [vmem:[#allocation6 + $0x238] sm:$0xff]
        %v1575 = vld [vmem:[#allocation6 + $0x240] sm:$0xff]
        %v1576 = vld [vmem:[#allocation6 + $0x248] sm:$0xff]
        %v1577 = vld [vmem:[#allocation6 + $0x250] sm:$0xff]
        %v1578 = vld [vmem:[#allocation6 + $0x258] sm:$0xff]
        %v1579 = vld [vmem:[#allocation6 + $0x260] sm:$0xff]
        %v1580 = vld [vmem:[#allocation6 + $0x268] sm:$0xff]
        %v1581 = vld [vmem:[#allocation6 + $0x270] sm:$0xff]
        %v1582 = vld [vmem:[#allocation6 + $0x278] sm:$0xff]
        %v1583 = vld [vmem:[#allocation6 + $0x280] sm:$0xff]
        %v1584 = vld [vmem:[#allocation6 + $0x288] sm:$0xff]
        %v1585 = vld [vmem:[#allocation6 + $0x290] sm:$0xff]
        %v1586 = vld [vmem:[#allocation6 + $0x298] sm:$0xff]
        %v1587 = vld [vmem:[#allocation6 + $0x2a0] sm:$0xff]
        %v1588 = vld [vmem:[#allocation6 + $0x2a8] sm:$0xff]
        %v1589 = vld [vmem:[#allocation6 + $0x2b0] sm:$0xff]
        %v1590 = vld [vmem:[#allocation6 + $0x2b8] sm:$0xff]
        %v1591 = vld [vmem:[#allocation6 + $0x2c0] sm:$0xff]
        %v1592 = vld [vmem:[#allocation6 + $0x2c8] sm:$0xff]
        %v1593 = vld [vmem:[#allocation6 + $0x2d0] sm:$0xff]
        %v1594 = vld [vmem:[#allocation6 + $0x2d8] sm:$0xff]
        %v1595 = vld [vmem:[#allocation6 + $0x2e0] sm:$0xff]
        %v1596 = vld [vmem:[#allocation6 + $0x2e8] sm:$0xff]
        %v1597 = vld [vmem:[#allocation6 + $0x2f0] sm:$0xff]
        %v1598 = vld [vmem:[#allocation6 + $0x2f8] sm:$0xff]
        %v1599 = vld [vmem:[#allocation6 + $0x300] sm:$0xff]
        %v1600 = vld [vmem:[#allocation6 + $0x308] sm:$0xff]
        %v1601 = vld [vmem:[#allocation6 + $0x310] sm:$0xff]
        %v1602 = vld [vmem:[#allocation6 + $0x318] sm:$0xff]
        %v1603 = vld [vmem:[#allocation6 + $0x320] sm:$0xff]
        %v1604 = vld [vmem:[#allocation6 + $0x328] sm:$0xff]
        %v1605 = vld [vmem:[#allocation6 + $0x330] sm:$0xff]
        %v1606 = vld [vmem:[#allocation6 + $0x338] sm:$0xff]
        %v1607 = vld [vmem:[#allocation6 + $0x340] sm:$0xff]
        %v1608 = vld [vmem:[#allocation6 + $0x348] sm:$0xff]
        %v1609 = vld [vmem:[#allocation6 + $0x350] sm:$0xff]
        %v1610 = vld [vmem:[#allocation6 + $0x358] sm:$0xff]
        %v1611 = vld [vmem:[#allocation6 + $0x360] sm:$0xff]
        %v1612 = vld [vmem:[#allocation6 + $0x368] sm:$0xff]
        %v1613 = vld [vmem:[#allocation6 + $0x370] sm:$0xff]
        %v1614 = vld [vmem:[#allocation6 + $0x378] sm:$0xff]
        %v1615 = vld [vmem:[#allocation6 + $0x380] sm:$0xff]
        %v1616 = vld [vmem:[#allocation6 + $0x388] sm:$0xff]
        %v1617 = vld [vmem:[#allocation6 + $0x390] sm:$0xff]
        %v1618 = vld [vmem:[#allocation6 + $0x398] sm:$0xff]
        %v1619 = vld [vmem:[#allocation6 + $0x3a0] sm:$0xff]
        %v1620 = vld [vmem:[#allocation6 + $0x3a8] sm:$0xff]
        %v1621 = vld [vmem:[#allocation6 + $0x3b0] sm:$0xff]
        %v1622 = vld [vmem:[#allocation6 + $0x3b8] sm:$0xff]
        %v1623 = vld [vmem:[#allocation6 + $0x3c0] sm:$0xff]
        %v1624 = vld [vmem:[#allocation6 + $0x3c8] sm:$0xff]
        %v1625 = vld [vmem:[#allocation6 + $0x3d0] sm:$0xff]
        %v1626 = vld [vmem:[#allocation6 + $0x3d8] sm:$0xff]
        %v1627 = vld [vmem:[#allocation6 + $0x3e0] sm:$0xff]
        %v1628 = vld [vmem:[#allocation6 + $0x3e8] sm:$0xff]
        %v1629 = vld [vmem:[#allocation6 + $0x3f0] sm:$0xff]
        %v1630 = vld [vmem:[#allocation6 + $0x3f8] sm:$0xff]
        %v1759 = vunpack.c.l.b16 %v1503
        %v1760 = vunpack.c.h.b16 %v1503
        %v1761 = vunpack.c.l.b16 %v1504
        %v1762 = vunpack.c.h.b16 %v1504
        %v1763 = vunpack.c.l.b16 %v1505
        %v1764 = vunpack.c.h.b16 %v1505
        %v1765 = vunpack.c.l.b16 %v1506
        %v1766 = vunpack.c.h.b16 %v1506
        %v1767 = vunpack.c.l.b16 %v1507
        %v1768 = vunpack.c.h.b16 %v1507
        %v1769 = vunpack.c.l.b16 %v1508
        %v1770 = vunpack.c.h.b16 %v1508
        %v1771 = vunpack.c.l.b16 %v1509
        %v1772 = vunpack.c.h.b16 %v1509
        %v1773 = vunpack.c.l.b16 %v1510
        %v1774 = vunpack.c.h.b16 %v1510
        %v1775 = vunpack.c.l.b16 %v1511
        %v1776 = vunpack.c.h.b16 %v1511
        %v1777 = vunpack.c.l.b16 %v1512
        %v1778 = vunpack.c.h.b16 %v1512
        %v1779 = vunpack.c.l.b16 %v1513
        %v1780 = vunpack.c.h.b16 %v1513
        %v1781 = vunpack.c.l.b16 %v1514
        %v1782 = vunpack.c.h.b16 %v1514
        %v1783 = vunpack.c.l.b16 %v1515
        %v1784 = vunpack.c.h.b16 %v1515
        %v1785 = vunpack.c.l.b16 %v1516
        %v1786 = vunpack.c.h.b16 %v1516
        %v1787 = vunpack.c.l.b16 %v1517
        %v1788 = vunpack.c.h.b16 %v1517
        %v1789 = vunpack.c.l.b16 %v1518
        %v1790 = vunpack.c.h.b16 %v1518
        %v1791 = vunpack.c.l.b16 %v1519
        %v1792 = vunpack.c.h.b16 %v1519
        %v1793 = vunpack.c.l.b16 %v1520
        %v1794 = vunpack.c.h.b16 %v1520
        %v1795 = vunpack.c.l.b16 %v1521
        %v1796 = vunpack.c.h.b16 %v1521
        %v1797 = vunpack.c.l.b16 %v1522
        %v1798 = vunpack.c.h.b16 %v1522
        %v1799 = vunpack.c.l.b16 %v1523
        %v1800 = vunpack.c.h.b16 %v1523
        %v1801 = vunpack.c.l.b16 %v1524
        %v1802 = vunpack.c.h.b16 %v1524
        %v1803 = vunpack.c.l.b16 %v1525
        %v1804 = vunpack.c.h.b16 %v1525
        %v1805 = vunpack.c.l.b16 %v1526
        %v1806 = vunpack.c.h.b16 %v1526
        %v1807 = vunpack.c.l.b16 %v1527
        %v1808 = vunpack.c.h.b16 %v1527
        %v1809 = vunpack.c.l.b16 %v1528
        %v1810 = vunpack.c.h.b16 %v1528
        %v1811 = vunpack.c.l.b16 %v1529
        %v1812 = vunpack.c.h.b16 %v1529
        %v1813 = vunpack.c.l.b16 %v1530
        %v1814 = vunpack.c.h.b16 %v1530
        %v1815 = vunpack.c.l.b16 %v1531
        %v1816 = vunpack.c.h.b16 %v1531
        %v1817 = vunpack.c.l.b16 %v1532
        %v1818 = vunpack.c.h.b16 %v1532
        %v1819 = vunpack.c.l.b16 %v1533
        %v1820 = vunpack.c.h.b16 %v1533
        %v1821 = vunpack.c.l.b16 %v1534
        %v1822 = vunpack.c.h.b16 %v1534
        %v1823 = vunpack.c.l.b16 %v1535
        %v1824 = vunpack.c.h.b16 %v1535
        %v1825 = vunpack.c.l.b16 %v1536
        %v1826 = vunpack.c.h.b16 %v1536
        %v1827 = vunpack.c.l.b16 %v1537
        %v1828 = vunpack.c.h.b16 %v1537
        %v1829 = vunpack.c.l.b16 %v1538
        %v1830 = vunpack.c.h.b16 %v1538
        %v1831 = vunpack.c.l.b16 %v1539
        %v1832 = vunpack.c.h.b16 %v1539
        %v1833 = vunpack.c.l.b16 %v1540
        %v1834 = vunpack.c.h.b16 %v1540
        %v1835 = vunpack.c.l.b16 %v1541
        %v1836 = vunpack.c.h.b16 %v1541
        %v1837 = vunpack.c.l.b16 %v1542
        %v1838 = vunpack.c.h.b16 %v1542
        %v1839 = vunpack.c.l.b16 %v1543
        %v1840 = vunpack.c.h.b16 %v1543
        %v1841 = vunpack.c.l.b16 %v1544
        %v1842 = vunpack.c.h.b16 %v1544
        %v1843 = vunpack.c.l.b16 %v1545
        %v1844 = vunpack.c.h.b16 %v1545
        %v1845 = vunpack.c.l.b16 %v1546
        %v1846 = vunpack.c.h.b16 %v1546
        %v1847 = vunpack.c.l.b16 %v1547
        %v1848 = vunpack.c.h.b16 %v1547
        %v1849 = vunpack.c.l.b16 %v1548
        %v1850 = vunpack.c.h.b16 %v1548
        %v1851 = vunpack.c.l.b16 %v1549
        %v1852 = vunpack.c.h.b16 %v1549
        %v1853 = vunpack.c.l.b16 %v1550
        %v1854 = vunpack.c.h.b16 %v1550
        %v1855 = vunpack.c.l.b16 %v1551
        %v1856 = vunpack.c.h.b16 %v1551
        %v1857 = vunpack.c.l.b16 %v1552
        %v1858 = vunpack.c.h.b16 %v1552
        %v1859 = vunpack.c.l.b16 %v1553
        %v1860 = vunpack.c.h.b16 %v1553
        %v1861 = vunpack.c.l.b16 %v1554
        %v1862 = vunpack.c.h.b16 %v1554
        %v1863 = vunpack.c.l.b16 %v1555
        %v1864 = vunpack.c.h.b16 %v1555
        %v1865 = vunpack.c.l.b16 %v1556
        %v1866 = vunpack.c.h.b16 %v1556
        %v1867 = vunpack.c.l.b16 %v1557
        %v1868 = vunpack.c.h.b16 %v1557
        %v1869 = vunpack.c.l.b16 %v1558
        %v1870 = vunpack.c.h.b16 %v1558
        %v1871 = vunpack.c.l.b16 %v1559
        %v1872 = vunpack.c.h.b16 %v1559
        %v1873 = vunpack.c.l.b16 %v1560
        %v1874 = vunpack.c.h.b16 %v1560
        %v1875 = vunpack.c.l.b16 %v1561
        %v1876 = vunpack.c.h.b16 %v1561
        %v1877 = vunpack.c.l.b16 %v1562
        %v1878 = vunpack.c.h.b16 %v1562
        %v1879 = vunpack.c.l.b16 %v1563
        %v1880 = vunpack.c.h.b16 %v1563
        %v1881 = vunpack.c.l.b16 %v1564
        %v1882 = vunpack.c.h.b16 %v1564
        %v1883 = vunpack.c.l.b16 %v1565
        %v1884 = vunpack.c.h.b16 %v1565
        %v1885 = vunpack.c.l.b16 %v1566
        %v1886 = vunpack.c.h.b16 %v1566
        %v1887 = vunpack.c.l.b16 %v1567
        %v1888 = vunpack.c.h.b16 %v1567
        %v1889 = vunpack.c.l.b16 %v1568
        %v1890 = vunpack.c.h.b16 %v1568
        %v1891 = vunpack.c.l.b16 %v1569
        %v1892 = vunpack.c.h.b16 %v1569
        %v1893 = vunpack.c.l.b16 %v1570
        %v1894 = vunpack.c.h.b16 %v1570
        %v1895 = vunpack.c.l.b16 %v1571
        %v1896 = vunpack.c.h.b16 %v1571
        %v1897 = vunpack.c.l.b16 %v1572
        %v1898 = vunpack.c.h.b16 %v1572
        %v1899 = vunpack.c.l.b16 %v1573
        %v1900 = vunpack.c.h.b16 %v1573
        %v1901 = vunpack.c.l.b16 %v1574
        %v1902 = vunpack.c.h.b16 %v1574
        %v1903 = vunpack.c.l.b16 %v1575
        %v1904 = vunpack.c.h.b16 %v1575
        %v1905 = vunpack.c.l.b16 %v1576
        %v1906 = vunpack.c.h.b16 %v1576
        %v1907 = vunpack.c.l.b16 %v1577
        %v1908 = vunpack.c.h.b16 %v1577
        %v1909 = vunpack.c.l.b16 %v1578
        %v1910 = vunpack.c.h.b16 %v1578
        %v1911 = vunpack.c.l.b16 %v1579
        %v1912 = vunpack.c.h.b16 %v1579
        %v1913 = vunpack.c.l.b16 %v1580
        %v1914 = vunpack.c.h.b16 %v1580
        %v1915 = vunpack.c.l.b16 %v1581
        %v1916 = vunpack.c.h.b16 %v1581
        %v1917 = vunpack.c.l.b16 %v1582
        %v1918 = vunpack.c.h.b16 %v1582
        %v1919 = vunpack.c.l.b16 %v1583
        %v1920 = vunpack.c.h.b16 %v1583
        %v1921 = vunpack.c.l.b16 %v1584
        %v1922 = vunpack.c.h.b16 %v1584
        %v1923 = vunpack.c.l.b16 %v1585
        %v1924 = vunpack.c.h.b16 %v1585
        %v1925 = vunpack.c.l.b16 %v1586
        %v1926 = vunpack.c.h.b16 %v1586
        %v1927 = vunpack.c.l.b16 %v1587
        %v1928 = vunpack.c.h.b16 %v1587
        %v1929 = vunpack.c.l.b16 %v1588
        %v1930 = vunpack.c.h.b16 %v1588
        %v1931 = vunpack.c.l.b16 %v1589
        %v1932 = vunpack.c.h.b16 %v1589
        %v1933 = vunpack.c.l.b16 %v1590
        %v1934 = vunpack.c.h.b16 %v1590
        %v1935 = vunpack.c.l.b16 %v1591
        %v1936 = vunpack.c.h.b16 %v1591
        %v1937 = vunpack.c.l.b16 %v1592
        %v1938 = vunpack.c.h.b16 %v1592
        %v1939 = vunpack.c.l.b16 %v1593
        %v1940 = vunpack.c.h.b16 %v1593
        %v1941 = vunpack.c.l.b16 %v1594
        %v1942 = vunpack.c.h.b16 %v1594
        %v1943 = vunpack.c.l.b16 %v1595
        %v1944 = vunpack.c.h.b16 %v1595
        %v1945 = vunpack.c.l.b16 %v1596
        %v1946 = vunpack.c.h.b16 %v1596
        %v1947 = vunpack.c.l.b16 %v1597
        %v1948 = vunpack.c.h.b16 %v1597
        %v1949 = vunpack.c.l.b16 %v1598
        %v1950 = vunpack.c.h.b16 %v1598
        %v1951 = vunpack.c.l.b16 %v1599
        %v1952 = vunpack.c.h.b16 %v1599
        %v1953 = vunpack.c.l.b16 %v1600
        %v1954 = vunpack.c.h.b16 %v1600
        %v1955 = vunpack.c.l.b16 %v1601
        %v1956 = vunpack.c.h.b16 %v1601
        %v1957 = vunpack.c.l.b16 %v1602
        %v1958 = vunpack.c.h.b16 %v1602
        %v1959 = vunpack.c.l.b16 %v1603
        %v1960 = vunpack.c.h.b16 %v1603
        %v1961 = vunpack.c.l.b16 %v1604
        %v1962 = vunpack.c.h.b16 %v1604
        %v1963 = vunpack.c.l.b16 %v1605
        %v1964 = vunpack.c.h.b16 %v1605
        %v1965 = vunpack.c.l.b16 %v1606
        %v1966 = vunpack.c.h.b16 %v1606
        %v1967 = vunpack.c.l.b16 %v1607
        %v1968 = vunpack.c.h.b16 %v1607
        %v1969 = vunpack.c.l.b16 %v1608
        %v1970 = vunpack.c.h.b16 %v1608
        %v1971 = vunpack.c.l.b16 %v1609
        %v1972 = vunpack.c.h.b16 %v1609
        %v1973 = vunpack.c.l.b16 %v1610
        %v1974 = vunpack.c.h.b16 %v1610
        %v1975 = vunpack.c.l.b16 %v1611
        %v1976 = vunpack.c.h.b16 %v1611
        %v1977 = vunpack.c.l.b16 %v1612
        %v1978 = vunpack.c.h.b16 %v1612
        %v1979 = vunpack.c.l.b16 %v1613
        %v1980 = vunpack.c.h.b16 %v1613
        %v1981 = vunpack.c.l.b16 %v1614
        %v1982 = vunpack.c.h.b16 %v1614
        %v1983 = vunpack.c.l.b16 %v1615
        %v1984 = vunpack.c.h.b16 %v1615
        %v1985 = vunpack.c.l.b16 %v1616
        %v1986 = vunpack.c.h.b16 %v1616
        %v1987 = vunpack.c.l.b16 %v1617
        %v1988 = vunpack.c.h.b16 %v1617
        %v1989 = vunpack.c.l.b16 %v1618
        %v1990 = vunpack.c.h.b16 %v1618
        %v1991 = vunpack.c.l.b16 %v1619
        %v1992 = vunpack.c.h.b16 %v1619
        %v1993 = vunpack.c.l.b16 %v1620
        %v1994 = vunpack.c.h.b16 %v1620
        %v1995 = vunpack.c.l.b16 %v1621
        %v1996 = vunpack.c.h.b16 %v1621
        %v1997 = vunpack.c.l.b16 %v1622
        %v1998 = vunpack.c.h.b16 %v1622
        %v1999 = vunpack.c.l.b16 %v1623
        %v2000 = vunpack.c.h.b16 %v1623
        %v2001 = vunpack.c.l.b16 %v1624
        %v2002 = vunpack.c.h.b16 %v1624
        %v2003 = vunpack.c.l.b16 %v1625
        %v2004 = vunpack.c.h.b16 %v1625
        %v2005 = vunpack.c.l.b16 %v1626
        %v2006 = vunpack.c.h.b16 %v1626
        %v2007 = vunpack.c.l.b16 %v1627
        %v2008 = vunpack.c.h.b16 %v1627
        %v2009 = vunpack.c.l.b16 %v1628
        %v2010 = vunpack.c.h.b16 %v1628
        %v2011 = vunpack.c.l.b16 %v1629
        %v2012 = vunpack.c.h.b16 %v1629
        %v2013 = vunpack.c.l.b16 %v1630
        %v2014 = vunpack.c.h.b16 %v1630
        %v2015 = vpack.c.b16 %v1775, %v1759
        %v2016 = vpack.c.b16 %v1776, %v1760
        %v2017 = vpack.c.b16 %v1777, %v1761
        %v2018 = vpack.c.b16 %v1778, %v1762
        %v2019 = vpack.c.b16 %v1779, %v1763
        %v2020 = vpack.c.b16 %v1780, %v1764
        %v2021 = vpack.c.b16 %v1781, %v1765
        %v2022 = vpack.c.b16 %v1782, %v1766
        %v2023 = vpack.c.b16 %v1783, %v1767
        %v2024 = vpack.c.b16 %v1784, %v1768
        %v2025 = vpack.c.b16 %v1785, %v1769
        %v2026 = vpack.c.b16 %v1786, %v1770
        %v2027 = vpack.c.b16 %v1787, %v1771
        %v2028 = vpack.c.b16 %v1788, %v1772
        %v2029 = vpack.c.b16 %v1789, %v1773
        %v2030 = vpack.c.b16 %v1790, %v1774
        %v2031 = vpack.c.b16 %v1807, %v1791
        %v2032 = vpack.c.b16 %v1808, %v1792
        %v2033 = vpack.c.b16 %v1809, %v1793
        %v2034 = vpack.c.b16 %v1810, %v1794
        %v2035 = vpack.c.b16 %v1811, %v1795
        %v2036 = vpack.c.b16 %v1812, %v1796
        %v2037 = vpack.c.b16 %v1813, %v1797
        %v2038 = vpack.c.b16 %v1814, %v1798
        %v2039 = vpack.c.b16 %v1815, %v1799
        %v2040 = vpack.c.b16 %v1816, %v1800
        %v2041 = vpack.c.b16 %v1817, %v1801
        %v2042 = vpack.c.b16 %v1818, %v1802
        %v2043 = vpack.c.b16 %v1819, %v1803
        %v2044 = vpack.c.b16 %v1820, %v1804
        %v2045 = vpack.c.b16 %v1821, %v1805
        %v2046 = vpack.c.b16 %v1822, %v1806
        %v2047 = vpack.c.b16 %v1839, %v1823
        %v2048 = vpack.c.b16 %v1840, %v1824
        %v2049 = vpack.c.b16 %v1841, %v1825
        %v2050 = vpack.c.b16 %v1842, %v1826
        %v2051 = vpack.c.b16 %v1843, %v1827
        %v2052 = vpack.c.b16 %v1844, %v1828
        %v2053 = vpack.c.b16 %v1845, %v1829
        %v2054 = vpack.c.b16 %v1846, %v1830
        %v2055 = vpack.c.b16 %v1847, %v1831
        %v2056 = vpack.c.b16 %v1848, %v1832
        %v2057 = vpack.c.b16 %v1849, %v1833
        %v2058 = vpack.c.b16 %v1850, %v1834
        %v2059 = vpack.c.b16 %v1851, %v1835
        %v2060 = vpack.c.b16 %v1852, %v1836
        %v2061 = vpack.c.b16 %v1853, %v1837
        %v2062 = vpack.c.b16 %v1854, %v1838
        %v2063 = vpack.c.b16 %v1871, %v1855
        %v2064 = vpack.c.b16 %v1872, %v1856
        %v2065 = vpack.c.b16 %v1873, %v1857
        %v2066 = vpack.c.b16 %v1874, %v1858
        %v2067 = vpack.c.b16 %v1875, %v1859
        %v2068 = vpack.c.b16 %v1876, %v1860
        %v2069 = vpack.c.b16 %v1877, %v1861
        %v2070 = vpack.c.b16 %v1878, %v1862
        %v2071 = vpack.c.b16 %v1879, %v1863
        %v2072 = vpack.c.b16 %v1880, %v1864
        %v2073 = vpack.c.b16 %v1881, %v1865
        %v2074 = vpack.c.b16 %v1882, %v1866
        %v2075 = vpack.c.b16 %v1883, %v1867
        %v2076 = vpack.c.b16 %v1884, %v1868
        %v2077 = vpack.c.b16 %v1885, %v1869
        %v2078 = vpack.c.b16 %v1886, %v1870
        %v2079 = vpack.c.b16 %v1903, %v1887
        %v2080 = vpack.c.b16 %v1904, %v1888
        %v2081 = vpack.c.b16 %v1905, %v1889
        %v2082 = vpack.c.b16 %v1906, %v1890
        %v2083 = vpack.c.b16 %v1907, %v1891
        %v2084 = vpack.c.b16 %v1908, %v1892
        %v2085 = vpack.c.b16 %v1909, %v1893
        %v2086 = vpack.c.b16 %v1910, %v1894
        %v2087 = vpack.c.b16 %v1911, %v1895
        %v2088 = vpack.c.b16 %v1912, %v1896
        %v2089 = vpack.c.b16 %v1913, %v1897
        %v2090 = vpack.c.b16 %v1914, %v1898
        %v2091 = vpack.c.b16 %v1915, %v1899
        %v2092 = vpack.c.b16 %v1916, %v1900
        %v2093 = vpack.c.b16 %v1917, %v1901
        %v2094 = vpack.c.b16 %v1918, %v1902
        %v2095 = vpack.c.b16 %v1935, %v1919
        %v2096 = vpack.c.b16 %v1936, %v1920
        %v2097 = vpack.c.b16 %v1937, %v1921
        %v2098 = vpack.c.b16 %v1938, %v1922
        %v2099 = vpack.c.b16 %v1939, %v1923
        %v2100 = vpack.c.b16 %v1940, %v1924
        %v2101 = vpack.c.b16 %v1941, %v1925
        %v2102 = vpack.c.b16 %v1942, %v1926
        %v2103 = vpack.c.b16 %v1943, %v1927
        %v2104 = vpack.c.b16 %v1944, %v1928
        %v2105 = vpack.c.b16 %v1945, %v1929
        %v2106 = vpack.c.b16 %v1946, %v1930
        %v2107 = vpack.c.b16 %v1947, %v1931
        %v2108 = vpack.c.b16 %v1948, %v1932
        %v2109 = vpack.c.b16 %v1949, %v1933
        %v2110 = vpack.c.b16 %v1950, %v1934
        %v2111 = vpack.c.b16 %v1967, %v1951
        %v2112 = vpack.c.b16 %v1968, %v1952
        %v2113 = vpack.c.b16 %v1969, %v1953
        %v2114 = vpack.c.b16 %v1970, %v1954
        %v2115 = vpack.c.b16 %v1971, %v1955
        %v2116 = vpack.c.b16 %v1972, %v1956
        %v2117 = vpack.c.b16 %v1973, %v1957
        %v2118 = vpack.c.b16 %v1974, %v1958
        %v2119 = vpack.c.b16 %v1975, %v1959
        %v2120 = vpack.c.b16 %v1976, %v1960
        %v2121 = vpack.c.b16 %v1977, %v1961
        %v2122 = vpack.c.b16 %v1978, %v1962
        %v2123 = vpack.c.b16 %v1979, %v1963
        %v2124 = vpack.c.b16 %v1980, %v1964
        %v2125 = vpack.c.b16 %v1981, %v1965
        %v2126 = vpack.c.b16 %v1982, %v1966
        %v2127 = vpack.c.b16 %v1999, %v1983
        %v2128 = vpack.c.b16 %v2000, %v1984
        %v2129 = vpack.c.b16 %v2001, %v1985
        %v2130 = vpack.c.b16 %v2002, %v1986
        %v2131 = vpack.c.b16 %v2003, %v1987
        %v2132 = vpack.c.b16 %v2004, %v1988
        %v2133 = vpack.c.b16 %v2005, %v1989
        %v2134 = vpack.c.b16 %v2006, %v1990
        %v2135 = vpack.c.b16 %v2007, %v1991
        %v2136 = vpack.c.b16 %v2008, %v1992
        %v2137 = vpack.c.b16 %v2009, %v1993
        %v2138 = vpack.c.b16 %v2010, %v1994
        %v2139 = vpack.c.b16 %v2011, %v1995
        %v2140 = vpack.c.b16 %v2012, %v1996
        %v2141 = vpack.c.b16 %v2013, %v1997
        %v2142 = vpack.c.b16 %v2014, %v1998
        %2271 = vmatprep.subr.bf16.mxu0 %v2016
        %2272 = vmatpush1.bf16.msra.mxu0 %v2015
        %2273 = vmatprep.subr.bf16.mxu0 %v2032
        %2274 = vmatpush1.bf16.msra.mxu0 %v2031
        %2275 = vmatprep.subr.bf16.mxu0 %v2048
        %2276 = vmatpush1.bf16.msra.mxu0 %v2047
        %2277 = vmatprep.subr.bf16.mxu0 %v2064
        %2278 = vmatpush1.bf16.msra.mxu0 %v2063
        %2279 = vmatprep.subr.bf16.mxu0 %v2080
        %2280 = vmatpush1.bf16.msra.mxu0 %v2079
        %2281 = vmatprep.subr.bf16.mxu0 %v2096
        %2282 = vmatpush1.bf16.msra.mxu0 %v2095
        %2283 = vmatprep.subr.bf16.mxu0 %v2112
        %2284 = vmatpush1.bf16.msra.mxu0 %v2111
        %2285 = vmatprep.subr.bf16.mxu0 %v2128
        %2286 = vmatpush1.bf16.msra.mxu0 %v2127
        %2287 = vmatprep.subr.bf16.mxu0 0
        %2288 = vmatpush1.bf16.msra.mxu0 0
        %2289 = vmatprep.subr.bf16.mxu0 0
        %2290 = vmatpush1.bf16.msra.mxu0 0
        %2291 = vmatprep.subr.bf16.mxu0 0
        %2292 = vmatpush1.bf16.msra.mxu0 0
        %2293 = vmatprep.subr.bf16.mxu0 0
        %2294 = vmatpush1.bf16.msra.mxu0 0
        %2295 = vmatprep.subr.bf16.mxu0 0
        %2296 = vmatpush1.bf16.msra.mxu0 0
        %2297 = vmatprep.subr.bf16.mxu0 0
        %2298 = vmatpush1.bf16.msra.mxu0 0
        %2299 = vmatprep.subr.bf16.mxu0 0
        %2300 = vmatpush1.bf16.msra.mxu0 0
        %2301 = vmatprep.subr.bf16.mxu0 0
        %2302 = vmatpush1.bf16.msra.mxu0 0
        %2303 = vmatprep.mubr.bf16.mxu0 0
        %2304 = vmatmul.mubr.bf16.gmra.mrb[0].mxu0 %v1501
        %v2305 = vpop.f32.mrb[0].mxu0
        %v2306 = vadd.f32 0.0, %v2305
        %v2307 = vpop.f32.mrb[0].mxu0
        %v2308 = vadd.f32 0.0, %v2307
        %v2309 = vpop.f32.mrb[0].mxu0
        %v2310 = vadd.f32 0.0, %v2309
        %v2311 = vpop.f32.mrb[0].mxu0
        %v2312 = vadd.f32 0.0, %v2311
        %2313 = vmatprep.mubr.bf16.mxu0 0
        %2314 = vmatmul.mubr.bf16.gmra.mrb[0].mxu0 %v1502
        %v2315 = vpop.f32.mrb[0].mxu0
        %v2316 = vadd.f32 0.0, %v2315
        %v2317 = vpop.f32.mrb[0].mxu0
        %v2318 = vadd.f32 0.0, %v2317
        %v2319 = vpop.f32.mrb[0].mxu0
        %v2320 = vadd.f32 0.0, %v2319
        %v2321 = vpop.f32.mrb[0].mxu0
        %v2322 = vadd.f32 0.0, %v2321
        %2323 = vdwg.mxu0
        %2324 = vmatprep.subr.bf16.mxu0 %v2018
        %2325 = vmatpush1.bf16.msra.mxu0 %v2017
        %2326 = vmatprep.subr.bf16.mxu0 %v2034
        %2327 = vmatpush1.bf16.msra.mxu0 %v2033
        %2328 = vmatprep.subr.bf16.mxu0 %v2050
        %2329 = vmatpush1.bf16.msra.mxu0 %v2049
        %2330 = vmatprep.subr.bf16.mxu0 %v2066
        %2331 = vmatpush1.bf16.msra.mxu0 %v2065
        %2332 = vmatprep.subr.bf16.mxu0 %v2082
        %2333 = vmatpush1.bf16.msra.mxu0 %v2081
        %2334 = vmatprep.subr.bf16.mxu0 %v2098
        %2335 = vmatpush1.bf16.msra.mxu0 %v2097
        %2336 = vmatprep.subr.bf16.mxu0 %v2114
        %2337 = vmatpush1.bf16.msra.mxu0 %v2113
        %2338 = vmatprep.subr.bf16.mxu0 %v2130
        %2339 = vmatpush1.bf16.msra.mxu0 %v2129
        %2340 = vmatprep.subr.bf16.mxu0 0
        %2341 = vmatpush1.bf16.msra.mxu0 0
        %2342 = vmatprep.subr.bf16.mxu0 0
        %2343 = vmatpush1.bf16.msra.mxu0 0
        %2344 = vmatprep.subr.bf16.mxu0 0
        %2345 = vmatpush1.bf16.msra.mxu0 0
        %2346 = vmatprep.subr.bf16.mxu0 0
        %2347 = vmatpush1.bf16.msra.mxu0 0
        %2348 = vmatprep.subr.bf16.mxu0 0
        %2349 = vmatpush1.bf16.msra.mxu0 0
        %2350 = vmatprep.subr.bf16.mxu0 0
        %2351 = vmatpush1.bf16.msra.mxu0 0
        %2352 = vmatprep.subr.bf16.mxu0 0
        %2353 = vmatpush1.bf16.msra.mxu0 0
        %2354 = vmatprep.subr.bf16.mxu0 0
        %2355 = vmatpush1.bf16.msra.mxu0 0
        %2356 = vmatprep.mubr.bf16.mxu0 0
        %2357 = vmatmul.mubr.bf16.gmra.mrb[0].mxu0 %v1501
        %v2358 = vpop.f32.mrb[0].mxu0
        %v2359 = vadd.f32 0.0, %v2358
        %v2360 = vpop.f32.mrb[0].mxu0
        %v2361 = vadd.f32 0.0, %v2360
        %v2362 = vpop.f32.mrb[0].mxu0
        %v2363 = vadd.f32 0.0, %v2362
        %v2364 = vpop.f32.mrb[0].mxu0
        %v2365 = vadd.f32 0.0, %v2364
        %2366 = vmatprep.mubr.bf16.mxu0 0
        %2367 = vmatmul.mubr.bf16.gmra.mrb[0].mxu0 %v1502
        %v2368 = vpop.f32.mrb[0].mxu0
        %v2369 = vadd.f32 0.0, %v2368
        %v2370 = vpop.f32.mrb[0].mxu0
        %v2371 = vadd.f32 0.0, %v2370
        %v2372 = vpop.f32.mrb[0].mxu0
        %v2373 = vadd.f32 0.0, %v2372
        %v2374 = vpop.f32.mrb[0].mxu0
        %v2375 = vadd.f32 0.0, %v2374
        %2376 = vdwg.mxu0
        %2377 = vmatprep.subr.bf16.mxu0 %v2020
        %2378 = vmatpush1.bf16.msra.mxu0 %v2019
        %2379 = vmatprep.subr.bf16.mxu0 %v2036
        %2380 = vmatpush1.bf16.msra.mxu0 %v2035
        %2381 = vmatprep.subr.bf16.mxu0 %v2052
        %2382 = vmatpush1.bf16.msra.mxu0 %v2051
        %2383 = vmatprep.subr.bf16.mxu0 %v2068
        %2384 = vmatpush1.bf16.msra.mxu0 %v2067
        %2385 = vmatprep.subr.bf16.mxu0 %v2084
        %2386 = vmatpush1.bf16.msra.mxu0 %v2083
        %2387 = vmatprep.subr.bf16.mxu0 %v2100
        %2388 = vmatpush1.bf16.msra.mxu0 %v2099
        %2389 = vmatprep.subr.bf16.mxu0 %v2116
        %2390 = vmatpush1.bf16.msra.mxu0 %v2115
        %2391 = vmatprep.subr.bf16.mxu0 %v2132
        %2392 = vmatpush1.bf16.msra.mxu0 %v2131
        %2393 = vmatprep.subr.bf16.mxu0 0
        %2394 = vmatpush1.bf16.msra.mxu0 0
        %2395 = vmatprep.subr.bf16.mxu0 0
        %2396 = vmatpush1.bf16.msra.mxu0 0
        %2397 = vmatprep.subr.bf16.mxu0 0
        %2398 = vmatpush1.bf16.msra.mxu0 0
        %2399 = vmatprep.subr.bf16.mxu0 0
        %2400 = vmatpush1.bf16.msra.mxu0 0
        %2401 = vmatprep.subr.bf16.mxu0 0
        %2402 = vmatpush1.bf16.msra.mxu0 0
        %2403 = vmatprep.subr.bf16.mxu0 0
        %2404 = vmatpush1.bf16.msra.mxu0 0
        %2405 = vmatprep.subr.bf16.mxu0 0
        %2406 = vmatpush1.bf16.msra.mxu0 0
        %2407 = vmatprep.subr.bf16.mxu0 0
        %2408 = vmatpush1.bf16.msra.mxu0 0
        %2409 = vmatprep.mubr.bf16.mxu0 0
        %2410 = vmatmul.mubr.bf16.gmra.mrb[0].mxu0 %v1501
        %v2411 = vpop.f32.mrb[0].mxu0
        %v2412 = vadd.f32 0.0, %v2411
        %v2413 = vpop.f32.mrb[0].mxu0
        %v2414 = vadd.f32 0.0, %v2413
        %v2415 = vpop.f32.mrb[0].mxu0
        %v2416 = vadd.f32 0.0, %v2415
        %v2417 = vpop.f32.mrb[0].mxu0
        %v2418 = vadd.f32 0.0, %v2417
        %2419 = vmatprep.mubr.bf16.mxu0 0
        %2420 = vmatmul.mubr.bf16.gmra.mrb[0].mxu0 %v1502
        %v2421 = vpop.f32.mrb[0].mxu0
        %v2422 = vadd.f32 0.0, %v2421
        %v2423 = vpop.f32.mrb[0].mxu0
        %v2424 = vadd.f32 0.0, %v2423
        %v2425 = vpop.f32.mrb[0].mxu0
        %v2426 = vadd.f32 0.0, %v2425
        %v2427 = vpop.f32.mrb[0].mxu0
        %v2428 = vadd.f32 0.0, %v2427
        %2429 = vdwg.mxu0
        %2430 = vmatprep.subr.bf16.mxu0 %v2022
        %2431 = vmatpush1.bf16.msra.mxu0 %v2021
        %2432 = vmatprep.subr.bf16.mxu0 %v2038
        %2433 = vmatpush1.bf16.msra.mxu0 %v2037
        %2434 = vmatprep.subr.bf16.mxu0 %v2054
        %2435 = vmatpush1.bf16.msra.mxu0 %v2053
        %2436 = vmatprep.subr.bf16.mxu0 %v2070
        %2437 = vmatpush1.bf16.msra.mxu0 %v2069
        %2438 = vmatprep.subr.bf16.mxu0 %v2086
        %2439 = vmatpush1.bf16.msra.mxu0 %v2085
        %2440 = vmatprep.subr.bf16.mxu0 %v2102
        %2441 = vmatpush1.bf16.msra.mxu0 %v2101
        %2442 = vmatprep.subr.bf16.mxu0 %v2118
        %2443 = vmatpush1.bf16.msra.mxu0 %v2117
        %2444 = vmatprep.subr.bf16.mxu0 %v2134
        %2445 = vmatpush1.bf16.msra.mxu0 %v2133
        %2446 = vmatprep.subr.bf16.mxu0 0
        %2447 = vmatpush1.bf16.msra.mxu0 0
        %2448 = vmatprep.subr.bf16.mxu0 0
        %2449 = vmatpush1.bf16.msra.mxu0 0
        %2450 = vmatprep.subr.bf16.mxu0 0
        %2451 = vmatpush1.bf16.msra.mxu0 0
        %2452 = vmatprep.subr.bf16.mxu0 0
        %2453 = vmatpush1.bf16.msra.mxu0 0
        %2454 = vmatprep.subr.bf16.mxu0 0
        %2455 = vmatpush1.bf16.msra.mxu0 0
        %2456 = vmatprep.subr.bf16.mxu0 0
        %2457 = vmatpush1.bf16.msra.mxu0 0
        %2458 = vmatprep.subr.bf16.mxu0 0
        %2459 = vmatpush1.bf16.msra.mxu0 0
        %2460 = vmatprep.subr.bf16.mxu0 0
        %2461 = vmatpush1.bf16.msra.mxu0 0
        %2462 = vmatprep.mubr.bf16.mxu0 0
        %2463 = vmatmul.mubr.bf16.gmra.mrb[0].mxu0 %v1501
        %v2464 = vpop.f32.mrb[0].mxu0
        %v2465 = vadd.f32 0.0, %v2464
        %v2466 = vpop.f32.mrb[0].mxu0
        %v2467 = vadd.f32 0.0, %v2466
        %v2468 = vpop.f32.mrb[0].mxu0
        %v2469 = vadd.f32 0.0, %v2468
        %v2470 = vpop.f32.mrb[0].mxu0
        %v2471 = vadd.f32 0.0, %v2470
        %2472 = vmatprep.mubr.bf16.mxu0 0
        %2473 = vmatmul.mubr.bf16.gmra.mrb[0].mxu0 %v1502
        %v2474 = vpop.f32.mrb[0].mxu0
        %v2475 = vadd.f32 0.0, %v2474
        %v2476 = vpop.f32.mrb[0].mxu0
        %v2477 = vadd.f32 0.0, %v2476
        %v2478 = vpop.f32.mrb[0].mxu0
        %v2479 = vadd.f32 0.0, %v2478
        %v2480 = vpop.f32.mrb[0].mxu0
        %v2481 = vadd.f32 0.0, %v2480
        %2482 = vdwg.mxu0
        %2483 = vmatprep.subr.bf16.mxu0 %v2024
        %2484 = vmatpush1.bf16.msra.mxu0 %v2023
        %2485 = vmatprep.subr.bf16.mxu0 %v2040
        %2486 = vmatpush1.bf16.msra.mxu0 %v2039
        %2487 = vmatprep.subr.bf16.mxu0 %v2056
        %2488 = vmatpush1.bf16.msra.mxu0 %v2055
        %2489 = vmatprep.subr.bf16.mxu0 %v2072
        %2490 = vmatpush1.bf16.msra.mxu0 %v2071
        %2491 = vmatprep.subr.bf16.mxu0 %v2088
        %2492 = vmatpush1.bf16.msra.mxu0 %v2087
        %2493 = vmatprep.subr.bf16.mxu0 %v2104
        %2494 = vmatpush1.bf16.msra.mxu0 %v2103
        %2495 = vmatprep.subr.bf16.mxu0 %v2120
        %2496 = vmatpush1.bf16.msra.mxu0 %v2119
        %2497 = vmatprep.subr.bf16.mxu0 %v2136
        %2498 = vmatpush1.bf16.msra.mxu0 %v2135
        %2499 = vmatprep.subr.bf16.mxu0 0
        %2500 = vmatpush1.bf16.msra.mxu0 0
        %2501 = vmatprep.subr.bf16.mxu0 0
        %2502 = vmatpush1.bf16.msra.mxu0 0
        %2503 = vmatprep.subr.bf16.mxu0 0
        %2504 = vmatpush1.bf16.msra.mxu0 0
        %2505 = vmatprep.subr.bf16.mxu0 0
        %2506 = vmatpush1.bf16.msra.mxu0 0
        %2507 = vmatprep.subr.bf16.mxu0 0
        %2508 = vmatpush1.bf16.msra.mxu0 0
        %2509 = vmatprep.subr.bf16.mxu0 0
        %2510 = vmatpush1.bf16.msra.mxu0 0
        %2511 = vmatprep.subr.bf16.mxu0 0
        %2512 = vmatpush1.bf16.msra.mxu0 0
        %2513 = vmatprep.subr.bf16.mxu0 0
        %2514 = vmatpush1.bf16.msra.mxu0 0
        %2515 = vmatprep.mubr.bf16.mxu0 0
        %2516 = vmatmul.mubr.bf16.gmra.mrb[0].mxu0 %v1501
        %v2517 = vpop.f32.mrb[0].mxu0
        %v2518 = vadd.f32 0.0, %v2517
        %v2519 = vpop.f32.mrb[0].mxu0
        %v2520 = vadd.f32 0.0, %v2519
        %v2521 = vpop.f32.mrb[0].mxu0
        %v2522 = vadd.f32 0.0, %v2521
        %v2523 = vpop.f32.mrb[0].mxu0
        %v2524 = vadd.f32 0.0, %v2523
        %2525 = vmatprep.mubr.bf16.mxu0 0
        %2526 = vmatmul.mubr.bf16.gmra.mrb[0].mxu0 %v1502
        %v2527 = vpop.f32.mrb[0].mxu0
        %v2528 = vadd.f32 0.0, %v2527
        %v2529 = vpop.f32.mrb[0].mxu0
        %v2530 = vadd.f32 0.0, %v2529
        %v2531 = vpop.f32.mrb[0].mxu0
        %v2532 = vadd.f32 0.0, %v2531
        %v2533 = vpop.f32.mrb[0].mxu0
        %v2534 = vadd.f32 0.0, %v2533
        %2535 = vdwg.mxu0
        %2536 = vmatprep.subr.bf16.mxu0 %v2026
        %2537 = vmatpush1.bf16.msra.mxu0 %v2025
        %2538 = vmatprep.subr.bf16.mxu0 %v2042
        %2539 = vmatpush1.bf16.msra.mxu0 %v2041
        %2540 = vmatprep.subr.bf16.mxu0 %v2058
        %2541 = vmatpush1.bf16.msra.mxu0 %v2057
        %2542 = vmatprep.subr.bf16.mxu0 %v2074
        %2543 = vmatpush1.bf16.msra.mxu0 %v2073
        %2544 = vmatprep.subr.bf16.mxu0 %v2090
        %2545 = vmatpush1.bf16.msra.mxu0 %v2089
        %2546 = vmatprep.subr.bf16.mxu0 %v2106
        %2547 = vmatpush1.bf16.msra.mxu0 %v2105
        %2548 = vmatprep.subr.bf16.mxu0 %v2122
        %2549 = vmatpush1.bf16.msra.mxu0 %v2121
        %2550 = vmatprep.subr.bf16.mxu0 %v2138
        %2551 = vmatpush1.bf16.msra.mxu0 %v2137
        %2552 = vmatprep.subr.bf16.mxu0 0
        %2553 = vmatpush1.bf16.msra.mxu0 0
        %2554 = vmatprep.subr.bf16.mxu0 0
        %2555 = vmatpush1.bf16.msra.mxu0 0
        %2556 = vmatprep.subr.bf16.mxu0 0
        %2557 = vmatpush1.bf16.msra.mxu0 0
        %2558 = vmatprep.subr.bf16.mxu0 0
        %2559 = vmatpush1.bf16.msra.mxu0 0
        %2560 = vmatprep.subr.bf16.mxu0 0
        %2561 = vmatpush1.bf16.msra.mxu0 0
        %2562 = vmatprep.subr.bf16.mxu0 0
        %2563 = vmatpush1.bf16.msra.mxu0 0
        %2564 = vmatprep.subr.bf16.mxu0 0
        %2565 = vmatpush1.bf16.msra.mxu0 0
        %2566 = vmatprep.subr.bf16.mxu0 0
        %2567 = vmatpush1.bf16.msra.mxu0 0
        %2568 = vmatprep.mubr.bf16.mxu0 0
        %2569 = vmatmul.mubr.bf16.gmra.mrb[0].mxu0 %v1501
        %v2570 = vpop.f32.mrb[0].mxu0
        %v2571 = vadd.f32 0.0, %v2570
        %v2572 = vpop.f32.mrb[0].mxu0
        %v2573 = vadd.f32 0.0, %v2572
        %v2574 = vpop.f32.mrb[0].mxu0
        %v2575 = vadd.f32 0.0, %v2574
        %v2576 = vpop.f32.mrb[0].mxu0
        %v2577 = vadd.f32 0.0, %v2576
        %2578 = vmatprep.mubr.bf16.mxu0 0
        %2579 = vmatmul.mubr.bf16.gmra.mrb[0].mxu0 %v1502
        %v2580 = vpop.f32.mrb[0].mxu0
        %v2581 = vadd.f32 0.0, %v2580
        %v2582 = vpop.f32.mrb[0].mxu0
        %v2583 = vadd.f32 0.0, %v2582
        %v2584 = vpop.f32.mrb[0].mxu0
        %v2585 = vadd.f32 0.0, %v2584
        %v2586 = vpop.f32.mrb[0].mxu0
        %v2587 = vadd.f32 0.0, %v2586
        %2588 = vdwg.mxu0
        %2589 = vmatprep.subr.bf16.mxu0 %v2028
        %2590 = vmatpush1.bf16.msra.mxu0 %v2027
        %2591 = vmatprep.subr.bf16.mxu0 %v2044
        %2592 = vmatpush1.bf16.msra.mxu0 %v2043
        %2593 = vmatprep.subr.bf16.mxu0 %v2060
        %2594 = vmatpush1.bf16.msra.mxu0 %v2059
        %2595 = vmatprep.subr.bf16.mxu0 %v2076
        %2596 = vmatpush1.bf16.msra.mxu0 %v2075
        %2597 = vmatprep.subr.bf16.mxu0 %v2092
        %2598 = vmatpush1.bf16.msra.mxu0 %v2091
        %2599 = vmatprep.subr.bf16.mxu0 %v2108
        %2600 = vmatpush1.bf16.msra.mxu0 %v2107
        %2601 = vmatprep.subr.bf16.mxu0 %v2124
        %2602 = vmatpush1.bf16.msra.mxu0 %v2123
        %2603 = vmatprep.subr.bf16.mxu0 %v2140
        %2604 = vmatpush1.bf16.msra.mxu0 %v2139
        %2605 = vmatprep.subr.bf16.mxu0 0
        %2606 = vmatpush1.bf16.msra.mxu0 0
        %2607 = vmatprep.subr.bf16.mxu0 0
        %2608 = vmatpush1.bf16.msra.mxu0 0
        %2609 = vmatprep.subr.bf16.mxu0 0
        %2610 = vmatpush1.bf16.msra.mxu0 0
        %2611 = vmatprep.subr.bf16.mxu0 0
        %2612 = vmatpush1.bf16.msra.mxu0 0
        %2613 = vmatprep.subr.bf16.mxu0 0
        %2614 = vmatpush1.bf16.msra.mxu0 0
        %2615 = vmatprep.subr.bf16.mxu0 0
        %2616 = vmatpush1.bf16.msra.mxu0 0
        %2617 = vmatprep.subr.bf16.mxu0 0
        %2618 = vmatpush1.bf16.msra.mxu0 0
        %2619 = vmatprep.subr.bf16.mxu0 0
        %2620 = vmatpush1.bf16.msra.mxu0 0
        %2621 = vmatprep.mubr.bf16.mxu0 0
        %2622 = vmatmul.mubr.bf16.gmra.mrb[0].mxu0 %v1501
        %v2623 = vpop.f32.mrb[0].mxu0
        %v2624 = vadd.f32 0.0, %v2623
        %v2625 = vpop.f32.mrb[0].mxu0
        %v2626 = vadd.f32 0.0, %v2625
        %v2627 = vpop.f32.mrb[0].mxu0
        %v2628 = vadd.f32 0.0, %v2627
        %v2629 = vpop.f32.mrb[0].mxu0
        %v2630 = vadd.f32 0.0, %v2629
        %2631 = vmatprep.mubr.bf16.mxu0 0
        %2632 = vmatmul.mubr.bf16.gmra.mrb[0].mxu0 %v1502
        %v2633 = vpop.f32.mrb[0].mxu0
        %v2634 = vadd.f32 0.0, %v2633
        %v2635 = vpop.f32.mrb[0].mxu0
        %v2636 = vadd.f32 0.0, %v2635
        %v2637 = vpop.f32.mrb[0].mxu0
        %v2638 = vadd.f32 0.0, %v2637
        %v2639 = vpop.f32.mrb[0].mxu0
        %v2640 = vadd.f32 0.0, %v2639
        %2641 = vdwg.mxu0
        %2642 = vmatprep.subr.bf16.mxu0 %v2030
        %2643 = vmatpush1.bf16.msra.mxu0 %v2029
        %2644 = vmatprep.subr.bf16.mxu0 %v2046
        %2645 = vmatpush1.bf16.msra.mxu0 %v2045
        %2646 = vmatprep.subr.bf16.mxu0 %v2062
        %2647 = vmatpush1.bf16.msra.mxu0 %v2061
        %2648 = vmatprep.subr.bf16.mxu0 %v2078
        %2649 = vmatpush1.bf16.msra.mxu0 %v2077
        %2650 = vmatprep.subr.bf16.mxu0 %v2094
        %2651 = vmatpush1.bf16.msra.mxu0 %v2093
        %2652 = vmatprep.subr.bf16.mxu0 %v2110
        %2653 = vmatpush1.bf16.msra.mxu0 %v2109
        %2654 = vmatprep.subr.bf16.mxu0 %v2126
        %2655 = vmatpush1.bf16.msra.mxu0 %v2125
        %2656 = vmatprep.subr.bf16.mxu0 %v2142
        %2657 = vmatpush1.bf16.msra.mxu0 %v2141
        %2658 = vmatprep.subr.bf16.mxu0 0
        %2659 = vmatpush1.bf16.msra.mxu0 0
        %2660 = vmatprep.subr.bf16.mxu0 0
        %2661 = vmatpush1.bf16.msra.mxu0 0
        %2662 = vmatprep.subr.bf16.mxu0 0
        %2663 = vmatpush1.bf16.msra.mxu0 0
        %2664 = vmatprep.subr.bf16.mxu0 0
        %2665 = vmatpush1.bf16.msra.mxu0 0
        %2666 = vmatprep.subr.bf16.mxu0 0
        %2667 = vmatpush1.bf16.msra.mxu0 0
        %2668 = vmatprep.subr.bf16.mxu0 0
        %2669 = vmatpush1.bf16.msra.mxu0 0
        %2670 = vmatprep.subr.bf16.mxu0 0
        %2671 = vmatpush1.bf16.msra.mxu0 0
        %2672 = vmatprep.subr.bf16.mxu0 0
        %2673 = vmatpush1.bf16.msra.mxu0 0
        %2674 = vmatprep.mubr.bf16.mxu0 0
        %2675 = vmatmul.mubr.bf16.gmra.mrb[0].mxu0 %v1501
        %v2676 = vpop.f32.mrb[0].mxu0
        %v2677 = vadd.f32 0.0, %v2676
        %v2678 = vpop.f32.mrb[0].mxu0
        %v2679 = vadd.f32 0.0, %v2678
        %v2680 = vpop.f32.mrb[0].mxu0
        %v2681 = vadd.f32 0.0, %v2680
        %v2682 = vpop.f32.mrb[0].mxu0
        %v2683 = vadd.f32 0.0, %v2682
        %2684 = vmatprep.mubr.bf16.mxu0 0
        %2685 = vmatmul.mubr.bf16.gmra.mrb[0].mxu0 %v1502
        %v2686 = vpop.f32.mrb[0].mxu0
        %v2687 = vadd.f32 0.0, %v2686
        %v2688 = vpop.f32.mrb[0].mxu0
        %v2689 = vadd.f32 0.0, %v2688
        %v2690 = vpop.f32.mrb[0].mxu0
        %v2691 = vadd.f32 0.0, %v2690
        %v2692 = vpop.f32.mrb[0].mxu0
        %v2693 = vadd.f32 0.0, %v2692
        %2694 = vdwg.mxu0
        %v2695 = vmul.f32 %v2306, 1.442695
        %v2696 = vpow.pop %v2695
        %v2697 = vmul.f32 %v2308, 1.442695
        %v2698 = vpow.pop %v2697
        %v2699 = vmul.f32 %v2359, 1.442695
        %v2700 = vpow.pop %v2699
        %v2701 = vmul.f32 %v2361, 1.442695
        %v2702 = vpow.pop %v2701
        %v2703 = vmul.f32 %v2412, 1.442695
        %v2704 = vpow.pop %v2703
        %v2705 = vmul.f32 %v2414, 1.442695
        %v2706 = vpow.pop %v2705
        %v2707 = vmul.f32 %v2465, 1.442695
        %v2708 = vpow.pop %v2707
        %v2709 = vmul.f32 %v2467, 1.442695
        %v2710 = vpow.pop %v2709
        %v2711 = vmul.f32 %v2310, 1.442695
        %v2712 = vpow.pop %v2711
        %v2713 = vmul.f32 %v2312, 1.442695
        %v2714 = vpow.pop %v2713
        %v2715 = vmul.f32 %v2363, 1.442695
        %v2716 = vpow.pop %v2715
        %v2717 = vmul.f32 %v2365, 1.442695
        %v2718 = vpow.pop %v2717
        %v2719 = vmul.f32 %v2416, 1.442695
        %v2720 = vpow.pop %v2719
        %v2721 = vmul.f32 %v2418, 1.442695
        %v2722 = vpow.pop %v2721
        %v2723 = vmul.f32 %v2469, 1.442695
        %v2724 = vpow.pop %v2723
        %v2725 = vmul.f32 %v2471, 1.442695
        %v2726 = vpow.pop %v2725
        %v2727 = vmul.f32 %v2316, 1.442695
        %v2728 = vpow.pop %v2727
        %v2729 = vmul.f32 %v2318, 1.442695
        %v2730 = vpow.pop %v2729
        %v2731 = vmul.f32 %v2369, 1.442695
        %v2732 = vpow.pop %v2731
        %v2733 = vmul.f32 %v2371, 1.442695
        %v2734 = vpow.pop %v2733
        %v2735 = vmul.f32 %v2422, 1.442695
        %v2736 = vpow.pop %v2735
        %v2737 = vmul.f32 %v2424, 1.442695
        %v2738 = vpow.pop %v2737
        %v2739 = vmul.f32 %v2475, 1.442695
        %v2740 = vpow.pop %v2739
        %v2741 = vmul.f32 %v2477, 1.442695
        %v2742 = vpow.pop %v2741
        %v2743 = vmul.f32 %v2320, 1.442695
        %v2744 = vpow.pop %v2743
        %v2745 = vmul.f32 %v2322, 1.442695
        %v2746 = vpow.pop %v2745
        %v2747 = vmul.f32 %v2373, 1.442695
        %v2748 = vpow.pop %v2747
        %v2749 = vmul.f32 %v2375, 1.442695
        %v2750 = vpow.pop %v2749
        %v2751 = vmul.f32 %v2426, 1.442695
        %v2752 = vpow.pop %v2751
        %v2753 = vmul.f32 %v2428, 1.442695
        %v2754 = vpow.pop %v2753
        %v2755 = vmul.f32 %v2479, 1.442695
        %v2756 = vpow.pop %v2755
        %v2757 = vmul.f32 %v2481, 1.442695
        %v2758 = vpow.pop %v2757
        %2759 = vst [vmem:[#allocation2] sm:$0xff] %v2696
        %2760 = vst [vmem:[#allocation2 + $0x8] sm:$0xff] %v2698
        %2761 = vst [vmem:[#allocation2 + $0x10] sm:$0xff] %v2700
        %2762 = vst [vmem:[#allocation2 + $0x18] sm:$0xff] %v2702
        %2763 = vst [vmem:[#allocation2 + $0x20] sm:$0xff] %v2704
        %2764 = vst [vmem:[#allocation2 + $0x28] sm:$0xff] %v2706
        %2765 = vst [vmem:[#allocation2 + $0x30] sm:$0xff] %v2708
        %2766 = vst [vmem:[#allocation2 + $0x38] sm:$0xff] %v2710
        %2767 = vst [vmem:[#allocation2 + $0x40] sm:$0xff] %v2712
        %2768 = vst [vmem:[#allocation2 + $0x48] sm:$0xff] %v2714
        %2769 = vst [vmem:[#allocation2 + $0x50] sm:$0xff] %v2716
        %2770 = vst [vmem:[#allocation2 + $0x58] sm:$0xff] %v2718
        %2771 = vst [vmem:[#allocation2 + $0x60] sm:$0xff] %v2720
        %2772 = vst [vmem:[#allocation2 + $0x68] sm:$0xff] %v2722
        %2773 = vst [vmem:[#allocation2 + $0x70] sm:$0xff] %v2724
        %2774 = vst [vmem:[#allocation2 + $0x78] sm:$0xff] %v2726
        %2775 = vst [vmem:[#allocation2 + $0x80] sm:$0xff] %v2728
        %2776 = vst [vmem:[#allocation2 + $0x88] sm:$0xff] %v2730
        %2777 = vst [vmem:[#allocation2 + $0x90] sm:$0xff] %v2732
        %2778 = vst [vmem:[#allocation2 + $0x98] sm:$0xff] %v2734
        %2779 = vst [vmem:[#allocation2 + $0xa0] sm:$0xff] %v2736
        %2780 = vst [vmem:[#allocation2 + $0xa8] sm:$0xff] %v2738
        %2781 = vst [vmem:[#allocation2 + $0xb0] sm:$0xff] %v2740
        %2782 = vst [vmem:[#allocation2 + $0xb8] sm:$0xff] %v2742
        %2783 = vst [vmem:[#allocation2 + $0xc0] sm:$0xff] %v2744
        %2784 = vst [vmem:[#allocation2 + $0xc8] sm:$0xff] %v2746
        %2785 = vst [vmem:[#allocation2 + $0xd0] sm:$0xff] %v2748
        %2786 = vst [vmem:[#allocation2 + $0xd8] sm:$0xff] %v2750
        %2787 = vst [vmem:[#allocation2 + $0xe0] sm:$0xff] %v2752
        %2788 = vst [vmem:[#allocation2 + $0xe8] sm:$0xff] %v2754
        %2789 = vst [vmem:[#allocation2 + $0xf0] sm:$0xff] %v2756
        %2790 = vst [vmem:[#allocation2 + $0xf8] sm:$0xff] %v2758
        %v2791 = vmul.f32 %v2518, %v998
        %v2792 = vmul.f32 %v2520, %v1000
        %v2793 = vmul.f32 %v2571, %v1051
        %v2794 = vmul.f32 %v2573, %v1053
        %v2795 = vmul.f32 %v2624, %v1104
        %v2796 = vmul.f32 %v2626, %v1106
        %v2797 = vmul.f32 %v2677, %v1157
        %v2798 = vmul.f32 %v2679, %v1159
        %v2799 = vmul.f32 %v2522, %v1002
        %v2800 = vmul.f32 %v2524, %v1004
        %v2801 = vmul.f32 %v2575, %v1055
        %v2802 = vmul.f32 %v2577, %v1057
        %v2803 = vmul.f32 %v2628, %v1108
        %v2804 = vmul.f32 %v2630, %v1110
        %v2805 = vmul.f32 %v2681, %v1161
        %v2806 = vmul.f32 %v2683, %v1163
        %v2807 = vmul.f32 %v2528, %v1008
        %v2808 = vmul.f32 %v2530, %v1010
        %v2809 = vmul.f32 %v2581, %v1061
        %v2810 = vmul.f32 %v2583, %v1063
        %v2811 = vmul.f32 %v2634, %v1114
        %v2812 = vmul.f32 %v2636, %v1116
        %v2813 = vmul.f32 %v2687, %v1167
        %v2814 = vmul.f32 %v2689, %v1169
        %v2815 = vmul.f32 %v2532, %v1012
        %v2816 = vmul.f32 %v2534, %v1014
        %v2817 = vmul.f32 %v2585, %v1065
        %v2818 = vmul.f32 %v2587, %v1067
        %v2819 = vmul.f32 %v2638, %v1118
        %v2820 = vmul.f32 %v2640, %v1120
        %v2821 = vmul.f32 %v2691, %v1171
        %v2822 = vmul.f32 %v2693, %v1173
        %2823 = vst [vmem:[#allocation3] sm:$0xff] %v2791
        %2824 = vst [vmem:[#allocation3 + $0x8] sm:$0xff] %v2792
        %2825 = vst [vmem:[#allocation3 + $0x10] sm:$0xff] %v2793
        %2826 = vst [vmem:[#allocation3 + $0x18] sm:$0xff] %v2794
        %2827 = vst [vmem:[#allocation3 + $0x20] sm:$0xff] %v2795
        %2828 = vst [vmem:[#allocation3 + $0x28] sm:$0xff] %v2796
        %2829 = vst [vmem:[#allocation3 + $0x30] sm:$0xff] %v2797
        %2830 = vst [vmem:[#allocation3 + $0x38] sm:$0xff] %v2798
        %2831 = vst [vmem:[#allocation3 + $0x40] sm:$0xff] %v2799
        %2832 = vst [vmem:[#allocation3 + $0x48] sm:$0xff] %v2800
        %2833 = vst [vmem:[#allocation3 + $0x50] sm:$0xff] %v2801
        %2834 = vst [vmem:[#allocation3 + $0x58] sm:$0xff] %v2802
        %2835 = vst [vmem:[#allocation3 + $0x60] sm:$0xff] %v2803
        %2836 = vst [vmem:[#allocation3 + $0x68] sm:$0xff] %v2804
        %2837 = vst [vmem:[#allocation3 + $0x70] sm:$0xff] %v2805
        %2838 = vst [vmem:[#allocation3 + $0x78] sm:$0xff] %v2806
        %2839 = vst [vmem:[#allocation3 + $0x80] sm:$0xff] %v2807
        %2840 = vst [vmem:[#allocation3 + $0x88] sm:$0xff] %v2808
        %2841 = vst [vmem:[#allocation3 + $0x90] sm:$0xff] %v2809
        %2842 = vst [vmem:[#allocation3 + $0x98] sm:$0xff] %v2810
        %2843 = vst [vmem:[#allocation3 + $0xa0] sm:$0xff] %v2811
        %2844 = vst [vmem:[#allocation3 + $0xa8] sm:$0xff] %v2812
        %2845 = vst [vmem:[#allocation3 + $0xb0] sm:$0xff] %v2813
        %2846 = vst [vmem:[#allocation3 + $0xb8] sm:$0xff] %v2814
        %2847 = vst [vmem:[#allocation3 + $0xc0] sm:$0xff] %v2815
        %2848 = vst [vmem:[#allocation3 + $0xc8] sm:$0xff] %v2816
        %2849 = vst [vmem:[#allocation3 + $0xd0] sm:$0xff] %v2817
        %2850 = vst [vmem:[#allocation3 + $0xd8] sm:$0xff] %v2818
        %2851 = vst [vmem:[#allocation3 + $0xe0] sm:$0xff] %v2819
        %2852 = vst [vmem:[#allocation3 + $0xe8] sm:$0xff] %v2820
        %2853 = vst [vmem:[#allocation3 + $0xf0] sm:$0xff] %v2821
        %2854 = vst [vmem:[#allocation3 + $0xf8] sm:$0xff] %v2822
        %v2855 = vld [vmem:[#allocation4] sm:$0xff]
        %v2856 = vld [vmem:[#allocation4 + $0x8] sm:$0xff]
        %v2857 = vld [vmem:[#allocation4 + $0x10] sm:$0xff]
        %v2858 = vld [vmem:[#allocation4 + $0x18] sm:$0xff]
        %v2859 = vld [vmem:[#allocation4 + $0x20] sm:$0xff]
        %v2860 = vld [vmem:[#allocation4 + $0x28] sm:$0xff]
        %v2861 = vld [vmem:[#allocation4 + $0x30] sm:$0xff]
        %v2862 = vld [vmem:[#allocation4 + $0x38] sm:$0xff]
        %v2863 = vld [vmem:[#allocation2] sm:$0xff]
        %v2864 = vld [vmem:[#allocation2 + $0x8] sm:$0xff]
        %v2865 = vld [vmem:[#allocation2 + $0x10] sm:$0xff]
        %v2866 = vld [vmem:[#allocation2 + $0x18] sm:$0xff]
        %v2867 = vld [vmem:[#allocation2 + $0x20] sm:$0xff]
        %v2868 = vld [vmem:[#allocation2 + $0x28] sm:$0xff]
        %v2869 = vld [vmem:[#allocation2 + $0x30] sm:$0xff]
        %v2870 = vld [vmem:[#allocation2 + $0x38] sm:$0xff]
        %v2871 = vmul.f32 %v2863, %v2855
        %v2872 = vmul.f32 %v2864, %v2856
        %v2873 = vmul.f32 %v2865, %v2857
        %v2874 = vmul.f32 %v2866, %v2858
        %v2875 = vmul.f32 %v2867, %v2859
        %v2876 = vmul.f32 %v2868, %v2860
        %v2877 = vmul.f32 %v2869, %v2861
        %v2878 = vmul.f32 %v2870, %v2862
        %v2879 = vld [vmem:[#allocation3] sm:$0xff]
        %v2880 = vld [vmem:[#allocation3 + $0x8] sm:$0xff]
        %v2881 = vld [vmem:[#allocation3 + $0x10] sm:$0xff]
        %v2882 = vld [vmem:[#allocation3 + $0x18] sm:$0xff]
        %v2883 = vld [vmem:[#allocation3 + $0x20] sm:$0xff]
        %v2884 = vld [vmem:[#allocation3 + $0x28] sm:$0xff]
        %v2885 = vld [vmem:[#allocation3 + $0x30] sm:$0xff]
        %v2886 = vld [vmem:[#allocation3 + $0x38] sm:$0xff]
        %v2887 = vadd.f32 %v2871, %v2879
        %v2888 = vadd.f32 %v2872, %v2880
        %v2889 = vadd.f32 %v2873, %v2881
        %v2890 = vadd.f32 %v2874, %v2882
        %v2891 = vadd.f32 %v2875, %v2883
        %v2892 = vadd.f32 %v2876, %v2884
        %v2893 = vadd.f32 %v2877, %v2885
        %v2894 = vadd.f32 %v2878, %v2886
        %2895 = vst [vmem:[#allocation3] sm:$0xff] %v2887
        %2896 = vst [vmem:[#allocation3 + $0x8] sm:$0xff] %v2888
        %2897 = vst [vmem:[#allocation3 + $0x10] sm:$0xff] %v2889
        %2898 = vst [vmem:[#allocation3 + $0x18] sm:$0xff] %v2890
        %2899 = vst [vmem:[#allocation3 + $0x20] sm:$0xff] %v2891
        %2900 = vst [vmem:[#allocation3 + $0x28] sm:$0xff] %v2892
        %2901 = vst [vmem:[#allocation3 + $0x30] sm:$0xff] %v2893
        %2902 = vst [vmem:[#allocation3 + $0x38] sm:$0xff] %v2894
        %v2903 = vld [vmem:[#allocation2 + $0x40] sm:$0xff]
        %v2904 = vld [vmem:[#allocation2 + $0x48] sm:$0xff]
        %v2905 = vld [vmem:[#allocation2 + $0x50] sm:$0xff]
        %v2906 = vld [vmem:[#allocation2 + $0x58] sm:$0xff]
        %v2907 = vld [vmem:[#allocation2 + $0x60] sm:$0xff]
        %v2908 = vld [vmem:[#allocation2 + $0x68] sm:$0xff]
        %v2909 = vld [vmem:[#allocation2 + $0x70] sm:$0xff]
        %v2910 = vld [vmem:[#allocation2 + $0x78] sm:$0xff]
        %v2911 = vmul.f32 %v2903, %v2887
        %v2912 = vmul.f32 %v2904, %v2888
        %v2913 = vmul.f32 %v2905, %v2889
        %v2914 = vmul.f32 %v2906, %v2890
        %v2915 = vmul.f32 %v2907, %v2891
        %v2916 = vmul.f32 %v2908, %v2892
        %v2917 = vmul.f32 %v2909, %v2893
        %v2918 = vmul.f32 %v2910, %v2894
        %v2919 = vld [vmem:[#allocation3 + $0x40] sm:$0xff]
        %v2920 = vld [vmem:[#allocation3 + $0x48] sm:$0xff]
        %v2921 = vld [vmem:[#allocation3 + $0x50] sm:$0xff]
        %v2922 = vld [vmem:[#allocation3 + $0x58] sm:$0xff]
        %v2923 = vld [vmem:[#allocation3 + $0x60] sm:$0xff]
        %v2924 = vld [vmem:[#allocation3 + $0x68] sm:$0xff]
        %v2925 = vld [vmem:[#allocation3 + $0x70] sm:$0xff]
        %v2926 = vld [vmem:[#allocation3 + $0x78] sm:$0xff]
        %v2927 = vadd.f32 %v2911, %v2919
        %v2928 = vadd.f32 %v2912, %v2920
        %v2929 = vadd.f32 %v2913, %v2921
        %v2930 = vadd.f32 %v2914, %v2922
        %v2931 = vadd.f32 %v2915, %v2923
        %v2932 = vadd.f32 %v2916, %v2924
        %v2933 = vadd.f32 %v2917, %v2925
        %v2934 = vadd.f32 %v2918, %v2926
        %2935 = vst [vmem:[#allocation3 + $0x40] sm:$0xff] %v2927
        %2936 = vst [vmem:[#allocation3 + $0x48] sm:$0xff] %v2928
        %2937 = vst [vmem:[#allocation3 + $0x50] sm:$0xff] %v2929
        %2938 = vst [vmem:[#allocation3 + $0x58] sm:$0xff] %v2930
        %2939 = vst [vmem:[#allocation3 + $0x60] sm:$0xff] %v2931
        %2940 = vst [vmem:[#allocation3 + $0x68] sm:$0xff] %v2932
        %2941 = vst [vmem:[#allocation3 + $0x70] sm:$0xff] %v2933
        %2942 = vst [vmem:[#allocation3 + $0x78] sm:$0xff] %v2934
        %v2943 = vld [vmem:[#allocation2 + $0x80] sm:$0xff]
        %v2944 = vld [vmem:[#allocation2 + $0x88] sm:$0xff]
        %v2945 = vld [vmem:[#allocation2 + $0x90] sm:$0xff]
        %v2946 = vld [vmem:[#allocation2 + $0x98] sm:$0xff]
        %v2947 = vld [vmem:[#allocation2 + $0xa0] sm:$0xff]
        %v2948 = vld [vmem:[#allocation2 + $0xa8] sm:$0xff]
        %v2949 = vld [vmem:[#allocation2 + $0xb0] sm:$0xff]
        %v2950 = vld [vmem:[#allocation2 + $0xb8] sm:$0xff]
        %v2951 = vmul.f32 %v2943, %v2927
        %v2952 = vmul.f32 %v2944, %v2928
        %v2953 = vmul.f32 %v2945, %v2929
        %v2954 = vmul.f32 %v2946, %v2930
        %v2955 = vmul.f32 %v2947, %v2931
        %v2956 = vmul.f32 %v2948, %v2932
        %v2957 = vmul.f32 %v2949, %v2933
        %v2958 = vmul.f32 %v2950, %v2934
        %v2959 = vld [vmem:[#allocation3 + $0x80] sm:$0xff]
        %v2960 = vld [vmem:[#allocation3 + $0x88] sm:$0xff]
        %v2961 = vld [vmem:[#allocation3 + $0x90] sm:$0xff]
        %v2962 = vld [vmem:[#allocation3 + $0x98] sm:$0xff]
        %v2963 = vld [vmem:[#allocation3 + $0xa0] sm:$0xff]
        %v2964 = vld [vmem:[#allocation3 + $0xa8] sm:$0xff]
        %v2965 = vld [vmem:[#allocation3 + $0xb0] sm:$0xff]
        %v2966 = vld [vmem:[#allocation3 + $0xb8] sm:$0xff]
        %v2967 = vadd.f32 %v2951, %v2959
        %v2968 = vadd.f32 %v2952, %v2960
        %v2969 = vadd.f32 %v2953, %v2961
        %v2970 = vadd.f32 %v2954, %v2962
        %v2971 = vadd.f32 %v2955, %v2963
        %v2972 = vadd.f32 %v2956, %v2964
        %v2973 = vadd.f32 %v2957, %v2965
        %v2974 = vadd.f32 %v2958, %v2966
        %2975 = vst [vmem:[#allocation3 + $0x80] sm:$0xff] %v2967
        %2976 = vst [vmem:[#allocation3 + $0x88] sm:$0xff] %v2968
        %2977 = vst [vmem:[#allocation3 + $0x90] sm:$0xff] %v2969
        %2978 = vst [vmem:[#allocation3 + $0x98] sm:$0xff] %v2970
        %2979 = vst [vmem:[#allocation3 + $0xa0] sm:$0xff] %v2971
        %2980 = vst [vmem:[#allocation3 + $0xa8] sm:$0xff] %v2972
        %2981 = vst [vmem:[#allocation3 + $0xb0] sm:$0xff] %v2973
        %2982 = vst [vmem:[#allocation3 + $0xb8] sm:$0xff] %v2974
        %v2983 = vld [vmem:[#allocation2 + $0xc0] sm:$0xff]
        %v2984 = vld [vmem:[#allocation2 + $0xc8] sm:$0xff]
        %v2985 = vld [vmem:[#allocation2 + $0xd0] sm:$0xff]
        %v2986 = vld [vmem:[#allocation2 + $0xd8] sm:$0xff]
        %v2987 = vld [vmem:[#allocation2 + $0xe0] sm:$0xff]
        %v2988 = vld [vmem:[#allocation2 + $0xe8] sm:$0xff]
        %v2989 = vld [vmem:[#allocation2 + $0xf0] sm:$0xff]
        %v2990 = vld [vmem:[#allocation2 + $0xf8] sm:$0xff]
        %v2991 = vmul.f32 %v2983, %v2967
        %v2992 = vmul.f32 %v2984, %v2968
        %v2993 = vmul.f32 %v2985, %v2969
        %v2994 = vmul.f32 %v2986, %v2970
        %v2995 = vmul.f32 %v2987, %v2971
        %v2996 = vmul.f32 %v2988, %v2972
        %v2997 = vmul.f32 %v2989, %v2973
        %v2998 = vmul.f32 %v2990, %v2974
        %v2999 = vld [vmem:[#allocation3 + $0xc0] sm:$0xff]
        %v3000 = vld [vmem:[#allocation3 + $0xc8] sm:$0xff]
        %v3001 = vld [vmem:[#allocation3 + $0xd0] sm:$0xff]
        %v3002 = vld [vmem:[#allocation3 + $0xd8] sm:$0xff]
        %v3003 = vld [vmem:[#allocation3 + $0xe0] sm:$0xff]
        %v3004 = vld [vmem:[#allocation3 + $0xe8] sm:$0xff]
        %v3005 = vld [vmem:[#allocation3 + $0xf0] sm:$0xff]
        %v3006 = vld [vmem:[#allocation3 + $0xf8] sm:$0xff]
        %v3007 = vadd.f32 %v2991, %v2999
        %v3008 = vadd.f32 %v2992, %v3000
        %v3009 = vadd.f32 %v2993, %v3001
        %v3010 = vadd.f32 %v2994, %v3002
        %v3011 = vadd.f32 %v2995, %v3003
        %v3012 = vadd.f32 %v2996, %v3004
        %v3013 = vadd.f32 %v2997, %v3005
        %v3014 = vadd.f32 %v2998, %v3006
        %3015 = vst [vmem:[#allocation3 + $0xc0] sm:$0xff] %v3007
        %3016 = vst [vmem:[#allocation3 + $0xc8] sm:$0xff] %v3008
        %3017 = vst [vmem:[#allocation3 + $0xd0] sm:$0xff] %v3009
        %3018 = vst [vmem:[#allocation3 + $0xd8] sm:$0xff] %v3010
        %3019 = vst [vmem:[#allocation3 + $0xe0] sm:$0xff] %v3011
        %3020 = vst [vmem:[#allocation3 + $0xe8] sm:$0xff] %v3012
        %3021 = vst [vmem:[#allocation3 + $0xf0] sm:$0xff] %v3013
        %3022 = vst [vmem:[#allocation3 + $0xf8] sm:$0xff] %v3014
        %3023 = vst [vmem:[#allocation4] sm:$0xff] %v3007
        %3024 = vst [vmem:[#allocation4 + $0x8] sm:$0xff] %v3008
        %3025 = vst [vmem:[#allocation4 + $0x10] sm:$0xff] %v3009
        %3026 = vst [vmem:[#allocation4 + $0x18] sm:$0xff] %v3010
        %3027 = vst [vmem:[#allocation4 + $0x20] sm:$0xff] %v3011
        %3028 = vst [vmem:[#allocation4 + $0x28] sm:$0xff] %v3012
        %3029 = vst [vmem:[#allocation4 + $0x30] sm:$0xff] %v3013
        %3030 = vst [vmem:[#allocation4 + $0x38] sm:$0xff] %v3014
        %v3031 = vld [vmem:[#allocation3] sm:$0xff]
        %v3032 = vld [vmem:[#allocation3 + $0x8] sm:$0xff]
        %v3033 = vld [vmem:[#allocation3 + $0x10] sm:$0xff]
        %v3034 = vld [vmem:[#allocation3 + $0x18] sm:$0xff]
        %v3035 = vld [vmem:[#allocation3 + $0x20] sm:$0xff]
        %v3036 = vld [vmem:[#allocation3 + $0x28] sm:$0xff]
        %v3037 = vld [vmem:[#allocation3 + $0x30] sm:$0xff]
        %v3038 = vld [vmem:[#allocation3 + $0x38] sm:$0xff]
        %v3039 = vld [vmem:[#allocation3 + $0x40] sm:$0xff]
        %v3040 = vld [vmem:[#allocation3 + $0x48] sm:$0xff]
        %v3041 = vld [vmem:[#allocation3 + $0x50] sm:$0xff]
        %v3042 = vld [vmem:[#allocation3 + $0x58] sm:$0xff]
        %v3043 = vld [vmem:[#allocation3 + $0x60] sm:$0xff]
        %v3044 = vld [vmem:[#allocation3 + $0x68] sm:$0xff]
        %v3045 = vld [vmem:[#allocation3 + $0x70] sm:$0xff]
        %v3046 = vld [vmem:[#allocation3 + $0x78] sm:$0xff]
        %v3047 = vld [vmem:[#allocation3 + $0x80] sm:$0xff]
        %v3048 = vld [vmem:[#allocation3 + $0x88] sm:$0xff]
        %v3049 = vld [vmem:[#allocation3 + $0x90] sm:$0xff]
        %v3050 = vld [vmem:[#allocation3 + $0x98] sm:$0xff]
        %v3051 = vld [vmem:[#allocation3 + $0xa0] sm:$0xff]
        %v3052 = vld [vmem:[#allocation3 + $0xa8] sm:$0xff]
        %v3053 = vld [vmem:[#allocation3 + $0xb0] sm:$0xff]
        %v3054 = vld [vmem:[#allocation3 + $0xb8] sm:$0xff]
        %v3055 = vld [vmem:[#allocation3 + $0xc0] sm:$0xff]
        %v3056 = vld [vmem:[#allocation3 + $0xc8] sm:$0xff]
        %v3057 = vld [vmem:[#allocation3 + $0xd0] sm:$0xff]
        %v3058 = vld [vmem:[#allocation3 + $0xd8] sm:$0xff]
        %v3059 = vld [vmem:[#allocation3 + $0xe0] sm:$0xff]
        %v3060 = vld [vmem:[#allocation3 + $0xe8] sm:$0xff]
        %v3061 = vld [vmem:[#allocation3 + $0xf0] sm:$0xff]
        %v3062 = vld [vmem:[#allocation3 + $0xf8] sm:$0xff]
        %v3063 = vmul.f32 %v3031, %v1210
        %v3064 = vmul.f32 %v3032, %v1212
        %v3065 = vmul.f32 %v3033, %v1263
        %v3066 = vmul.f32 %v3034, %v1265
        %v3067 = vmul.f32 %v3035, %v1316
        %v3068 = vmul.f32 %v3036, %v1318
        %v3069 = vmul.f32 %v3037, %v1369
        %v3070 = vmul.f32 %v3038, %v1371
        %v3071 = vmul.f32 %v3039, %v1214
        %v3072 = vmul.f32 %v3040, %v1216
        %v3073 = vmul.f32 %v3041, %v1267
        %v3074 = vmul.f32 %v3042, %v1269
        %v3075 = vmul.f32 %v3043, %v1320
        %v3076 = vmul.f32 %v3044, %v1322
        %v3077 = vmul.f32 %v3045, %v1373
        %v3078 = vmul.f32 %v3046, %v1375
        %v3079 = vmul.f32 %v3047, %v1220
        %v3080 = vmul.f32 %v3048, %v1222
        %v3081 = vmul.f32 %v3049, %v1273
        %v3082 = vmul.f32 %v3050, %v1275
        %v3083 = vmul.f32 %v3051, %v1326
        %v3084 = vmul.f32 %v3052, %v1328
        %v3085 = vmul.f32 %v3053, %v1379
        %v3086 = vmul.f32 %v3054, %v1381
        %v3087 = vmul.f32 %v3055, %v1224
        %v3088 = vmul.f32 %v3056, %v1226
        %v3089 = vmul.f32 %v3057, %v1277
        %v3090 = vmul.f32 %v3058, %v1279
        %v3091 = vmul.f32 %v3059, %v1330
        %v3092 = vmul.f32 %v3060, %v1332
        %v3093 = vmul.f32 %v3061, %v1383
        %v3094 = vmul.f32 %v3062, %v1385
        %v3095 = vpack.c.bf16 %v3071, %v3063
        %v3096 = vpack.c.bf16 %v3072, %v3064
        %v3097 = vpack.c.bf16 %v3073, %v3065
        %v3098 = vpack.c.bf16 %v3074, %v3066
        %v3099 = vpack.c.bf16 %v3075, %v3067
        %v3100 = vpack.c.bf16 %v3076, %v3068
        %v3101 = vpack.c.bf16 %v3077, %v3069
        %v3102 = vpack.c.bf16 %v3078, %v3070
        %v3103 = vpack.c.bf16 %v3087, %v3079
        %v3104 = vpack.c.bf16 %v3088, %v3080
        %v3105 = vpack.c.bf16 %v3089, %v3081
        %v3106 = vpack.c.bf16 %v3090, %v3082
        %v3107 = vpack.c.bf16 %v3091, %v3083
        %v3108 = vpack.c.bf16 %v3092, %v3084
        %v3109 = vpack.c.bf16 %v3093, %v3085
        %v3110 = vpack.c.bf16 %v3094, %v3086
        %v3111 = vld [vmem:[%s5] sm:$0xf]
        %v3112 = vld [vmem:[%s5 + $0x4] sm:$0xf]
        %v3113 = vld [vmem:[%s5 + $0x8] sm:$0xf]
        %v3114 = vld [vmem:[%s5 + $0xc] sm:$0xf]
        %v3115 = vld [vmem:[%s5 + $0x10] sm:$0xf]
        %v3116 = vld [vmem:[%s5 + $0x14] sm:$0xf]
        %v3117 = vld [vmem:[%s5 + $0x18] sm:$0xf]
        %v3118 = vld [vmem:[%s5 + $0x1c] sm:$0xf]
        %v3119 = vld [vmem:[%s5 + $0x20] sm:$0xf]
        %v3120 = vld [vmem:[%s5 + $0x24] sm:$0xf]
        %v3121 = vld [vmem:[%s5 + $0x28] sm:$0xf]
        %v3122 = vld [vmem:[%s5 + $0x2c] sm:$0xf]
        %v3123 = vld [vmem:[%s5 + $0x30] sm:$0xf]
        %v3124 = vld [vmem:[%s5 + $0x34] sm:$0xf]
        %v3125 = vld [vmem:[%s5 + $0x38] sm:$0xf]
        %v3126 = vld [vmem:[%s5 + $0x3c] sm:$0xf]
        %v3127 = vld [vmem:[%s5 + $0x40] sm:$0xf]
        %v3128 = vld [vmem:[%s5 + $0x44] sm:$0xf]
        %v3129 = vld [vmem:[%s5 + $0x48] sm:$0xf]
        %v3130 = vld [vmem:[%s5 + $0x4c] sm:$0xf]
        %v3131 = vld [vmem:[%s5 + $0x50] sm:$0xf]
        %v3132 = vld [vmem:[%s5 + $0x54] sm:$0xf]
        %v3133 = vld [vmem:[%s5 + $0x58] sm:$0xf]
        %v3134 = vld [vmem:[%s5 + $0x5c] sm:$0xf]
        %v3135 = vld [vmem:[%s5 + $0x60] sm:$0xf]
        %v3136 = vld [vmem:[%s5 + $0x64] sm:$0xf]
        %v3137 = vld [vmem:[%s5 + $0x68] sm:$0xf]
        %v3138 = vld [vmem:[%s5 + $0x6c] sm:$0xf]
        %v3139 = vld [vmem:[%s5 + $0x70] sm:$0xf]
        %v3140 = vld [vmem:[%s5 + $0x74] sm:$0xf]
        %v3141 = vld [vmem:[%s5 + $0x78] sm:$0xf]
        %v3142 = vld [vmem:[%s5 + $0x7c] sm:$0xf]
        %v3143 = vld [vmem:[%s5 + $0x80] sm:$0xf]
        %v3144 = vld [vmem:[%s5 + $0x84] sm:$0xf]
        %v3145 = vld [vmem:[%s5 + $0x88] sm:$0xf]
        %v3146 = vld [vmem:[%s5 + $0x8c] sm:$0xf]
        %v3147 = vld [vmem:[%s5 + $0x90] sm:$0xf]
        %v3148 = vld [vmem:[%s5 + $0x94] sm:$0xf]
        %v3149 = vld [vmem:[%s5 + $0x98] sm:$0xf]
        %v3150 = vld [vmem:[%s5 + $0x9c] sm:$0xf]
        %v3151 = vld [vmem:[%s5 + $0xa0] sm:$0xf]
        %v3152 = vld [vmem:[%s5 + $0xa4] sm:$0xf]
        %v3153 = vld [vmem:[%s5 + $0xa8] sm:$0xf]
        %v3154 = vld [vmem:[%s5 + $0xac] sm:$0xf]
        %v3155 = vld [vmem:[%s5 + $0xb0] sm:$0xf]
        %v3156 = vld [vmem:[%s5 + $0xb4] sm:$0xf]
        %v3157 = vld [vmem:[%s5 + $0xb8] sm:$0xf]
        %v3158 = vld [vmem:[%s5 + $0xbc] sm:$0xf]
        %v3159 = vld [vmem:[%s5 + $0xc0] sm:$0xf]
        %v3160 = vld [vmem:[%s5 + $0xc4] sm:$0xf]
        %v3161 = vld [vmem:[%s5 + $0xc8] sm:$0xf]
        %v3162 = vld [vmem:[%s5 + $0xcc] sm:$0xf]
        %v3163 = vld [vmem:[%s5 + $0xd0] sm:$0xf]
        %v3164 = vld [vmem:[%s5 + $0xd4] sm:$0xf]
        %v3165 = vld [vmem:[%s5 + $0xd8] sm:$0xf]
        %v3166 = vld [vmem:[%s5 + $0xdc] sm:$0xf]
        %v3167 = vld [vmem:[%s5 + $0xe0] sm:$0xf]
        %v3168 = vld [vmem:[%s5 + $0xe4] sm:$0xf]
        %v3169 = vld [vmem:[%s5 + $0xe8] sm:$0xf]
        %v3170 = vld [vmem:[%s5 + $0xec] sm:$0xf]
        %v3171 = vld [vmem:[%s5 + $0xf0] sm:$0xf]
        %v3172 = vld [vmem:[%s5 + $0xf4] sm:$0xf]
        %v3173 = vld [vmem:[%s5 + $0xf8] sm:$0xf]
        %v3174 = vld [vmem:[%s5 + $0xfc] sm:$0xf]
        %v3175 = vld [vmem:[%s5 + $0x100] sm:$0xf]
        %v3176 = vld [vmem:[%s5 + $0x104] sm:$0xf]
        %v3177 = vld [vmem:[%s5 + $0x108] sm:$0xf]
        %v3178 = vld [vmem:[%s5 + $0x10c] sm:$0xf]
        %v3179 = vld [vmem:[%s5 + $0x110] sm:$0xf]
        %v3180 = vld [vmem:[%s5 + $0x114] sm:$0xf]
        %v3181 = vld [vmem:[%s5 + $0x118] sm:$0xf]
        %v3182 = vld [vmem:[%s5 + $0x11c] sm:$0xf]
        %v3183 = vld [vmem:[%s5 + $0x120] sm:$0xf]
        %v3184 = vld [vmem:[%s5 + $0x124] sm:$0xf]
        %v3185 = vld [vmem:[%s5 + $0x128] sm:$0xf]
        %v3186 = vld [vmem:[%s5 + $0x12c] sm:$0xf]
        %v3187 = vld [vmem:[%s5 + $0x130] sm:$0xf]
        %v3188 = vld [vmem:[%s5 + $0x134] sm:$0xf]
        %v3189 = vld [vmem:[%s5 + $0x138] sm:$0xf]
        %v3190 = vld [vmem:[%s5 + $0x13c] sm:$0xf]
        %v3191 = vld [vmem:[%s5 + $0x140] sm:$0xf]
        %v3192 = vld [vmem:[%s5 + $0x144] sm:$0xf]
        %v3193 = vld [vmem:[%s5 + $0x148] sm:$0xf]
        %v3194 = vld [vmem:[%s5 + $0x14c] sm:$0xf]
        %v3195 = vld [vmem:[%s5 + $0x150] sm:$0xf]
        %v3196 = vld [vmem:[%s5 + $0x154] sm:$0xf]
        %v3197 = vld [vmem:[%s5 + $0x158] sm:$0xf]
        %v3198 = vld [vmem:[%s5 + $0x15c] sm:$0xf]
        %v3199 = vld [vmem:[%s5 + $0x160] sm:$0xf]
        %v3200 = vld [vmem:[%s5 + $0x164] sm:$0xf]
        %v3201 = vld [vmem:[%s5 + $0x168] sm:$0xf]
        %v3202 = vld [vmem:[%s5 + $0x16c] sm:$0xf]
        %v3203 = vld [vmem:[%s5 + $0x170] sm:$0xf]
        %v3204 = vld [vmem:[%s5 + $0x174] sm:$0xf]
        %v3205 = vld [vmem:[%s5 + $0x178] sm:$0xf]
        %v3206 = vld [vmem:[%s5 + $0x17c] sm:$0xf]
        %v3207 = vld [vmem:[%s5 + $0x180] sm:$0xf]
        %v3208 = vld [vmem:[%s5 + $0x184] sm:$0xf]
        %v3209 = vld [vmem:[%s5 + $0x188] sm:$0xf]
        %v3210 = vld [vmem:[%s5 + $0x18c] sm:$0xf]
        %v3211 = vld [vmem:[%s5 + $0x190] sm:$0xf]
        %v3212 = vld [vmem:[%s5 + $0x194] sm:$0xf]
        %v3213 = vld [vmem:[%s5 + $0x198] sm:$0xf]
        %v3214 = vld [vmem:[%s5 + $0x19c] sm:$0xf]
        %v3215 = vld [vmem:[%s5 + $0x1a0] sm:$0xf]
        %v3216 = vld [vmem:[%s5 + $0x1a4] sm:$0xf]
        %v3217 = vld [vmem:[%s5 + $0x1a8] sm:$0xf]
        %v3218 = vld [vmem:[%s5 + $0x1ac] sm:$0xf]
        %v3219 = vld [vmem:[%s5 + $0x1b0] sm:$0xf]
        %v3220 = vld [vmem:[%s5 + $0x1b4] sm:$0xf]
        %v3221 = vld [vmem:[%s5 + $0x1b8] sm:$0xf]
        %v3222 = vld [vmem:[%s5 + $0x1bc] sm:$0xf]
        %v3223 = vld [vmem:[%s5 + $0x1c0] sm:$0xf]
        %v3224 = vld [vmem:[%s5 + $0x1c4] sm:$0xf]
        %v3225 = vld [vmem:[%s5 + $0x1c8] sm:$0xf]
        %v3226 = vld [vmem:[%s5 + $0x1cc] sm:$0xf]
        %v3227 = vld [vmem:[%s5 + $0x1d0] sm:$0xf]
        %v3228 = vld [vmem:[%s5 + $0x1d4] sm:$0xf]
        %v3229 = vld [vmem:[%s5 + $0x1d8] sm:$0xf]
        %v3230 = vld [vmem:[%s5 + $0x1dc] sm:$0xf]
        %v3231 = vld [vmem:[%s5 + $0x1e0] sm:$0xf]
        %v3232 = vld [vmem:[%s5 + $0x1e4] sm:$0xf]
        %v3233 = vld [vmem:[%s5 + $0x1e8] sm:$0xf]
        %v3234 = vld [vmem:[%s5 + $0x1ec] sm:$0xf]
        %v3235 = vld [vmem:[%s5 + $0x1f0] sm:$0xf]
        %v3236 = vld [vmem:[%s5 + $0x1f4] sm:$0xf]
        %v3237 = vld [vmem:[%s5 + $0x1f8] sm:$0xf]
        %v3238 = vld [vmem:[%s5 + $0x1fc] sm:$0xf]
        %v3239 = vld [vmem:[%s7 + $0x2] sm:$0x1]
        %v3240 = vlaneseq
        %v3241 = vshrl.u32 %v3240, 7
        %v3242 = vsub.s32 0, %v3241
        %v3243 = vrot.slane %v3239, %v3242
        %v3244 = vmul.f32 %v535, %v3243
        %v3245 = vmul.f32 %v536, %v3243
        %v3246 = vmul.f32 %v537, %v3243
        %v3247 = vmul.f32 %v538, %v3243
        %v3376 = vunpack.c.l.b16 %v3111
        %v3377 = vunpack.c.l.b16 %v3112
        %v3378 = vunpack.c.l.b16 %v3113
        %v3379 = vunpack.c.l.b16 %v3114
        %v3380 = vunpack.c.l.b16 %v3115
        %v3381 = vunpack.c.l.b16 %v3116
        %v3382 = vunpack.c.l.b16 %v3117
        %v3383 = vunpack.c.l.b16 %v3118
        %v3384 = vunpack.c.l.b16 %v3119
        %v3385 = vunpack.c.l.b16 %v3120
        %v3386 = vunpack.c.l.b16 %v3121
        %v3387 = vunpack.c.l.b16 %v3122
        %v3388 = vunpack.c.l.b16 %v3123
        %v3389 = vunpack.c.l.b16 %v3124
        %v3390 = vunpack.c.l.b16 %v3125
        %v3391 = vunpack.c.l.b16 %v3126
        %v3392 = vunpack.c.l.b16 %v3127
        %v3393 = vunpack.c.l.b16 %v3128
        %v3394 = vunpack.c.l.b16 %v3129
        %v3395 = vunpack.c.l.b16 %v3130
        %v3396 = vunpack.c.l.b16 %v3131
        %v3397 = vunpack.c.l.b16 %v3132
        %v3398 = vunpack.c.l.b16 %v3133
        %v3399 = vunpack.c.l.b16 %v3134
        %v3400 = vunpack.c.l.b16 %v3135
        %v3401 = vunpack.c.l.b16 %v3136
        %v3402 = vunpack.c.l.b16 %v3137
        %v3403 = vunpack.c.l.b16 %v3138
        %v3404 = vunpack.c.l.b16 %v3139
        %v3405 = vunpack.c.l.b16 %v3140
        %v3406 = vunpack.c.l.b16 %v3141
        %v3407 = vunpack.c.l.b16 %v3142
        %v3408 = vunpack.c.l.b16 %v3143
        %v3409 = vunpack.c.l.b16 %v3144
        %v3410 = vunpack.c.l.b16 %v3145
        %v3411 = vunpack.c.l.b16 %v3146
        %v3412 = vunpack.c.l.b16 %v3147
        %v3413 = vunpack.c.l.b16 %v3148
        %v3414 = vunpack.c.l.b16 %v3149
        %v3415 = vunpack.c.l.b16 %v3150
        %v3416 = vunpack.c.l.b16 %v3151
        %v3417 = vunpack.c.l.b16 %v3152
        %v3418 = vunpack.c.l.b16 %v3153
        %v3419 = vunpack.c.l.b16 %v3154
        %v3420 = vunpack.c.l.b16 %v3155
        %v3421 = vunpack.c.l.b16 %v3156
        %v3422 = vunpack.c.l.b16 %v3157
        %v3423 = vunpack.c.l.b16 %v3158
        %v3424 = vunpack.c.l.b16 %v3159
        %v3425 = vunpack.c.l.b16 %v3160
        %v3426 = vunpack.c.l.b16 %v3161
        %v3427 = vunpack.c.l.b16 %v3162
        %v3428 = vunpack.c.l.b16 %v3163
        %v3429 = vunpack.c.l.b16 %v3164
        %v3430 = vunpack.c.l.b16 %v3165
        %v3431 = vunpack.c.l.b16 %v3166
        %v3432 = vunpack.c.l.b16 %v3167
        %v3433 = vunpack.c.l.b16 %v3168
        %v3434 = vunpack.c.l.b16 %v3169
        %v3435 = vunpack.c.l.b16 %v3170
        %v3436 = vunpack.c.l.b16 %v3171
        %v3437 = vunpack.c.l.b16 %v3172
        %v3438 = vunpack.c.l.b16 %v3173
        %v3439 = vunpack.c.l.b16 %v3174
        %v3440 = vunpack.c.l.b16 %v3175
        %v3441 = vunpack.c.l.b16 %v3176
        %v3442 = vunpack.c.l.b16 %v3177
        %v3443 = vunpack.c.l.b16 %v3178
        %v3444 = vunpack.c.l.b16 %v3179
        %v3445 = vunpack.c.l.b16 %v3180
        %v3446 = vunpack.c.l.b16 %v3181
        %v3447 = vunpack.c.l.b16 %v3182
        %v3448 = vunpack.c.l.b16 %v3183
        %v3449 = vunpack.c.l.b16 %v3184
        %v3450 = vunpack.c.l.b16 %v3185
        %v3451 = vunpack.c.l.b16 %v3186
        %v3452 = vunpack.c.l.b16 %v3187
        %v3453 = vunpack.c.l.b16 %v3188
        %v3454 = vunpack.c.l.b16 %v3189
        %v3455 = vunpack.c.l.b16 %v3190
        %v3456 = vunpack.c.l.b16 %v3191
        %v3457 = vunpack.c.l.b16 %v3192
        %v3458 = vunpack.c.l.b16 %v3193
        %v3459 = vunpack.c.l.b16 %v3194
        %v3460 = vunpack.c.l.b16 %v3195
        %v3461 = vunpack.c.l.b16 %v3196
        %v3462 = vunpack.c.l.b16 %v3197
        %v3463 = vunpack.c.l.b16 %v3198
        %v3464 = vunpack.c.l.b16 %v3199
        %v3465 = vunpack.c.l.b16 %v3200
        %v3466 = vunpack.c.l.b16 %v3201
        %v3467 = vunpack.c.l.b16 %v3202
        %v3468 = vunpack.c.l.b16 %v3203
        %v3469 = vunpack.c.l.b16 %v3204
        %v3470 = vunpack.c.l.b16 %v3205
        %v3471 = vunpack.c.l.b16 %v3206
        %v3472 = vunpack.c.l.b16 %v3207
        %v3473 = vunpack.c.l.b16 %v3208
        %v3474 = vunpack.c.l.b16 %v3209
        %v3475 = vunpack.c.l.b16 %v3210
        %v3476 = vunpack.c.l.b16 %v3211
        %v3477 = vunpack.c.l.b16 %v3212
        %v3478 = vunpack.c.l.b16 %v3213
        %v3479 = vunpack.c.l.b16 %v3214
        %v3480 = vunpack.c.l.b16 %v3215
        %v3481 = vunpack.c.l.b16 %v3216
        %v3482 = vunpack.c.l.b16 %v3217
        %v3483 = vunpack.c.l.b16 %v3218
        %v3484 = vunpack.c.l.b16 %v3219
        %v3485 = vunpack.c.l.b16 %v3220
        %v3486 = vunpack.c.l.b16 %v3221
        %v3487 = vunpack.c.l.b16 %v3222
        %v3488 = vunpack.c.l.b16 %v3223
        %v3489 = vunpack.c.l.b16 %v3224
        %v3490 = vunpack.c.l.b16 %v3225
        %v3491 = vunpack.c.l.b16 %v3226
        %v3492 = vunpack.c.l.b16 %v3227
        %v3493 = vunpack.c.l.b16 %v3228
        %v3494 = vunpack.c.l.b16 %v3229
        %v3495 = vunpack.c.l.b16 %v3230
        %v3496 = vunpack.c.l.b16 %v3231
        %v3497 = vunpack.c.l.b16 %v3232
        %v3498 = vunpack.c.l.b16 %v3233
        %v3499 = vunpack.c.l.b16 %v3234
        %v3500 = vunpack.c.l.b16 %v3235
        %v3501 = vunpack.c.l.b16 %v3236
        %v3502 = vunpack.c.l.b16 %v3237
        %v3503 = vunpack.c.l.b16 %v3238
        %v3504 = vpack.c.b16 %v3377, %v3376
        %v3505 = vpack.c.b16 %v3379, %v3378
        %v3506 = vpack.c.b16 %v3381, %v3380
        %v3507 = vpack.c.b16 %v3383, %v3382
        %v3508 = vpack.c.b16 %v3385, %v3384
        %v3509 = vpack.c.b16 %v3387, %v3386
        %v3510 = vpack.c.b16 %v3389, %v3388
        %v3511 = vpack.c.b16 %v3391, %v3390
        %v3512 = vpack.c.b16 %v3393, %v3392
        %v3513 = vpack.c.b16 %v3395, %v3394
        %v3514 = vpack.c.b16 %v3397, %v3396
        %v3515 = vpack.c.b16 %v3399, %v3398
        %v3516 = vpack.c.b16 %v3401, %v3400
        %v3517 = vpack.c.b16 %v3403, %v3402
        %v3518 = vpack.c.b16 %v3405, %v3404
        %v3519 = vpack.c.b16 %v3407, %v3406
        %v3520 = vpack.c.b16 %v3409, %v3408
        %v3521 = vpack.c.b16 %v3411, %v3410
        %v3522 = vpack.c.b16 %v3413, %v3412
        %v3523 = vpack.c.b16 %v3415, %v3414
        %v3524 = vpack.c.b16 %v3417, %v3416
        %v3525 = vpack.c.b16 %v3419, %v3418
        %v3526 = vpack.c.b16 %v3421, %v3420
        %v3527 = vpack.c.b16 %v3423, %v3422
        %v3528 = vpack.c.b16 %v3425, %v3424
        %v3529 = vpack.c.b16 %v3427, %v3426
        %v3530 = vpack.c.b16 %v3429, %v3428
        %v3531 = vpack.c.b16 %v3431, %v3430
        %v3532 = vpack.c.b16 %v3433, %v3432
        %v3533 = vpack.c.b16 %v3435, %v3434
        %v3534 = vpack.c.b16 %v3437, %v3436
        %v3535 = vpack.c.b16 %v3439, %v3438
        %v3536 = vpack.c.b16 %v3441, %v3440
        %v3537 = vpack.c.b16 %v3443, %v3442
        %v3538 = vpack.c.b16 %v3445, %v3444
        %v3539 = vpack.c.b16 %v3447, %v3446
        %v3540 = vpack.c.b16 %v3449, %v3448
        %v3541 = vpack.c.b16 %v3451, %v3450
        %v3542 = vpack.c.b16 %v3453, %v3452
        %v3543 = vpack.c.b16 %v3455, %v3454
        %v3544 = vpack.c.b16 %v3457, %v3456
        %v3545 = vpack.c.b16 %v3459, %v3458
        %v3546 = vpack.c.b16 %v3461, %v3460
        %v3547 = vpack.c.b16 %v3463, %v3462
        %v3548 = vpack.c.b16 %v3465, %v3464
        %v3549 = vpack.c.b16 %v3467, %v3466
        %v3550 = vpack.c.b16 %v3469, %v3468
        %v3551 = vpack.c.b16 %v3471, %v3470
        %v3552 = vpack.c.b16 %v3473, %v3472
        %v3553 = vpack.c.b16 %v3475, %v3474
        %v3554 = vpack.c.b16 %v3477, %v3476
        %v3555 = vpack.c.b16 %v3479, %v3478
        %v3556 = vpack.c.b16 %v3481, %v3480
        %v3557 = vpack.c.b16 %v3483, %v3482
        %v3558 = vpack.c.b16 %v3485, %v3484
        %v3559 = vpack.c.b16 %v3487, %v3486
        %v3560 = vpack.c.b16 %v3489, %v3488
        %v3561 = vpack.c.b16 %v3491, %v3490
        %v3562 = vpack.c.b16 %v3493, %v3492
        %v3563 = vpack.c.b16 %v3495, %v3494
        %v3564 = vpack.c.b16 %v3497, %v3496
        %v3565 = vpack.c.b16 %v3499, %v3498
        %v3566 = vpack.c.b16 %v3501, %v3500
        %v3567 = vpack.c.b16 %v3503, %v3502
        %3632 = vmatprep.subr.bf16.mxu0 0
        %3633 = vmatpush1.bf16.msra.mxu0 %v3504
        %3634 = vmatprep.subr.bf16.mxu0 0
        %3635 = vmatpush1.bf16.msra.mxu0 %v3505
        %3636 = vmatprep.subr.bf16.mxu0 0
        %3637 = vmatpush1.bf16.msra.mxu0 %v3506
        %3638 = vmatprep.subr.bf16.mxu0 0
        %3639 = vmatpush1.bf16.msra.mxu0 %v3507
        %3640 = vmatprep.subr.bf16.mxu0 0
        %3641 = vmatpush1.bf16.msra.mxu0 %v3508
        %3642 = vmatprep.subr.bf16.mxu0 0
        %3643 = vmatpush1.bf16.msra.mxu0 %v3509
        %3644 = vmatprep.subr.bf16.mxu0 0
        %3645 = vmatpush1.bf16.msra.mxu0 %v3510
        %3646 = vmatprep.subr.bf16.mxu0 0
        %3647 = vmatpush1.bf16.msra.mxu0 %v3511
        %3648 = vmatprep.subr.bf16.mxu0 0
        %3649 = vmatpush1.bf16.msra.mxu0 %v3512
        %3650 = vmatprep.subr.bf16.mxu0 0
        %3651 = vmatpush1.bf16.msra.mxu0 %v3513
        %3652 = vmatprep.subr.bf16.mxu0 0
        %3653 = vmatpush1.bf16.msra.mxu0 %v3514
        %3654 = vmatprep.subr.bf16.mxu0 0
        %3655 = vmatpush1.bf16.msra.mxu0 %v3515
        %3656 = vmatprep.subr.bf16.mxu0 0
        %3657 = vmatpush1.bf16.msra.mxu0 %v3516
        %3658 = vmatprep.subr.bf16.mxu0 0
        %3659 = vmatpush1.bf16.msra.mxu0 %v3517
        %3660 = vmatprep.subr.bf16.mxu0 0
        %3661 = vmatpush1.bf16.msra.mxu0 %v3518
        %3662 = vmatprep.subr.bf16.mxu0 0
        %3663 = vmatpush1.bf16.msra.mxu0 %v3519
        %3664 = vmatprep.mubr.bf16.mxu0 %v3096
        %3665 = vmatmul.mubr.bf16.gmra.mrb[0].mxu0 %v3095
        %v3666 = vpop.f32.mrb[0].mxu0
        %v3667 = vadd.f32 %v3244, %v3666
        %v3668 = vpop.f32.mrb[0].mxu0
        %v3669 = vpop.f32.mrb[0].mxu0
        %v3670 = vadd.f32 %v3245, %v3669
        %v3671 = vpop.f32.mrb[0].mxu0
        %3672 = vmatprep.mubr.bf16.mxu0 %v3104
        %3673 = vmatmul.mubr.bf16.gmra.mrb[0].mxu0 %v3103
        %v3674 = vpop.f32.mrb[0].mxu0
        %v3675 = vadd.f32 %v3246, %v3674
        %v3676 = vpop.f32.mrb[0].mxu0
        %v3677 = vpop.f32.mrb[0].mxu0
        %v3678 = vadd.f32 %v3247, %v3677
        %v3679 = vpop.f32.mrb[0].mxu0
        %3680 = vdwg.mxu0
        %3681 = vmatprep.subr.bf16.mxu0 0
        %3682 = vmatpush1.bf16.msra.mxu0 %v3520
        %3683 = vmatprep.subr.bf16.mxu0 0
        %3684 = vmatpush1.bf16.msra.mxu0 %v3521
        %3685 = vmatprep.subr.bf16.mxu0 0
        %3686 = vmatpush1.bf16.msra.mxu0 %v3522
        %3687 = vmatprep.subr.bf16.mxu0 0
        %3688 = vmatpush1.bf16.msra.mxu0 %v3523
        %3689 = vmatprep.subr.bf16.mxu0 0
        %3690 = vmatpush1.bf16.msra.mxu0 %v3524
        %3691 = vmatprep.subr.bf16.mxu0 0
        %3692 = vmatpush1.bf16.msra.mxu0 %v3525
        %3693 = vmatprep.subr.bf16.mxu0 0
        %3694 = vmatpush1.bf16.msra.mxu0 %v3526
        %3695 = vmatprep.subr.bf16.mxu0 0
        %3696 = vmatpush1.bf16.msra.mxu0 %v3527
        %3697 = vmatprep.subr.bf16.mxu0 0
        %3698 = vmatpush1.bf16.msra.mxu0 %v3528
        %3699 = vmatprep.subr.bf16.mxu0 0
        %3700 = vmatpush1.bf16.msra.mxu0 %v3529
        %3701 = vmatprep.subr.bf16.mxu0 0
        %3702 = vmatpush1.bf16.msra.mxu0 %v3530
        %3703 = vmatprep.subr.bf16.mxu0 0
        %3704 = vmatpush1.bf16.msra.mxu0 %v3531
        %3705 = vmatprep.subr.bf16.mxu0 0
        %3706 = vmatpush1.bf16.msra.mxu0 %v3532
        %3707 = vmatprep.subr.bf16.mxu0 0
        %3708 = vmatpush1.bf16.msra.mxu0 %v3533
        %3709 = vmatprep.subr.bf16.mxu0 0
        %3710 = vmatpush1.bf16.msra.mxu0 %v3534
        %3711 = vmatprep.subr.bf16.mxu0 0
        %3712 = vmatpush1.bf16.msra.mxu0 %v3535
        %3713 = vmatprep.mubr.bf16.mxu0 %v3098
        %3714 = vmatmul.mubr.bf16.gmra.mrb[0].mxu0 %v3097
        %v3715 = vpop.f32.mrb[0].mxu0
        %v3716 = vadd.f32 %v3667, %v3715
        %v3717 = vpop.f32.mrb[0].mxu0
        %v3718 = vpop.f32.mrb[0].mxu0
        %v3719 = vadd.f32 %v3670, %v3718
        %v3720 = vpop.f32.mrb[0].mxu0
        %3721 = vmatprep.mubr.bf16.mxu0 %v3106
        %3722 = vmatmul.mubr.bf16.gmra.mrb[0].mxu0 %v3105
        %v3723 = vpop.f32.mrb[0].mxu0
        %v3724 = vadd.f32 %v3675, %v3723
        %v3725 = vpop.f32.mrb[0].mxu0
        %v3726 = vpop.f32.mrb[0].mxu0
        %v3727 = vadd.f32 %v3678, %v3726
        %v3728 = vpop.f32.mrb[0].mxu0
        %3729 = vdwg.mxu0
        %3730 = vmatprep.subr.bf16.mxu0 0
        %3731 = vmatpush1.bf16.msra.mxu0 %v3536
        %3732 = vmatprep.subr.bf16.mxu0 0
        %3733 = vmatpush1.bf16.msra.mxu0 %v3537
        %3734 = vmatprep.subr.bf16.mxu0 0
        %3735 = vmatpush1.bf16.msra.mxu0 %v3538
        %3736 = vmatprep.subr.bf16.mxu0 0
        %3737 = vmatpush1.bf16.msra.mxu0 %v3539
        %3738 = vmatprep.subr.bf16.mxu0 0
        %3739 = vmatpush1.bf16.msra.mxu0 %v3540
        %3740 = vmatprep.subr.bf16.mxu0 0
        %3741 = vmatpush1.bf16.msra.mxu0 %v3541
        %3742 = vmatprep.subr.bf16.mxu0 0
        %3743 = vmatpush1.bf16.msra.mxu0 %v3542
        %3744 = vmatprep.subr.bf16.mxu0 0
        %3745 = vmatpush1.bf16.msra.mxu0 %v3543
        %3746 = vmatprep.subr.bf16.mxu0 0
        %3747 = vmatpush1.bf16.msra.mxu0 %v3544
        %3748 = vmatprep.subr.bf16.mxu0 0
        %3749 = vmatpush1.bf16.msra.mxu0 %v3545
        %3750 = vmatprep.subr.bf16.mxu0 0
        %3751 = vmatpush1.bf16.msra.mxu0 %v3546
        %3752 = vmatprep.subr.bf16.mxu0 0
        %3753 = vmatpush1.bf16.msra.mxu0 %v3547
        %3754 = vmatprep.subr.bf16.mxu0 0
        %3755 = vmatpush1.bf16.msra.mxu0 %v3548
        %3756 = vmatprep.subr.bf16.mxu0 0
        %3757 = vmatpush1.bf16.msra.mxu0 %v3549
        %3758 = vmatprep.subr.bf16.mxu0 0
        %3759 = vmatpush1.bf16.msra.mxu0 %v3550
        %3760 = vmatprep.subr.bf16.mxu0 0
        %3761 = vmatpush1.bf16.msra.mxu0 %v3551
        %3762 = vmatprep.mubr.bf16.mxu0 %v3100
        %3763 = vmatmul.mubr.bf16.gmra.mrb[0].mxu0 %v3099
        %v3764 = vpop.f32.mrb[0].mxu0
        %v3765 = vadd.f32 %v3716, %v3764
        %v3766 = vpop.f32.mrb[0].mxu0
        %v3767 = vpop.f32.mrb[0].mxu0
        %v3768 = vadd.f32 %v3719, %v3767
        %v3769 = vpop.f32.mrb[0].mxu0
        %3770 = vmatprep.mubr.bf16.mxu0 %v3108
        %3771 = vmatmul.mubr.bf16.gmra.mrb[0].mxu0 %v3107
        %v3772 = vpop.f32.mrb[0].mxu0
        %v3773 = vadd.f32 %v3724, %v3772
        %v3774 = vpop.f32.mrb[0].mxu0
        %v3775 = vpop.f32.mrb[0].mxu0
        %v3776 = vadd.f32 %v3727, %v3775
        %v3777 = vpop.f32.mrb[0].mxu0
        %3778 = vdwg.mxu0
        %3779 = vmatprep.subr.bf16.mxu0 0
        %3780 = vmatpush1.bf16.msra.mxu0 %v3552
        %3781 = vmatprep.subr.bf16.mxu0 0
        %3782 = vmatpush1.bf16.msra.mxu0 %v3553
        %3783 = vmatprep.subr.bf16.mxu0 0
        %3784 = vmatpush1.bf16.msra.mxu0 %v3554
        %3785 = vmatprep.subr.bf16.mxu0 0
        %3786 = vmatpush1.bf16.msra.mxu0 %v3555
        %3787 = vmatprep.subr.bf16.mxu0 0
        %3788 = vmatpush1.bf16.msra.mxu0 %v3556
        %3789 = vmatprep.subr.bf16.mxu0 0
        %3790 = vmatpush1.bf16.msra.mxu0 %v3557
        %3791 = vmatprep.subr.bf16.mxu0 0
        %3792 = vmatpush1.bf16.msra.mxu0 %v3558
        %3793 = vmatprep.subr.bf16.mxu0 0
        %3794 = vmatpush1.bf16.msra.mxu0 %v3559
        %3795 = vmatprep.subr.bf16.mxu0 0
        %3796 = vmatpush1.bf16.msra.mxu0 %v3560
        %3797 = vmatprep.subr.bf16.mxu0 0
        %3798 = vmatpush1.bf16.msra.mxu0 %v3561
        %3799 = vmatprep.subr.bf16.mxu0 0
        %3800 = vmatpush1.bf16.msra.mxu0 %v3562
        %3801 = vmatprep.subr.bf16.mxu0 0
        %3802 = vmatpush1.bf16.msra.mxu0 %v3563
        %3803 = vmatprep.subr.bf16.mxu0 0
        %3804 = vmatpush1.bf16.msra.mxu0 %v3564
        %3805 = vmatprep.subr.bf16.mxu0 0
        %3806 = vmatpush1.bf16.msra.mxu0 %v3565
        %3807 = vmatprep.subr.bf16.mxu0 0
        %3808 = vmatpush1.bf16.msra.mxu0 %v3566
        %3809 = vmatprep.subr.bf16.mxu0 0
        %3810 = vmatpush1.bf16.msra.mxu0 %v3567
        %3811 = vmatprep.mubr.bf16.mxu0 %v3102
        %3812 = vmatmul.mubr.bf16.gmra.mrb[0].mxu0 %v3101
        %v3813 = vpop.f32.mrb[0].mxu0
        %v3814 = vadd.f32 %v3765, %v3813
        %v3815 = vpop.f32.mrb[0].mxu0
        %v3816 = vpop.f32.mrb[0].mxu0
        %v3817 = vadd.f32 %v3768, %v3816
        %v3818 = vpop.f32.mrb[0].mxu0
        %3819 = vmatprep.mubr.bf16.mxu0 %v3110
        %3820 = vmatmul.mubr.bf16.gmra.mrb[0].mxu0 %v3109
        %v3821 = vpop.f32.mrb[0].mxu0
        %v3822 = vadd.f32 %v3773, %v3821
        %v3823 = vpop.f32.mrb[0].mxu0
        %v3824 = vpop.f32.mrb[0].mxu0
        %v3825 = vadd.f32 %v3776, %v3824
        %v3826 = vpop.f32.mrb[0].mxu0
        %3827 = vdwg.mxu0
        %v3828 = vsub.f32 0.0, %v432
        %v3829 = vsub.f32 0.0, %v435
        %v3830 = vsub.f32 0.0, %v440
        %v3831 = vsub.f32 0.0, %v443
        %v3832 = vmul.f32 %v3828, 1.442695
        %v3833 = vpow.pop %v3832
        %v3834 = vmul.f32 %v3829, 1.442695
        %v3835 = vpow.pop %v3834
        %v3836 = vmul.f32 %v3830, 1.442695
        %v3837 = vpow.pop %v3836
        %v3838 = vmul.f32 %v3831, 1.442695
        %v3839 = vpow.pop %v3838
        %v3840 = vadd.f32 %v3833, 1.0
        %v3841 = vadd.f32 %v3835, 1.0
        %v3842 = vadd.f32 %v3837, 1.0
        %v3843 = vadd.f32 %v3839, 1.0
        %v3844 = vrcp.pop %v3840
        %v3845 = vmul.f32 1.0, %v3844
        %v3846 = vrcp.pop %v3841
        %v3847 = vmul.f32 1.0, %v3846
        %v3848 = vrcp.pop %v3842
        %v3849 = vmul.f32 1.0, %v3848
        %v3850 = vrcp.pop %v3843
        %v3851 = vmul.f32 1.0, %v3850
        %v3852 = vmul.f32 %v432, %v3845
        %v3853 = vmul.f32 %v435, %v3847
        %v3854 = vmul.f32 %v440, %v3849
        %v3855 = vmul.f32 %v443, %v3851
        %3860 = vrot.lane.b32.xlu0 %v3852, 64
        %v3861 = vpop.permute.xlu0 %3860
        %3862 = vrot.lane.b32.xlu0 %v3853, 64
        %v3863 = vpop.permute.xlu0 %3862
        %3864 = vrot.lane.b32.xlu0 %v3854, 64
        %v3865 = vpop.permute.xlu0 %3864
        %3866 = vrot.lane.b32.xlu0 %v3855, 64
        %v3867 = vpop.permute.xlu0 %3866
        %v3872 = vmul.f32 %v3814, %v3861
        %v3873 = vmul.f32 %v3817, %v3863
        %v3874 = vmul.f32 %v3822, %v3865
        %v3875 = vmul.f32 %v3825, %v3867
        %v3876 = vpack.c.bf16 %v3873, %v3872
        %v3877 = vpack.c.bf16 %v3875, %v3874
        %v3878 = vld [vmem:[%s6] sm:$0xf]
        %v3879 = vld [vmem:[%s6 + $0x4] sm:$0xf]
        %v3880 = vld [vmem:[%s6 + $0x8] sm:$0xf]
        %v3881 = vld [vmem:[%s6 + $0xc] sm:$0xf]
        %v3882 = vld [vmem:[%s6 + $0x10] sm:$0xf]
        %v3883 = vld [vmem:[%s6 + $0x14] sm:$0xf]
        %v3884 = vld [vmem:[%s6 + $0x18] sm:$0xf]
        %v3885 = vld [vmem:[%s6 + $0x1c] sm:$0xf]
        %v3894 = vunpack.c.l.b16 %v3878
        %v3895 = vunpack.c.l.b16 %v3879
        %v3896 = vunpack.c.l.b16 %v3880
        %v3897 = vunpack.c.l.b16 %v3881
        %v3898 = vunpack.c.l.b16 %v3882
        %v3899 = vunpack.c.l.b16 %v3883
        %v3900 = vunpack.c.l.b16 %v3884
        %v3901 = vunpack.c.l.b16 %v3885
        %v3902 = vpack.c.b16 %v3895, %v3894
        %v3903 = vpack.c.b16 %v3897, %v3896
        %v3904 = vpack.c.b16 %v3899, %v3898
        %v3905 = vpack.c.b16 %v3901, %v3900
        %v3911 = vsel %vm498, %v3876, 0
        %v3914 = vsel %vm498, %v3877, 0
        %3916 = vmatprep.subr.bf16.mxu0 0
        %3917 = vmatpush1.bf16.msra.mxu0 %v3902
        %3918 = vmatprep.subr.bf16.mxu0 0
        %3919 = vmatpush1.bf16.msra.mxu0 %v3903
        %3920 = vmatprep.subr.bf16.mxu0 0
        %3921 = vmatpush1.bf16.msra.mxu0 %v3904
        %3922 = vmatprep.subr.bf16.mxu0 0
        %3923 = vmatpush1.bf16.msra.mxu0 %v3905
        %3924 = vmatprep.subr.bf16.mxu0 0
        %3925 = vmatpush1.bf16.msra.mxu0 0
        %3926 = vmatprep.subr.bf16.mxu0 0
        %3927 = vmatpush1.bf16.msra.mxu0 0
        %3928 = vmatprep.subr.bf16.mxu0 0
        %3929 = vmatpush1.bf16.msra.mxu0 0
        %3930 = vmatprep.subr.bf16.mxu0 0
        %3931 = vmatpush1.bf16.msra.mxu0 0
        %3932 = vmatprep.subr.bf16.mxu0 0
        %3933 = vmatpush1.bf16.msra.mxu0 0
        %3934 = vmatprep.subr.bf16.mxu0 0
        %3935 = vmatpush1.bf16.msra.mxu0 0
        %3936 = vmatprep.subr.bf16.mxu0 0
        %3937 = vmatpush1.bf16.msra.mxu0 0
        %3938 = vmatprep.subr.bf16.mxu0 0
        %3939 = vmatpush1.bf16.msra.mxu0 0
        %3940 = vmatprep.subr.bf16.mxu0 0
        %3941 = vmatpush1.bf16.msra.mxu0 0
        %3942 = vmatprep.subr.bf16.mxu0 0
        %3943 = vmatpush1.bf16.msra.mxu0 0
        %3944 = vmatprep.subr.bf16.mxu0 0
        %3945 = vmatpush1.bf16.msra.mxu0 0
        %3946 = vmatprep.subr.bf16.mxu0 0
        %3947 = vmatpush1.bf16.msra.mxu0 0
        %3948 = vmatprep.mubr.bf16.mxu0 0
        %3949 = vmatmul.mubr.bf16.gmra.mrb[0].mxu0 %v3911
        %v3950 = vpop.f32.mrb[0].mxu0
        %v3951 = vadd.f32 0.0, %v3950
        %v3952 = vpop.f32.mrb[0].mxu0
        %v3953 = vpop.f32.mrb[0].mxu0
        %v3954 = vadd.f32 0.0, %v3953
        %v3955 = vpop.f32.mrb[0].mxu0
        %3956 = vmatprep.mubr.bf16.mxu0 0
        %3957 = vmatmul.mubr.bf16.gmra.mrb[0].mxu0 %v3914
        %v3958 = vpop.f32.mrb[0].mxu0
        %v3959 = vadd.f32 0.0, %v3958
        %v3960 = vpop.f32.mrb[0].mxu0
        %v3961 = vpop.f32.mrb[0].mxu0
        %v3962 = vadd.f32 0.0, %v3961
        %v3963 = vpop.f32.mrb[0].mxu0
        %3964 = vdwg.mxu0
        %v3965 = vadd.f32 %v361, %v3951
        %v3966 = vadd.f32 %v364, %v3954
        %v3967 = vadd.f32 %v367, %v3959
        %v3968 = vadd.f32 %v370, %v3962
        %v3969 = vsel %vm390, %v3965, 0.0
        %3970 = vadd.xlane.f32.xlu0 %v3969
        %v3971 = vpop.xlane.xlu0 %3970
        %v3972 = vsel %vm390, %v3966, 0.0
        %3973 = vadd.xlane.f32.xlu0 %v3972
        %v3974 = vpop.xlane.xlu0 %3973
        %v3975 = vsel %vm390, %v3967, 0.0
        %3976 = vadd.xlane.f32.xlu0 %v3975
        %v3977 = vpop.xlane.xlu0 %3976
        %v3978 = vsel %vm390, %v3968, 0.0
        %3979 = vadd.xlane.f32.xlu0 %v3978
        %v3980 = vpop.xlane.xlu0 %3979
        %v3981 = vrcp.pop 32.0
        %v3982 = vmul.f32 %v3971, %v3981
        %v3983 = vmul.f32 %v3974, %v3981
        %v3984 = vmul.f32 %v3977, %v3981
        %v3985 = vmul.f32 %v3980, %v3981
        %v3986 = vsub.f32 %v3965, %v3982
        %v3987 = vsub.f32 %v3966, %v3983
        %v3988 = vsub.f32 %v3967, %v3984
        %v3989 = vsub.f32 %v3968, %v3985
        %v3990 = vmul.f32 %v3986, %v3986
        %v3991 = vmul.f32 %v3987, %v3987
        %v3992 = vmul.f32 %v3988, %v3988
        %v3993 = vmul.f32 %v3989, %v3989
        %v3994 = vsel %vm390, %v3990, 0.0
        %3995 = vadd.xlane.f32.xlu0 %v3994
        %v3996 = vpop.xlane.xlu0 %3995
        %v3997 = vsel %vm390, %v3991, 0.0
        %3998 = vadd.xlane.f32.xlu0 %v3997
        %v3999 = vpop.xlane.xlu0 %3998
        %v4000 = vsel %vm390, %v3992, 0.0
        %4001 = vadd.xlane.f32.xlu0 %v4000
        %v4002 = vpop.xlane.xlu0 %4001
        %v4003 = vsel %vm390, %v3993, 0.0
        %4004 = vadd.xlane.f32.xlu0 %v4003
        %v4005 = vpop.xlane.xlu0 %4004
        %v4006 = vmul.f32 %v3996, %v3981
        %v4007 = vmul.f32 %v3999, %v3981
        %v4008 = vmul.f32 %v4002, %v3981
        %v4009 = vmul.f32 %v4005, %v3981
        %v4010 = vadd.f32 %v4006, 1e-05
        %v4011 = vadd.f32 %v4007, 1e-05
        %v4012 = vadd.f32 %v4008, 1e-05
        %v4013 = vadd.f32 %v4009, 1e-05
        %v4014 = vrsqrt.pop %v4010
        %v4015 = vrsqrt.pop %v4011
        %v4016 = vrsqrt.pop %v4012
        %v4017 = vrsqrt.pop %v4013
        %v4018 = vmul.f32 %v3986, %v4014
        %v4019 = vmul.f32 %v3987, %v4015
        %v4020 = vmul.f32 %v3988, %v4016
        %v4021 = vmul.f32 %v3989, %v4017
        %v4022 = vld [vmem:[%s7 + $0x3] sm:$0x1]
        %v4023 = vlaneseq
        %v4024 = vshrl.u32 %v4023, 7
        %v4025 = vsub.s32 0, %v4024
        %v4026 = vrot.slane %v4022, %v4025
        %v4027 = vmul.f32 %v4018, %v4026
        %v4028 = vmul.f32 %v4019, %v4026
        %v4029 = vmul.f32 %v4020, %v4026
        %v4030 = vmul.f32 %v4021, %v4026
        %v4031 = vld [vmem:[%s7 + $0x4] sm:$0x1]
        %v4032 = vlaneseq
        %v4033 = vshrl.u32 %v4032, 7
        %v4034 = vsub.s32 0, %v4033
        %v4035 = vrot.slane %v4031, %v4034
        %v4036 = vadd.f32 %v4027, %v4035
        %v4037 = vadd.f32 %v4028, %v4035
        %v4038 = vadd.f32 %v4029, %v4035
        %v4039 = vadd.f32 %v4030, %v4035
        %4041 = vrot.lane.b32.xlu0 %v4037, 32
        %v4042 = vpop.permute.xlu0 %4041
        %4045 = vrot.lane.b32.xlu0 %v4038, 64
        %v4046 = vpop.permute.xlu0 %4045
        %4049 = vrot.lane.b32.xlu0 %v4039, 96
        %v4050 = vpop.permute.xlu0 %4049
        %v4052 = vsel %vm390, %v4036, %v4042
        %v4053 = vsel %vm498, %v4052, %v4046
        %vm4054 = vcmask 785408
        %v4055 = vsel %vm4054, %v4053, %v4050
        %4056 = vst [vmem:[%s335] sm:$0xff] %v4055
        %s4057 = sand.u32 %s220, 1
        %s4058 = scalar_lea.sflag [#allocation8], %s4057
        %s4059 = sand.u32 %s220, 1
        %s4060 = smul.addr %s4059, 8
        %s4061 = scalar_lea.vmem [#allocation9], %s4060
        // Predicated region
        $region61: #{tpu_custom_call.1} parent=51 // pred_check
          %p4062 = pneg %p230
        $region62: #{tpu_custom_call.1} parent=51 // pred_check_branch
          %4064 = sbr.rel (%p4062) target = $region64
        $region63: #{tpu_custom_call.1} parent=51 // pred_region
          %s4066 = ssub.s32 128, 128
          %4067 = vsyncadd %s4058, %s4066
          %s4068 = smul.addr %s27, 2
          %s4069 = sadd.s32 %s28, %s4068
          %s4070 = smul.addr %s4069, 128
          %s4071 = scalar_lea.hbm %s8, %s4070
          %s4073 = sshll.u32 %s4061, 4
          %s4074 = int_to_ptr.vmem [resolvable:$true] %s4073
          %4076 = dma.vmem_to_hbm [thread:$0]  %s4074, 128, %s4071, %s4058
        $region64: #{tpu_custom_call.1} parent=51 // pred_fallthru
          _
      $region52: #{tpu_custom_call.1} parent=5 // pred_fallthru
        _
      %p4077 = scmp.le.s32.totalorder 2, %s18
      // Predicated region
      $region65: #{tpu_custom_call.1} parent=5 // pred_check
        %p4078 = pneg %p4077
      $region66: #{tpu_custom_call.1} parent=5 // pred_check_branch
        %4080 = sbr.rel (%p4078) target = $region68
      $region67: #{tpu_custom_call.1} parent=5 // pred_region
        %s4081 = ssub.s32 %s18, 2
        // Predicated region
        $region69: #{tpu_custom_call.1} parent=67 // pred_check
          %p4082 = pneg %p236
        $region70: #{tpu_custom_call.1} parent=67 // pred_check_branch
          %4084 = sbr.rel (%p4082) target = $region72
        $region71: #{tpu_custom_call.1} parent=67 // pred_region
          %s4085 = sand.u32 %s221, 1
          %s4086 = scalar_lea.sflag [#allocation8], %s4085
          %s4087 = sand.u32 %s221, 1
          %s4088 = smul.addr %s4087, 8
          %s4089 = scalar_lea.vmem [#allocation9], %s4088
          %4090 = dma.done %s4086, 128
        $region72: #{tpu_custom_call.1} parent=67 // pred_fallthru
          _
      $region68: #{tpu_custom_call.1} parent=5 // pred_fallthru
        _
    $region6: #{tpu_custom_call.1} parent=1 // loop_footer
      %s22 = sadd.s32 1, %s18
    $region7: #{tpu_custom_call.1} parent=1 // loop_footer_branch
      %17 = sbr.rel target = $region3
    $region8: #{tpu_custom_call.1} parent=1 // loop_exit
      _
    %4091 = vsyncpa [#allocation7], 1
    %s4092 = scalar_lea.sflag [#allocation7], 1
    %4093 = vsyncpa %s4092, 1
    %4094 = vsyncpa [#allocation8], 1
    %s4095 = scalar_lea.sflag [#allocation8], 1
    %4096 = vsyncpa %s4095, 1

</llo_original>
